<compile_context>
chip_gen: v7x
topology: tpu7x:2x2x1
jax: 0.10.0
libtpu: 0.0.40
codegen_flags: <defaults>
</compile_context>

<pallas_src>
import jax
import jax.numpy as jnp
from jax.experimental import pallas as pl
from jax.experimental.pallas import tpu as pltpu


def _pitches(w0):
    # Flat-image row pitches per layer.  wp3 is the layer-3 pitch; the exact
    # halving relation wp1 = 2*wp2 = 4*wp3 lets each 2x2 pool emit the next
    # layer's pitch directly from a stride-2 row gather.
    wp3 = ((w0 // 4 + 2 + 7) // 8) * 8          # multiple of 8, >= W/4 + 2
    return 4 * wp3, 2 * wp3, wp3


# ---------------------------------------------------------------------------
# Fused 3-layer kernel (one batch element per grid step).
# ---------------------------------------------------------------------------
def _make_kernel(h0, w0, wp1, wp2, wp3, c1, c2, c3):
    h1, w1 = h0 // 2, w0 // 2
    h2, w2 = h1 // 2, w1 // 2
    ho, wo = h2 // 2, w2 // 2                    # final output spatial dims
    f32, bf16 = jnp.float32, jnp.bfloat16

    def conv9(a, w_ref, h, wp, cin):
        # 3x3 conv as 9 accumulating MXU dots.  Activation layout: pitch wp,
        # pixel (y, x) at flat row (y+2)*wp + x, zeros at columns [w, wp) and
        # in the 2-row-block margins top/bottom (load-bearing: the wrap-around
        # left-pad read hits column wp-1 of the previous flat row).
        L, base = h * wp, 2 * wp
        acc = None
        for kx in range(3):
            lo = base - wp + (kx - 1)            # +/-1 sublane shift per kx
            ax = a[lo:lo + L + 2 * wp, :]
            for ky in range(3):
                tap = ax[ky * wp:ky * wp + L, :]         # aligned sub-slice
                k = 3 * ky + kx
                d = jnp.dot(tap, w_ref[k * cin:(k + 1) * cin, :],
                            preferred_element_type=f32)
                acc = d if acc is None else acc + d
        return acc                                        # (h*wp, cout) f32

    def vpool(y, h, wp, c):
        # Vertical 2x1 max via aligned reshape/slices (wp % 8 == 0 => free).
        y3 = y.reshape(h // 2, 2 * wp, c)
        return jnp.maximum(y3[:, :wp, :],
                           y3[:, wp:, :]).reshape((h // 2) * wp, c)

    def pool_to_next(y, h, w, wp, zbuf, c):
        # 2x2/stride-2 max pool + re-emit the next layer's flat padded layout
        # at pitch wp//2, carried in bf16.
        ho_, wo_, wph = h // 2, w // 2, wp // 2
        zbuf[...] = vpool(y, h, wp, c)                    # (ho_*wp, c) f32
        # Horizontal pool pairs are adjacent rows (2k, 2k+1): stride-2 gather.
        pa = zbuf[pl.ds(0, ho_ * wph, stride=2), :]
        pb = zbuf[pl.ds(1, ho_ * wph, stride=2), :]
        pooled = jnp.maximum(pa, pb)                      # row py*wph + px
        # Zero junk columns [wo_, wph): they are the next layer's padding
        # (its taps read column wo_ and, via wrap-around, column wph-1).
        row = jax.lax.broadcasted_iota(jnp.int32, (ho_ * wph, c), 0)
        pooled = jnp.where(row % wph < wo_, pooled, 0.0).astype(bf16)
        z = jnp.zeros((2 * wph, c), bf16)                 # top/bottom margins
        return jnp.concatenate([z, pooled, z], axis=0)    # ((ho_+4)*wph, c)

    def kernel(p_ref, w1_ref, b1_ref, w2_ref, b2_ref, w3_ref, b3_ref,
               o_ref, zbuf1, zbuf2):
        # ---- layer 1: wrapper-built im2col -> one MXU dot -----------------
        y = jnp.dot(p_ref[0], w1_ref[...], preferred_element_type=f32)
        y = jnp.maximum(y + b1_ref[...], 0.0)             # (h0*wp1, c1) f32
        a = pool_to_next(y, h0, w0, wp1, zbuf1, c1)       # ((h1+4)*wp2, c1)

        # ---- layer 2 -------------------------------------------------------
        y = conv9(a, w2_ref, h1, wp2, c1)
        y = jnp.maximum(y + b2_ref[...], 0.0)             # (h1*wp2, c2)
        a = pool_to_next(y, h1, w1, wp2, zbuf2, c2)       # ((h2+4)*wp3, c2)

        # ---- layer 3 -------------------------------------------------------
        y = conv9(a, w3_ref, h2, wp3, c2)
        y = jnp.maximum(y + b3_ref[...], 0.0)             # (h2*wp3, c3)
        zv = vpool(y, h2, wp3, c3)                        # (ho*wp3, c3)
        # Last pool: the ho*wo real pool centers are direct row-pair maxima.
        outs = []
        for py in range(ho):
            for px in range(wo):
                r = 2 * (py * (wp3 // 2) + px)
                outs.append(jnp.maximum(zv[r:r + 1, :], zv[r + 1:r + 2, :]))
        o_ref[0] = jnp.concatenate(outs, axis=0).astype(o_ref.dtype)

    return kernel


# ---------------------------------------------------------------------------
# Wrapper: cheap layout prep in XLA + one pallas_call.
# ---------------------------------------------------------------------------
def _layer1_patches(x_nhwc, wp1):
    # Layer-1 im2col in XLA (Cin is tiny): (N,H,W,C) -> (N, H*wp1, 9*C) bf16,
    # row r = oy*wp1 + ox, tap order (ky, kx, cin).  Columns [W, wp1) are 0.
    n, h, w, c = x_nhwc.shape
    xp = jnp.pad(x_nhwc, ((0, 0), (1, 1), (1, 1), (0, 0)))
    taps = [xp[:, ky:ky + h, kx:kx + w, :]
            for ky in range(3) for kx in range(3)]
    p = jnp.concatenate(taps, axis=-1)                    # (N, H, W, 9C)
    p = jnp.pad(p, ((0, 0), (0, 0), (0, wp1 - w), (0, 0)))
    return p.reshape(n, h * wp1, 9 * c).astype(jnp.bfloat16)


@jax.jit
def feature_cnn_forward(x_nchw, params):
    n, cin0, h0, w0 = x_nchw.shape
    assert h0 % 8 == 0 and w0 % 8 == 0, "needs three exact 2x2 pools"
    (w1, b1), (w2, b2), (w3, b3) = params
    c1, c2, c3 = w1.shape[0], w2.shape[0], w3.shape[0]
    wp1, wp2, wp3 = _pitches(w0)

    x_nhwc = jnp.transpose(x_nchw, (0, 2, 3, 1)).astype(jnp.float32)
    p = _layer1_patches(x_nhwc, wp1)

    def wmat(wt):
        # torch (Cout, Cin, 3, 3) -> (9*Cin, Cout), row order (ky, kx, cin).
        co, ci = wt.shape[0], wt.shape[1]
        return jnp.transpose(wt, (2, 3, 1, 0)).reshape(9 * ci, co) \
                  .astype(jnp.bfloat16)

    w1m, w2m, w3m = wmat(w1), wmat(w2), wmat(w3)
    b1m = b1.reshape(1, -1).astype(jnp.float32)
    b2m = b2.reshape(1, -1).astype(jnp.float32)
    b3m = b3.reshape(1, -1).astype(jnp.float32)

    ho, wo = h0 // 8, w0 // 8

    def full2d(arr):
        return pl.BlockSpec(arr.shape, lambda i: (0, 0))

    out = pl.pallas_call(
        _make_kernel(h0, w0, wp1, wp2, wp3, c1, c2, c3),
        out_shape=jax.ShapeDtypeStruct((n, ho * wo, c3), jnp.float32),
        grid=(n,),
        in_specs=[
            pl.BlockSpec((1, h0 * wp1, 9 * cin0), lambda i: (i, 0, 0)),
            full2d(w1m), full2d(b1m),
            full2d(w2m), full2d(b2m),
            full2d(w3m), full2d(b3m),
        ],
        out_specs=pl.BlockSpec((1, ho * wo, c3), lambda i: (i, 0, 0)),
        scratch_shapes=[
            pltpu.VMEM(((h0 // 2) * wp1, c1), jnp.float32),   # pool scratch 1
            pltpu.VMEM(((h0 // 4) * wp2, c2), jnp.float32),   # pool scratch 2
        ],
        compiler_params=pltpu.CompilerParams(
            dimension_semantics=("parallel",),
            vmem_limit_bytes=32 * 1024 * 1024),
    )(p, w1m, b1m, w2m, b2m, w3m, b3m)

    # (N, Ho*Wo, Cout) -> NCHW; tiny, done in XLA.
    return jnp.transpose(out.reshape(n, ho, wo, c3), (0, 3, 1, 2))


# ---------------------------------------------------------------------------
# Parameter init + pure-JAX reference (for correctness checking).
# ---------------------------------------------------------------------------
def init_params(key, in_channels=1):
    chans = [in_channels, 32, 64, 128]
    params = []
    for i in range(3):
        key, kw, kb = jax.random.split(key, 3)
        cin, cout = chans[i], chans[i + 1]
        scale = (cin * 9) ** -0.5
        w = jax.random.normal(kw, (cout, cin, 3, 3), jnp.float32) * scale
        b = jax.random.normal(kb, (cout,), jnp.float32) * 0.01
        params.append((w, b))
    return params


def reference_forward(x_nchw, params):
    x = jnp.transpose(x_nchw, (0, 2, 3, 1))
    for w, b in params:
        w_hwio = jnp.transpose(w, (2, 3, 1, 0))
        y = jax.lax.conv_general_dilated(
            x, w_hwio, window_strides=(1, 1), padding=((1, 1), (1, 1)),
            dimension_numbers=("NHWC", "HWIO", "NHWC"))
        y = jnp.maximum(y + b, 0.0)
        x = jax.lax.reduce_window(y, -jnp.inf, jax.lax.max,
                                  (1, 2, 2, 1), (1, 2, 2, 1), "VALID")
    return jnp.transpose(x, (0, 3, 1, 2))


if __name__ == "__main__":
    key = jax.random.PRNGKey(0)
    kx_, kp = jax.random.split(key)

    # Module-default shapes: batch=2, in_channels=1, 16x16 spatial.
    x = jax.random.normal(kx_, (2, 1, 16, 16), jnp.float32)
    params = init_params(kp, in_channels=1)
    out = jax.block_until_ready(feature_cnn_forward(x, params))
    assert out.shape == (2, 128, 2, 2), out.shape
    ref = reference_forward(x, params)
    err = float(jnp.max(jnp.abs(out - ref)))
    # bf16 matmul operands / bf16 inter-layer activations (f32 accumulation).
    assert jnp.allclose(out, ref, atol=5e-2, rtol=5e-2), f"max err {err}"

    # Also exercise the in_channels != 1 path (same kernel, K = 9*Cin).
    x4 = jax.random.normal(kx_, (2, 4, 16, 16), jnp.float32)
    params4 = init_params(kp, in_channels=4)
    out4 = jax.block_until_ready(feature_cnn_forward(x4, params4))
    ref4 = reference_forward(x4, params4)
    assert out4.shape == (2, 128, 2, 2), out4.shape
    err4 = float(jnp.max(jnp.abs(out4 - ref4)))
    assert jnp.allclose(out4, ref4, atol=5e-2, rtol=5e-2), f"max err {err4}"

    print("KERNEL_OK")
</pallas_src>

<mosaic_0001>
module attributes {stable_mosaic.version = 11 : i64} {
  func.func @kernel(%arg0: i32, %arg1: memref<1x512x9xbf16, #tpu.memory_space<vmem>>, %arg2: memref<9x32xbf16, #tpu.memory_space<vmem>>, %arg3: memref<1x32xf32, #tpu.memory_space<vmem>>, %arg4: memref<288x64xbf16, #tpu.memory_space<vmem>>, %arg5: memref<1x64xf32, #tpu.memory_space<vmem>>, %arg6: memref<576x128xbf16, #tpu.memory_space<vmem>>, %arg7: memref<1x128xf32, #tpu.memory_space<vmem>>, %arg8: memref<1x4x128xf32, #tpu.memory_space<vmem>>, %arg9: memref<256x32xf32, #tpu.memory_space<vmem>>, %arg10: memref<64x64xf32, #tpu.memory_space<vmem>>) attributes {dimension_semantics = [#tpu.dimension_semantics<parallel>], iteration_bounds = array<i64: 2>, scalar_prefetch = 0 : i64, scratch_operands = 2 : i64, tpu.core_type = #tpu.core_type<tc>, window_params = [{transform_indices = @transform_0, window_bounds = array<i64: 1, 512, 9>}, {pipeline_mode = #tpu.pipeline_mode<synchronous>, transform_indices = @transform_1, window_bounds = array<i64: 9, 32>}, {pipeline_mode = #tpu.pipeline_mode<synchronous>, transform_indices = @transform_2, window_bounds = array<i64: 1, 32>}, {pipeline_mode = #tpu.pipeline_mode<synchronous>, transform_indices = @transform_3, window_bounds = array<i64: 288, 64>}, {pipeline_mode = #tpu.pipeline_mode<synchronous>, transform_indices = @transform_4, window_bounds = array<i64: 1, 64>}, {pipeline_mode = #tpu.pipeline_mode<synchronous>, transform_indices = @transform_5, window_bounds = array<i64: 576, 128>}, {pipeline_mode = #tpu.pipeline_mode<synchronous>, transform_indices = @transform_6, window_bounds = array<i64: 1, 128>}, {transform_indices = @transform_7, window_bounds = array<i64: 1, 4, 128>}]} {
    %c0 = arith.constant 0 : index
    %c0_0 = arith.constant 0 : index
    %c0_1 = arith.constant 0 : index
    %0 = vector.load %arg1[%c0, %c0_0, %c0_1] : memref<1x512x9xbf16, #tpu.memory_space<vmem>>, vector<1x512x9xbf16>
    %1 = vector.shape_cast %0 : vector<1x512x9xbf16> to vector<512x9xbf16>
    %c0_2 = arith.constant 0 : index
    %c0_3 = arith.constant 0 : index
    %2 = vector.load %arg2[%c0_2, %c0_3] : memref<9x32xbf16, #tpu.memory_space<vmem>>, vector<9x32xbf16>
    %cst = arith.constant dense<0.000000e+00> : vector<512x32xf32>
    %3 = tpu.matmul %1, %2, %cst {dimension_numbers = #tpu.dot_dimension_numbers<[1], [0], [0], [1], [0, 0, 1, 1], [], []>} : vector<512x9xbf16>, vector<9x32xbf16>, vector<512x32xf32> -> vector<512x32xf32>
    %c0_4 = arith.constant 0 : index
    %c0_5 = arith.constant 0 : index
    %4 = vector.load %arg3[%c0_4, %c0_5] : memref<1x32xf32, #tpu.memory_space<vmem>>, vector<1x32xf32>
    %5 = vector.broadcast %4 : vector<1x32xf32> to vector<512x32xf32>
    %6 = arith.addf %3, %5 : vector<512x32xf32>
    %cst_6 = arith.constant 0.000000e+00 : f32
    %7 = vector.broadcast %cst_6 : f32 to vector<512x32xf32>
    %8 = arith.maximumf %6, %7 : vector<512x32xf32>
    %9 = vector.shape_cast %8 : vector<512x32xf32> to vector<8x64x32xf32>
    %10 = vector.extract_strided_slice %9 {offsets = [0, 0, 0], sizes = [8, 32, 32], strides = [1, 1, 1]} : vector<8x64x32xf32> to vector<8x32x32xf32>
    %11 = vector.extract_strided_slice %9 {offsets = [0, 32, 0], sizes = [8, 32, 32], strides = [1, 1, 1]} : vector<8x64x32xf32> to vector<8x32x32xf32>
    %12 = arith.maximumf %10, %11 : vector<8x32x32xf32>
    %13 = vector.shape_cast %12 : vector<8x32x32xf32> to vector<256x32xf32>
    %c0_7 = arith.constant 0 : index
    %c0_8 = arith.constant 0 : index
    %14 = vector.load %arg9[%c0_7, %c0_8] : memref<256x32xf32, #tpu.memory_space<vmem>>, vector<256x32xf32>
    tpu.vector_store %arg9[%c0_7, %c0_8], %13 {strides = array<i32>} : memref<256x32xf32, #tpu.memory_space<vmem>>, vector<256x32xf32>,
    %c0_9 = arith.constant 0 : index
    %c0_10 = arith.constant 0 : index
    %15 = tpu.strided_load %arg9[%c0_9, %c0_10] {strides = array<i32: 2, 1>} : memref<256x32xf32, #tpu.memory_space<vmem>>, vector<128x32xf32>
    %c1 = arith.constant 1 : index
    %c0_11 = arith.constant 0 : index
    %16 = tpu.strided_load %arg9[%c1, %c0_11] {strides = array<i32: 2, 1>} : memref<256x32xf32, #tpu.memory_space<vmem>>, vector<128x32xf32>
    %17 = arith.maximumf %15, %16 : vector<128x32xf32>
    %18 = tpu.iota {dimensions = array<i32: 0>} : vector<128x32xi32>
    %c16_i32 = arith.constant 16 : i32
    %c0_i32 = arith.constant 0 : i32
    %19 = arith.cmpi eq, %c16_i32, %c0_i32 : i32
    %c1_i32 = arith.constant 1 : i32
    %20 = arith.select %19, %c1_i32, %c16_i32 : i32
    %21 = vector.broadcast %20 : i32 to vector<128x32xi32>
    %22 = arith.remsi %18, %21 : vector<128x32xi32>
    %c0_i32_12 = arith.constant 0 : i32
    %23 = vector.broadcast %c0_i32_12 : i32 to vector<128x32xi32>
    %24 = arith.cmpi ne, %22, %23 : vector<128x32xi32>
    %c0_i32_13 = arith.constant 0 : i32
    %25 = vector.broadcast %c0_i32_13 : i32 to vector<128x32xi32>
    %26 = arith.cmpi slt, %22, %25 : vector<128x32xi32>
    %c0_i32_14 = arith.constant 0 : i32
    %27 = arith.cmpi slt, %20, %c0_i32_14 : i32
    %28 = vector.broadcast %27 : i1 to vector<128x32xi1>
    %29 = vector.broadcast %28 : vector<128x32xi1> to vector<128x32xi1>
    %30 = arith.xori %26, %29 : vector<128x32xi1>
    %31 = arith.andi %30, %24 : vector<128x32xi1>
    %32 = vector.broadcast %20 : i32 to vector<128x32xi32>
    %33 = arith.addi %22, %32 : vector<128x32xi32>
    %34 = arith.select %31, %33, %22 : vector<128x32xi1>, vector<128x32xi32>
    %c8_i32 = arith.constant 8 : i32
    %35 = vector.broadcast %c8_i32 : i32 to vector<128x32xi32>
    %36 = arith.cmpi slt, %34, %35 : vector<128x32xi32>
    %cst_15 = arith.constant 0.000000e+00 : f32
    %37 = vector.broadcast %cst_15 : f32 to vector<128x32xf32>
    %38 = arith.select %36, %17, %37 : vector<128x32xi1>, vector<128x32xf32>
    %39 = arith.truncf %38 : vector<128x32xf32> to vector<128x32xbf16>
    %cst_16 = arith.constant 0.000000e+00 : bf16
    %40 = vector.broadcast %cst_16 : bf16 to vector<32x32xbf16>
    %41 = tpu.concatenate %40, %39, %40 in 0 : vector<32x32xbf16>, vector<128x32xbf16>, vector<32x32xbf16> -> vector<192x32xbf16>
    %42 = vector.extract_strided_slice %41 {offsets = [15, 0], sizes = [160, 32], strides = [1, 1]} : vector<192x32xbf16> to vector<160x32xbf16>
    %43 = vector.extract_strided_slice %42 {offsets = [0, 0], sizes = [128, 32], strides = [1, 1]} : vector<160x32xbf16> to vector<128x32xbf16>
    %c0_17 = arith.constant 0 : index
    %c0_18 = arith.constant 0 : index
    %44 = vector.load %arg4[%c0_17, %c0_18] : memref<288x64xbf16, #tpu.memory_space<vmem>>, vector<32x64xbf16>
    %cst_19 = arith.constant dense<0.000000e+00> : vector<128x64xf32>
    %45 = tpu.matmul %43, %44, %cst_19 {dimension_numbers = #tpu.dot_dimension_numbers<[1], [0], [0], [1], [0, 0, 1, 1], [], []>} : vector<128x32xbf16>, vector<32x64xbf16>, vector<128x64xf32> -> vector<128x64xf32>
    %46 = vector.extract_strided_slice %42 {offsets = [16, 0], sizes = [128, 32], strides = [1, 1]} : vector<160x32xbf16> to vector<128x32xbf16>
    %c96 = arith.constant 96 : index
    %c0_20 = arith.constant 0 : index
    %47 = vector.load %arg4[%c96, %c0_20] : memref<288x64xbf16, #tpu.memory_space<vmem>>, vector<32x64xbf16>
    %cst_21 = arith.constant dense<0.000000e+00> : vector<128x64xf32>
    %48 = tpu.matmul %46, %47, %cst_21 {dimension_numbers = #tpu.dot_dimension_numbers<[1], [0], [0], [1], [0, 0, 1, 1], [], []>} : vector<128x32xbf16>, vector<32x64xbf16>, vector<128x64xf32> -> vector<128x64xf32>
    %49 = arith.addf %45, %48 : vector<128x64xf32>
    %50 = vector.extract_strided_slice %42 {offsets = [32, 0], sizes = [128, 32], strides = [1, 1]} : vector<160x32xbf16> to vector<128x32xbf16>
    %c192 = arith.constant 192 : index
    %c0_22 = arith.constant 0 : index
    %51 = vector.load %arg4[%c192, %c0_22] : memref<288x64xbf16, #tpu.memory_space<vmem>>, vector<32x64xbf16>
    %cst_23 = arith.constant dense<0.000000e+00> : vector<128x64xf32>
    %52 = tpu.matmul %50, %51, %cst_23 {dimension_numbers = #tpu.dot_dimension_numbers<[1], [0], [0], [1], [0, 0, 1, 1], [], []>} : vector<128x32xbf16>, vector<32x64xbf16>, vector<128x64xf32> -> vector<128x64xf32>
    %53 = arith.addf %49, %52 : vector<128x64xf32>
    %54 = vector.extract_strided_slice %41 {offsets = [16, 0], sizes = [160, 32], strides = [1, 1]} : vector<192x32xbf16> to vector<160x32xbf16>
    %55 = vector.extract_strided_slice %54 {offsets = [0, 0], sizes = [128, 32], strides = [1, 1]} : vector<160x32xbf16> to vector<128x32xbf16>
    %c32 = arith.constant 32 : index
    %c0_24 = arith.constant 0 : index
    %56 = vector.load %arg4[%c32, %c0_24] : memref<288x64xbf16, #tpu.memory_space<vmem>>, vector<32x64xbf16>
    %cst_25 = arith.constant dense<0.000000e+00> : vector<128x64xf32>
    %57 = tpu.matmul %55, %56, %cst_25 {dimension_numbers = #tpu.dot_dimension_numbers<[1], [0], [0], [1], [0, 0, 1, 1], [], []>} : vector<128x32xbf16>, vector<32x64xbf16>, vector<128x64xf32> -> vector<128x64xf32>
    %58 = arith.addf %53, %57 : vector<128x64xf32>
    %59 = vector.extract_strided_slice %54 {offsets = [16, 0], sizes = [128, 32], strides = [1, 1]} : vector<160x32xbf16> to vector<128x32xbf16>
    %c128 = arith.constant 128 : index
    %c0_26 = arith.constant 0 : index
    %60 = vector.load %arg4[%c128, %c0_26] : memref<288x64xbf16, #tpu.memory_space<vmem>>, vector<32x64xbf16>
    %cst_27 = arith.constant dense<0.000000e+00> : vector<128x64xf32>
    %61 = tpu.matmul %59, %60, %cst_27 {dimension_numbers = #tpu.dot_dimension_numbers<[1], [0], [0], [1], [0, 0, 1, 1], [], []>} : vector<128x32xbf16>, vector<32x64xbf16>, vector<128x64xf32> -> vector<128x64xf32>
    %62 = arith.addf %58, %61 : vector<128x64xf32>
    %63 = vector.extract_strided_slice %54 {offsets = [32, 0], sizes = [128, 32], strides = [1, 1]} : vector<160x32xbf16> to vector<128x32xbf16>
    %c224 = arith.constant 224 : index
    %c0_28 = arith.constant 0 : index
    %64 = vector.load %arg4[%c224, %c0_28] : memref<288x64xbf16, #tpu.memory_space<vmem>>, vector<32x64xbf16>
    %cst_29 = arith.constant dense<0.000000e+00> : vector<128x64xf32>
    %65 = tpu.matmul %63, %64, %cst_29 {dimension_numbers = #tpu.dot_dimension_numbers<[1], [0], [0], [1], [0, 0, 1, 1], [], []>} : vector<128x32xbf16>, vector<32x64xbf16>, vector<128x64xf32> -> vector<128x64xf32>
    %66 = arith.addf %62, %65 : vector<128x64xf32>
    %67 = vector.extract_strided_slice %41 {offsets = [17, 0], sizes = [160, 32], strides = [1, 1]} : vector<192x32xbf16> to vector<160x32xbf16>
    %68 = vector.extract_strided_slice %67 {offsets = [0, 0], sizes = [128, 32], strides = [1, 1]} : vector<160x32xbf16> to vector<128x32xbf16>
    %c64 = arith.constant 64 : index
    %c0_30 = arith.constant 0 : index
    %69 = vector.load %arg4[%c64, %c0_30] : memref<288x64xbf16, #tpu.memory_space<vmem>>, vector<32x64xbf16>
    %cst_31 = arith.constant dense<0.000000e+00> : vector<128x64xf32>
    %70 = tpu.matmul %68, %69, %cst_31 {dimension_numbers = #tpu.dot_dimension_numbers<[1], [0], [0], [1], [0, 0, 1, 1], [], []>} : vector<128x32xbf16>, vector<32x64xbf16>, vector<128x64xf32> -> vector<128x64xf32>
    %71 = arith.addf %66, %70 : vector<128x64xf32>
    %72 = vector.extract_strided_slice %67 {offsets = [16, 0], sizes = [128, 32], strides = [1, 1]} : vector<160x32xbf16> to vector<128x32xbf16>
    %c160 = arith.constant 160 : index
    %c0_32 = arith.constant 0 : index
    %73 = vector.load %arg4[%c160, %c0_32] : memref<288x64xbf16, #tpu.memory_space<vmem>>, vector<32x64xbf16>
    %cst_33 = arith.constant dense<0.000000e+00> : vector<128x64xf32>
    %74 = tpu.matmul %72, %73, %cst_33 {dimension_numbers = #tpu.dot_dimension_numbers<[1], [0], [0], [1], [0, 0, 1, 1], [], []>} : vector<128x32xbf16>, vector<32x64xbf16>, vector<128x64xf32> -> vector<128x64xf32>
    %75 = arith.addf %71, %74 : vector<128x64xf32>
    %76 = vector.extract_strided_slice %67 {offsets = [32, 0], sizes = [128, 32], strides = [1, 1]} : vector<160x32xbf16> to vector<128x32xbf16>
    %c256 = arith.constant 256 : index
    %c0_34 = arith.constant 0 : index
    %77 = vector.load %arg4[%c256, %c0_34] : memref<288x64xbf16, #tpu.memory_space<vmem>>, vector<32x64xbf16>
    %cst_35 = arith.constant dense<0.000000e+00> : vector<128x64xf32>
    %78 = tpu.matmul %76, %77, %cst_35 {dimension_numbers = #tpu.dot_dimension_numbers<[1], [0], [0], [1], [0, 0, 1, 1], [], []>} : vector<128x32xbf16>, vector<32x64xbf16>, vector<128x64xf32> -> vector<128x64xf32>
    %79 = arith.addf %75, %78 : vector<128x64xf32>
    %c0_36 = arith.constant 0 : index
    %c0_37 = arith.constant 0 : index
    %80 = vector.load %arg5[%c0_36, %c0_37] : memref<1x64xf32, #tpu.memory_space<vmem>>, vector<1x64xf32>
    %81 = vector.broadcast %80 : vector<1x64xf32> to vector<128x64xf32>
    %82 = arith.addf %79, %81 : vector<128x64xf32>
    %cst_38 = arith.constant 0.000000e+00 : f32
    %83 = vector.broadcast %cst_38 : f32 to vector<128x64xf32>
    %84 = arith.maximumf %82, %83 : vector<128x64xf32>
    %85 = vector.shape_cast %84 : vector<128x64xf32> to vector<4x32x64xf32>
    %86 = vector.extract_strided_slice %85 {offsets = [0, 0, 0], sizes = [4, 16, 64], strides = [1, 1, 1]} : vector<4x32x64xf32> to vector<4x16x64xf32>
    %87 = vector.extract_strided_slice %85 {offsets = [0, 16, 0], sizes = [4, 16, 64], strides = [1, 1, 1]} : vector<4x32x64xf32> to vector<4x16x64xf32>
    %88 = arith.maximumf %86, %87 : vector<4x16x64xf32>
    %89 = vector.shape_cast %88 : vector<4x16x64xf32> to vector<64x64xf32>
    %c0_39 = arith.constant 0 : index
    %c0_40 = arith.constant 0 : index
    %90 = vector.load %arg10[%c0_39, %c0_40] : memref<64x64xf32, #tpu.memory_space<vmem>>, vector<64x64xf32>
    tpu.vector_store %arg10[%c0_39, %c0_40], %89 {strides = array<i32>} : memref<64x64xf32, #tpu.memory_space<vmem>>, vector<64x64xf32>,
    %c0_41 = arith.constant 0 : index
    %c0_42 = arith.constant 0 : index
    %91 = tpu.strided_load %arg10[%c0_41, %c0_42] {strides = array<i32: 2, 1>} : memref<64x64xf32, #tpu.memory_space<vmem>>, vector<32x64xf32>
    %c1_43 = arith.constant 1 : index
    %c0_44 = arith.constant 0 : index
    %92 = tpu.strided_load %arg10[%c1_43, %c0_44] {strides = array<i32: 2, 1>} : memref<64x64xf32, #tpu.memory_space<vmem>>, vector<32x64xf32>
    %93 = arith.maximumf %91, %92 : vector<32x64xf32>
    %94 = tpu.iota {dimensions = array<i32: 0>} : vector<32x64xi32>
    %c8_i32_45 = arith.constant 8 : i32
    %c0_i32_46 = arith.constant 0 : i32
    %95 = arith.cmpi eq, %c8_i32_45, %c0_i32_46 : i32
    %c1_i32_47 = arith.constant 1 : i32
    %96 = arith.select %95, %c1_i32_47, %c8_i32_45 : i32
    %97 = vector.broadcast %96 : i32 to vector<32x64xi32>
    %98 = arith.remsi %94, %97 : vector<32x64xi32>
    %c0_i32_48 = arith.constant 0 : i32
    %99 = vector.broadcast %c0_i32_48 : i32 to vector<32x64xi32>
    %100 = arith.cmpi ne, %98, %99 : vector<32x64xi32>
    %c0_i32_49 = arith.constant 0 : i32
    %101 = vector.broadcast %c0_i32_49 : i32 to vector<32x64xi32>
    %102 = arith.cmpi slt, %98, %101 : vector<32x64xi32>
    %c0_i32_50 = arith.constant 0 : i32
    %103 = arith.cmpi slt, %96, %c0_i32_50 : i32
    %104 = vector.broadcast %103 : i1 to vector<32x64xi1>
    %105 = vector.broadcast %104 : vector<32x64xi1> to vector<32x64xi1>
    %106 = arith.xori %102, %105 : vector<32x64xi1>
    %107 = arith.andi %106, %100 : vector<32x64xi1>
    %108 = vector.broadcast %96 : i32 to vector<32x64xi32>
    %109 = arith.addi %98, %108 : vector<32x64xi32>
    %110 = arith.select %107, %109, %98 : vector<32x64xi1>, vector<32x64xi32>
    %c4_i32 = arith.constant 4 : i32
    %111 = vector.broadcast %c4_i32 : i32 to vector<32x64xi32>
    %112 = arith.cmpi slt, %110, %111 : vector<32x64xi32>
    %cst_51 = arith.constant 0.000000e+00 : f32
    %113 = vector.broadcast %cst_51 : f32 to vector<32x64xf32>
    %114 = arith.select %112, %93, %113 : vector<32x64xi1>, vector<32x64xf32>
    %115 = arith.truncf %114 : vector<32x64xf32> to vector<32x64xbf16>
    %cst_52 = arith.constant 0.000000e+00 : bf16
    %116 = vector.broadcast %cst_52 : bf16 to vector<16x64xbf16>
    %117 = tpu.concatenate %116, %115, %116 in 0 : vector<16x64xbf16>, vector<32x64xbf16>, vector<16x64xbf16> -> vector<64x64xbf16>
    %118 = vector.extract_strided_slice %117 {offsets = [7, 0], sizes = [48, 64], strides = [1, 1]} : vector<64x64xbf16> to vector<48x64xbf16>
    %119 = vector.extract_strided_slice %118 {offsets = [0, 0], sizes = [32, 64], strides = [1, 1]} : vector<48x64xbf16> to vector<32x64xbf16>
    %c0_53 = arith.constant 0 : index
    %c0_54 = arith.constant 0 : index
    %120 = vector.load %arg6[%c0_53, %c0_54] : memref<576x128xbf16, #tpu.memory_space<vmem>>, vector<64x128xbf16>
    %cst_55 = arith.constant dense<0.000000e+00> : vector<32x128xf32>
    %121 = tpu.matmul %119, %120, %cst_55 {dimension_numbers = #tpu.dot_dimension_numbers<[1], [0], [0], [1], [0, 0, 1, 1], [], []>} : vector<32x64xbf16>, vector<64x128xbf16>, vector<32x128xf32> -> vector<32x128xf32>
    %122 = vector.extract_strided_slice %118 {offsets = [8, 0], sizes = [32, 64], strides = [1, 1]} : vector<48x64xbf16> to vector<32x64xbf16>
    %c192_56 = arith.constant 192 : index
    %c0_57 = arith.constant 0 : index
    %123 = vector.load %arg6[%c192_56, %c0_57] : memref<576x128xbf16, #tpu.memory_space<vmem>>, vector<64x128xbf16>
    %cst_58 = arith.constant dense<0.000000e+00> : vector<32x128xf32>
    %124 = tpu.matmul %122, %123, %cst_58 {dimension_numbers = #tpu.dot_dimension_numbers<[1], [0], [0], [1], [0, 0, 1, 1], [], []>} : vector<32x64xbf16>, vector<64x128xbf16>, vector<32x128xf32> -> vector<32x128xf32>
    %125 = arith.addf %121, %124 : vector<32x128xf32>
    %126 = vector.extract_strided_slice %118 {offsets = [16, 0], sizes = [32, 64], strides = [1, 1]} : vector<48x64xbf16> to vector<32x64xbf16>
    %c384 = arith.constant 384 : index
    %c0_59 = arith.constant 0 : index
    %127 = vector.load %arg6[%c384, %c0_59] : memref<576x128xbf16, #tpu.memory_space<vmem>>, vector<64x128xbf16>
    %cst_60 = arith.constant dense<0.000000e+00> : vector<32x128xf32>
    %128 = tpu.matmul %126, %127, %cst_60 {dimension_numbers = #tpu.dot_dimension_numbers<[1], [0], [0], [1], [0, 0, 1, 1], [], []>} : vector<32x64xbf16>, vector<64x128xbf16>, vector<32x128xf32> -> vector<32x128xf32>
    %129 = arith.addf %125, %128 : vector<32x128xf32>
    %130 = vector.extract_strided_slice %117 {offsets = [8, 0], sizes = [48, 64], strides = [1, 1]} : vector<64x64xbf16> to vector<48x64xbf16>
    %131 = vector.extract_strided_slice %130 {offsets = [0, 0], sizes = [32, 64], strides = [1, 1]} : vector<48x64xbf16> to vector<32x64xbf16>
    %c64_61 = arith.constant 64 : index
    %c0_62 = arith.constant 0 : index
    %132 = vector.load %arg6[%c64_61, %c0_62] : memref<576x128xbf16, #tpu.memory_space<vmem>>, vector<64x128xbf16>
    %cst_63 = arith.constant dense<0.000000e+00> : vector<32x128xf32>
    %133 = tpu.matmul %131, %132, %cst_63 {dimension_numbers = #tpu.dot_dimension_numbers<[1], [0], [0], [1], [0, 0, 1, 1], [], []>} : vector<32x64xbf16>, vector<64x128xbf16>, vector<32x128xf32> -> vector<32x128xf32>
    %134 = arith.addf %129, %133 : vector<32x128xf32>
    %135 = vector.extract_strided_slice %130 {offsets = [8, 0], sizes = [32, 64], strides = [1, 1]} : vector<48x64xbf16> to vector<32x64xbf16>
    %c256_64 = arith.constant 256 : index
    %c0_65 = arith.constant 0 : index
    %136 = vector.load %arg6[%c256_64, %c0_65] : memref<576x128xbf16, #tpu.memory_space<vmem>>, vector<64x128xbf16>
    %cst_66 = arith.constant dense<0.000000e+00> : vector<32x128xf32>
    %137 = tpu.matmul %135, %136, %cst_66 {dimension_numbers = #tpu.dot_dimension_numbers<[1], [0], [0], [1], [0, 0, 1, 1], [], []>} : vector<32x64xbf16>, vector<64x128xbf16>, vector<32x128xf32> -> vector<32x128xf32>
    %138 = arith.addf %134, %137 : vector<32x128xf32>
    %139 = vector.extract_strided_slice %130 {offsets = [16, 0], sizes = [32, 64], strides = [1, 1]} : vector<48x64xbf16> to vector<32x64xbf16>
    %c448 = arith.constant 448 : index
    %c0_67 = arith.constant 0 : index
    %140 = vector.load %arg6[%c448, %c0_67] : memref<576x128xbf16, #tpu.memory_space<vmem>>, vector<64x128xbf16>
    %cst_68 = arith.constant dense<0.000000e+00> : vector<32x128xf32>
    %141 = tpu.matmul %139, %140, %cst_68 {dimension_numbers = #tpu.dot_dimension_numbers<[1], [0], [0], [1], [0, 0, 1, 1], [], []>} : vector<32x64xbf16>, vector<64x128xbf16>, vector<32x128xf32> -> vector<32x128xf32>
    %142 = arith.addf %138, %141 : vector<32x128xf32>
    %143 = vector.extract_strided_slice %117 {offsets = [9, 0], sizes = [48, 64], strides = [1, 1]} : vector<64x64xbf16> to vector<48x64xbf16>
    %144 = vector.extract_strided_slice %143 {offsets = [0, 0], sizes = [32, 64], strides = [1, 1]} : vector<48x64xbf16> to vector<32x64xbf16>
    %c128_69 = arith.constant 128 : index
    %c0_70 = arith.constant 0 : index
    %145 = vector.load %arg6[%c128_69, %c0_70] : memref<576x128xbf16, #tpu.memory_space<vmem>>, vector<64x128xbf16>
    %cst_71 = arith.constant dense<0.000000e+00> : vector<32x128xf32>
    %146 = tpu.matmul %144, %145, %cst_71 {dimension_numbers = #tpu.dot_dimension_numbers<[1], [0], [0], [1], [0, 0, 1, 1], [], []>} : vector<32x64xbf16>, vector<64x128xbf16>, vector<32x128xf32> -> vector<32x128xf32>
    %147 = arith.addf %142, %146 : vector<32x128xf32>
    %148 = vector.extract_strided_slice %143 {offsets = [8, 0], sizes = [32, 64], strides = [1, 1]} : vector<48x64xbf16> to vector<32x64xbf16>
    %c320 = arith.constant 320 : index
    %c0_72 = arith.constant 0 : index
    %149 = vector.load %arg6[%c320, %c0_72] : memref<576x128xbf16, #tpu.memory_space<vmem>>, vector<64x128xbf16>
    %cst_73 = arith.constant dense<0.000000e+00> : vector<32x128xf32>
    %150 = tpu.matmul %148, %149, %cst_73 {dimension_numbers = #tpu.dot_dimension_numbers<[1], [0], [0], [1], [0, 0, 1, 1], [], []>} : vector<32x64xbf16>, vector<64x128xbf16>, vector<32x128xf32> -> vector<32x128xf32>
    %151 = arith.addf %147, %150 : vector<32x128xf32>
    %152 = vector.extract_strided_slice %143 {offsets = [16, 0], sizes = [32, 64], strides = [1, 1]} : vector<48x64xbf16> to vector<32x64xbf16>
    %c512 = arith.constant 512 : index
    %c0_74 = arith.constant 0 : index
    %153 = vector.load %arg6[%c512, %c0_74] : memref<576x128xbf16, #tpu.memory_space<vmem>>, vector<64x128xbf16>
    %cst_75 = arith.constant dense<0.000000e+00> : vector<32x128xf32>
    %154 = tpu.matmul %152, %153, %cst_75 {dimension_numbers = #tpu.dot_dimension_numbers<[1], [0], [0], [1], [0, 0, 1, 1], [], []>} : vector<32x64xbf16>, vector<64x128xbf16>, vector<32x128xf32> -> vector<32x128xf32>
    %155 = arith.addf %151, %154 : vector<32x128xf32>
    %c0_76 = arith.constant 0 : index
    %c0_77 = arith.constant 0 : index
    %156 = vector.load %arg7[%c0_76, %c0_77] : memref<1x128xf32, #tpu.memory_space<vmem>>, vector<1x128xf32>
    %157 = vector.broadcast %156 : vector<1x128xf32> to vector<32x128xf32>
    %158 = arith.addf %155, %157 : vector<32x128xf32>
    %cst_78 = arith.constant 0.000000e+00 : f32
    %159 = vector.broadcast %cst_78 : f32 to vector<32x128xf32>
    %160 = arith.maximumf %158, %159 : vector<32x128xf32>
    %161 = vector.shape_cast %160 : vector<32x128xf32> to vector<2x16x128xf32>
    %162 = vector.extract_strided_slice %161 {offsets = [0, 0, 0], sizes = [2, 8, 128], strides = [1, 1, 1]} : vector<2x16x128xf32> to vector<2x8x128xf32>
    %163 = vector.extract_strided_slice %161 {offsets = [0, 8, 0], sizes = [2, 8, 128], strides = [1, 1, 1]} : vector<2x16x128xf32> to vector<2x8x128xf32>
    %164 = arith.maximumf %162, %163 : vector<2x8x128xf32>
    %165 = vector.shape_cast %164 : vector<2x8x128xf32> to vector<16x128xf32>
    %166 = vector.extract_strided_slice %165 {offsets = [0, 0], sizes = [1, 128], strides = [1, 1]} : vector<16x128xf32> to vector<1x128xf32>
    %167 = vector.extract_strided_slice %165 {offsets = [1, 0], sizes = [1, 128], strides = [1, 1]} : vector<16x128xf32> to vector<1x128xf32>
    %168 = arith.maximumf %166, %167 : vector<1x128xf32>
    %169 = vector.extract_strided_slice %165 {offsets = [2, 0], sizes = [1, 128], strides = [1, 1]} : vector<16x128xf32> to vector<1x128xf32>
    %170 = vector.extract_strided_slice %165 {offsets = [3, 0], sizes = [1, 128], strides = [1, 1]} : vector<16x128xf32> to vector<1x128xf32>
    %171 = arith.maximumf %169, %170 : vector<1x128xf32>
    %172 = vector.extract_strided_slice %165 {offsets = [8, 0], sizes = [1, 128], strides = [1, 1]} : vector<16x128xf32> to vector<1x128xf32>
    %173 = vector.extract_strided_slice %165 {offsets = [9, 0], sizes = [1, 128], strides = [1, 1]} : vector<16x128xf32> to vector<1x128xf32>
    %174 = arith.maximumf %172, %173 : vector<1x128xf32>
    %175 = vector.extract_strided_slice %165 {offsets = [10, 0], sizes = [1, 128], strides = [1, 1]} : vector<16x128xf32> to vector<1x128xf32>
    %176 = vector.extract_strided_slice %165 {offsets = [11, 0], sizes = [1, 128], strides = [1, 1]} : vector<16x128xf32> to vector<1x128xf32>
    %177 = arith.maximumf %175, %176 : vector<1x128xf32>
    %178 = tpu.concatenate %168, %171, %174, %177 in 0 : vector<1x128xf32>, vector<1x128xf32>, vector<1x128xf32>, vector<1x128xf32> -> vector<4x128xf32>
    %c0_79 = arith.constant 0 : index
    %c0_80 = arith.constant 0 : index
    %c0_81 = arith.constant 0 : index
    %179 = vector.load %arg8[%c0_79, %c0_80, %c0_81] : memref<1x4x128xf32, #tpu.memory_space<vmem>>, vector<1x4x128xf32>
    %180 = vector.shape_cast %179 : vector<1x4x128xf32> to vector<4x128xf32>
    %181 = vector.shape_cast %178 : vector<4x128xf32> to vector<1x4x128xf32>
    tpu.vector_store %arg8[%c0_79, %c0_80, %c0_81], %181 {strides = array<i32>} : memref<1x4x128xf32, #tpu.memory_space<vmem>>, vector<1x4x128xf32>,
    return
  }
  func.func @transform_0(%arg0: i32) -> (i32, i32, i32) {
    %c0_i32 = arith.constant 0 : i32
    %c0_i32_0 = arith.constant 0 : i32
    %c0_i32_1 = arith.constant 0 : i32
    return %arg0, %c0_i32, %c0_i32_0 : i32, i32, i32
  }
  func.func @transform_1(%arg0: i32) -> (i32, i32) {
    %c0_i32 = arith.constant 0 : i32
    %c0_i32_0 = arith.constant 0 : i32
    %c0_i32_1 = arith.constant 0 : i32
    return %c0_i32, %c0_i32_0 : i32, i32
  }
  func.func @transform_2(%arg0: i32) -> (i32, i32) {
    %c0_i32 = arith.constant 0 : i32
    %c0_i32_0 = arith.constant 0 : i32
    %c0_i32_1 = arith.constant 0 : i32
    return %c0_i32, %c0_i32_0 : i32, i32
  }
  func.func @transform_3(%arg0: i32) -> (i32, i32) {
    %c0_i32 = arith.constant 0 : i32
    %c0_i32_0 = arith.constant 0 : i32
    %c0_i32_1 = arith.constant 0 : i32
    return %c0_i32, %c0_i32_0 : i32, i32
  }
  func.func @transform_4(%arg0: i32) -> (i32, i32) {
    %c0_i32 = arith.constant 0 : i32
    %c0_i32_0 = arith.constant 0 : i32
    %c0_i32_1 = arith.constant 0 : i32
    return %c0_i32, %c0_i32_0 : i32, i32
  }
  func.func @transform_5(%arg0: i32) -> (i32, i32) {
    %c0_i32 = arith.constant 0 : i32
    %c0_i32_0 = arith.constant 0 : i32
    %c0_i32_1 = arith.constant 0 : i32
    return %c0_i32, %c0_i32_0 : i32, i32
  }
  func.func @transform_6(%arg0: i32) -> (i32, i32) {
    %c0_i32 = arith.constant 0 : i32
    %c0_i32_0 = arith.constant 0 : i32
    %c0_i32_1 = arith.constant 0 : i32
    return %c0_i32, %c0_i32_0 : i32, i32
  }
  func.func @transform_7(%arg0: i32) -> (i32, i32, i32) {
    %c0_i32 = arith.constant 0 : i32
    %c0_i32_0 = arith.constant 0 : i32
    %c0_i32_1 = arith.constant 0 : i32
    return %arg0, %c0_i32, %c0_i32_0 : i32, i32, i32
  }
}

</mosaic_0001>

<llo_original>
// kernel: feature_cnn_forward.1
$region0: #{feature_cnn_forward.1}
  #allocation0 [shape = 'u32[]', space=smem, size = 0x4, offset = 0x4, fixed_abs, tag = 'smem constant byte address 0x4 - core index']
  #allocation1 [shape = 'u32[144,128]{1,0:T(1,128)}', space=vmem, size = 0x12000, scoped, tag = 'internal scratch']
  #allocation2 [shape = 'f32[256,32]{1,0:T(8,128)}', space=vmem, size = 0x20000, scoped, tag = 'scratch operand']
  #allocation3 [shape = 'f32[64,64]{1,0:T(8,128)}', space=vmem, size = 0x8000, scoped, tag = 'scratch operand']
  %s0 = inlined_call_operand.vmem [shape: bf16[2,512,9], index: 0, kind: input, shape index: {}]
  %s1 = inlined_call_operand.vmem [shape: bf16[9,32], index: 1, kind: input, shape index: {}]
  %s2 = inlined_call_operand.vmem [shape: f32[1,32], index: 2, kind: input, shape index: {}]
  %s3 = inlined_call_operand.vmem [shape: bf16[288,64], index: 3, kind: input, shape index: {}]
  %s4 = inlined_call_operand.vmem [shape: f32[1,64], index: 4, kind: input, shape index: {}]
  %s5 = inlined_call_operand.vmem [shape: bf16[576,128], index: 5, kind: input, shape index: {}]
  %s6 = inlined_call_operand.vmem [shape: f32[1,128], index: 6, kind: input, shape index: {}]
  %s7 = inlined_call_operand.hbm [shape: f32[2,4,128], index: 7, kind: output, shape index: {}]
  %s8 = sld [smem:[#allocation0]]
  $region61: #{feature_cnn_forward.1} parent=0
    _
  %s10 = ssub.s32 1, %s8
  %s11 = scalar_select 0, %s10, %s8
  $region1: #{feature_cnn_forward.1} parent=0
    #allocation4 [shape = 'u8[4096]{0}', space=vmem, size = 0x1000, scoped, tag = 'output window, operand 0']
    #allocation5 [shape = 's32[2]{0}', space=sflag, size = 0x8, scoped, tag = 'scoped memory for feature_cnn_forward.1']
    %12 = vsyncpa [#allocation5], 0
    %s13 = scalar_lea.sflag [#allocation5], 1
    %14 = vsyncpa %s13, 0
    loop: start=0, step=1, limit=4
    $region2: #{feature_cnn_forward.1} parent=1 // loop_pre_header
      _
    $region3: #{feature_cnn_forward.1} parent=1 // loop_header
      %s16 = sphi 0, %s20
      %p17 = scmp.ge.s32.totalorder %s16, 4
      %s26 = sphi 0, %s28
      %s29 = sphi 0, %s26
      %s30 = sphi 0, %s29
      %s46 = sphi 0, %s30
      %s50 = sphi 0, %s50
      %s52 = sphi 0, %s50
      %s53 = sphi 0, %s52
      %s67 = sphi 0, %s53
      %s71 = sphi 0, %s71
      %s73 = sphi 0, %s71
      %s74 = sphi 0, %s73
      %s88 = sphi 0, %s74
      %s92 = sphi 0, %s92
      %s94 = sphi 0, %s92
      %s95 = sphi 0, %s94
      %s109 = sphi 0, %s95
      %s113 = sphi 0, %s113
      %s115 = sphi 0, %s113
      %s116 = sphi 0, %s115
      %s130 = sphi 0, %s116
      %s134 = sphi 0, %s134
      %s136 = sphi 0, %s134
      %s137 = sphi 0, %s136
      %s151 = sphi 0, %s137
      %s155 = sphi 0, %s155
      %s157 = sphi 0, %s155
      %s158 = sphi 0, %s157
      %s172 = sphi 0, %s158
      %s178 = sphi 0, %s180
      %s181 = sphi 0, %s178
      %s182 = sphi 0, %s181
      %s198 = sphi 0, %s182
    $region4: #{feature_cnn_forward.1} parent=1 // loop_header_branch
      %19 = sbr.rel (%p17) target = $region8
    $region5: #{feature_cnn_forward.1} parent=1 // loop_body
      %s21 = ssub.s32 %s16, 1
      %s22 = ssub.s32 %s16, 2
      %s23 = sadd.s32 %s16, 1
      %s24 = ssub.s32 %s16, %s23
      %p25 = scmp.eq.s32.totalorder %s24, 0
      %s27 = sadd.s32 %s26, 1
      %s28 = scalar_select %p25, %s26, %s27
      %p31 = pneg %p25
      %p32 = scmp.eq.s32.totalorder %s16, 1
      %p33 = por %p31, %p32
      %p34 = scmp.ne.s32.totalorder %s26, %s29
      %p35 = scmp.eq.s32.totalorder %s16, 0
      %p36 = por %p34, %p35
      %p37 = scmp.ne.s32.totalorder %s26, %s29
      %p38 = scmp.eq.s32.totalorder %s21, 1
      %p39 = por %p37, %p38
      %p40 = scmp.ne.s32.totalorder %s29, %s30
      %p41 = scmp.eq.s32.totalorder %s21, 0
      %p42 = por %p40, %p41
      %p43 = scmp.ne.s32.totalorder %s29, %s30
      %p44 = scmp.eq.s32.totalorder %s22, 1
      %p45 = por %p43, %p44
      %p47 = scmp.ne.s32.totalorder %s30, %s46
      %p48 = scmp.eq.s32.totalorder %s22, 0
      %p49 = por %p47, %p48
      %s51 = sadd.s32 %s50, 1
      %p54 = scmp.eq.s32.totalorder %s16, 1
      %p55 = scmp.ne.s32.totalorder %s50, %s52
      %p56 = scmp.eq.s32.totalorder %s16, 0
      %p57 = por %p55, %p56
      %p58 = scmp.ne.s32.totalorder %s50, %s52
      %p59 = scmp.eq.s32.totalorder %s21, 1
      %p60 = por %p58, %p59
      %p61 = scmp.ne.s32.totalorder %s52, %s53
      %p62 = scmp.eq.s32.totalorder %s21, 0
      %p63 = por %p61, %p62
      %p64 = scmp.ne.s32.totalorder %s52, %s53
      %p65 = scmp.eq.s32.totalorder %s22, 1
      %p66 = por %p64, %p65
      %p68 = scmp.ne.s32.totalorder %s53, %s67
      %p69 = scmp.eq.s32.totalorder %s22, 0
      %p70 = por %p68, %p69
      %s72 = sadd.s32 %s71, 1
      %p75 = scmp.eq.s32.totalorder %s16, 1
      %p76 = scmp.ne.s32.totalorder %s71, %s73
      %p77 = scmp.eq.s32.totalorder %s16, 0
      %p78 = por %p76, %p77
      %p79 = scmp.ne.s32.totalorder %s71, %s73
      %p80 = scmp.eq.s32.totalorder %s21, 1
      %p81 = por %p79, %p80
      %p82 = scmp.ne.s32.totalorder %s73, %s74
      %p83 = scmp.eq.s32.totalorder %s21, 0
      %p84 = por %p82, %p83
      %p85 = scmp.ne.s32.totalorder %s73, %s74
      %p86 = scmp.eq.s32.totalorder %s22, 1
      %p87 = por %p85, %p86
      %p89 = scmp.ne.s32.totalorder %s74, %s88
      %p90 = scmp.eq.s32.totalorder %s22, 0
      %p91 = por %p89, %p90
      %s93 = sadd.s32 %s92, 1
      %p96 = scmp.eq.s32.totalorder %s16, 1
      %p97 = scmp.ne.s32.totalorder %s92, %s94
      %p98 = scmp.eq.s32.totalorder %s16, 0
      %p99 = por %p97, %p98
      %p100 = scmp.ne.s32.totalorder %s92, %s94
      %p101 = scmp.eq.s32.totalorder %s21, 1
      %p102 = por %p100, %p101
      %p103 = scmp.ne.s32.totalorder %s94, %s95
      %p104 = scmp.eq.s32.totalorder %s21, 0
      %p105 = por %p103, %p104
      %p106 = scmp.ne.s32.totalorder %s94, %s95
      %p107 = scmp.eq.s32.totalorder %s22, 1
      %p108 = por %p106, %p107
      %p110 = scmp.ne.s32.totalorder %s95, %s109
      %p111 = scmp.eq.s32.totalorder %s22, 0
      %p112 = por %p110, %p111
      %s114 = sadd.s32 %s113, 1
      %p117 = scmp.eq.s32.totalorder %s16, 1
      %p118 = scmp.ne.s32.totalorder %s113, %s115
      %p119 = scmp.eq.s32.totalorder %s16, 0
      %p120 = por %p118, %p119
      %p121 = scmp.ne.s32.totalorder %s113, %s115
      %p122 = scmp.eq.s32.totalorder %s21, 1
      %p123 = por %p121, %p122
      %p124 = scmp.ne.s32.totalorder %s115, %s116
      %p125 = scmp.eq.s32.totalorder %s21, 0
      %p126 = por %p124, %p125
      %p127 = scmp.ne.s32.totalorder %s115, %s116
      %p128 = scmp.eq.s32.totalorder %s22, 1
      %p129 = por %p127, %p128
      %p131 = scmp.ne.s32.totalorder %s116, %s130
      %p132 = scmp.eq.s32.totalorder %s22, 0
      %p133 = por %p131, %p132
      %s135 = sadd.s32 %s134, 1
      %p138 = scmp.eq.s32.totalorder %s16, 1
      %p139 = scmp.ne.s32.totalorder %s134, %s136
      %p140 = scmp.eq.s32.totalorder %s16, 0
      %p141 = por %p139, %p140
      %p142 = scmp.ne.s32.totalorder %s134, %s136
      %p143 = scmp.eq.s32.totalorder %s21, 1
      %p144 = por %p142, %p143
      %p145 = scmp.ne.s32.totalorder %s136, %s137
      %p146 = scmp.eq.s32.totalorder %s21, 0
      %p147 = por %p145, %p146
      %p148 = scmp.ne.s32.totalorder %s136, %s137
      %p149 = scmp.eq.s32.totalorder %s22, 1
      %p150 = por %p148, %p149
      %p152 = scmp.ne.s32.totalorder %s137, %s151
      %p153 = scmp.eq.s32.totalorder %s22, 0
      %p154 = por %p152, %p153
      %s156 = sadd.s32 %s155, 1
      %p159 = scmp.eq.s32.totalorder %s16, 1
      %p160 = scmp.ne.s32.totalorder %s155, %s157
      %p161 = scmp.eq.s32.totalorder %s16, 0
      %p162 = por %p160, %p161
      %p163 = scmp.ne.s32.totalorder %s155, %s157
      %p164 = scmp.eq.s32.totalorder %s21, 1
      %p165 = por %p163, %p164
      %p166 = scmp.ne.s32.totalorder %s157, %s158
      %p167 = scmp.eq.s32.totalorder %s21, 0
      %p168 = por %p166, %p167
      %p169 = scmp.ne.s32.totalorder %s157, %s158
      %p170 = scmp.eq.s32.totalorder %s22, 1
      %p171 = por %p169, %p170
      %p173 = scmp.ne.s32.totalorder %s158, %s172
      %p174 = scmp.eq.s32.totalorder %s22, 0
      %p175 = por %p173, %p174
      %s176 = ssub.s32 %s16, %s23
      %p177 = scmp.eq.s32.totalorder %s176, 0
      %s179 = sadd.s32 %s178, 1
      %s180 = scalar_select %p177, %s178, %s179
      %p183 = pneg %p177
      %p184 = scmp.eq.s32.totalorder %s16, 1
      %p185 = por %p183, %p184
      %p186 = scmp.ne.s32.totalorder %s178, %s181
      %p187 = scmp.eq.s32.totalorder %s16, 0
      %p188 = por %p186, %p187
      %p189 = scmp.ne.s32.totalorder %s178, %s181
      %p190 = scmp.eq.s32.totalorder %s21, 1
      %p191 = por %p189, %p190
      %p192 = scmp.ne.s32.totalorder %s181, %s182
      %p193 = scmp.eq.s32.totalorder %s21, 0
      %p194 = por %p192, %p193
      %p195 = scmp.ne.s32.totalorder %s181, %s182
      %p196 = scmp.eq.s32.totalorder %s22, 1
      %p197 = por %p195, %p196
      %p199 = scmp.ne.s32.totalorder %s182, %s198
      %p200 = scmp.eq.s32.totalorder %s22, 0
      %p201 = por %p199, %p200
      %p202 = scmp.le.s32.totalorder 1, %s16
      %p203 = scmp.lt.s32.totalorder %s16, 3
      %p204 = pnand %p202, %p203
      %p205 = pneg %p204
      // Predicated region
      $region9: #{feature_cnn_forward.1} parent=5 // pred_check
        _
      $region10: #{feature_cnn_forward.1} parent=5 // pred_check_branch
        %207 = sbr.rel (%p204) target = $region12
      $region11: #{feature_cnn_forward.1} parent=5 // pred_region
        %s208 = ssub.s32 %s16, 1
        // Predicated region
        $region13: #{feature_cnn_forward.1} parent=11 // pred_check
          %p209 = pneg %p63
        $region14: #{feature_cnn_forward.1} parent=11 // pred_check_branch
          %211 = sbr.rel (%p209) target = $region16
        $region15: #{feature_cnn_forward.1} parent=11 // pred_region
          _
        $region16: #{feature_cnn_forward.1} parent=11 // pred_fallthru
          _
        // Predicated region
        $region17: #{feature_cnn_forward.1} parent=11 // pred_check
          %p212 = pneg %p84
        $region18: #{feature_cnn_forward.1} parent=11 // pred_check_branch
          %214 = sbr.rel (%p212) target = $region20
        $region19: #{feature_cnn_forward.1} parent=11 // pred_region
          _
        $region20: #{feature_cnn_forward.1} parent=11 // pred_fallthru
          _
        // Predicated region
        $region21: #{feature_cnn_forward.1} parent=11 // pred_check
          %p215 = pneg %p105
        $region22: #{feature_cnn_forward.1} parent=11 // pred_check_branch
          %217 = sbr.rel (%p215) target = $region24
        $region23: #{feature_cnn_forward.1} parent=11 // pred_region
          _
        $region24: #{feature_cnn_forward.1} parent=11 // pred_fallthru
          _
        // Predicated region
        $region25: #{feature_cnn_forward.1} parent=11 // pred_check
          %p218 = pneg %p126
        $region26: #{feature_cnn_forward.1} parent=11 // pred_check_branch
          %220 = sbr.rel (%p218) target = $region28
        $region27: #{feature_cnn_forward.1} parent=11 // pred_region
          _
        $region28: #{feature_cnn_forward.1} parent=11 // pred_fallthru
          _
        // Predicated region
        $region29: #{feature_cnn_forward.1} parent=11 // pred_check
          %p221 = pneg %p147
        $region30: #{feature_cnn_forward.1} parent=11 // pred_check_branch
          %223 = sbr.rel (%p221) target = $region32
        $region31: #{feature_cnn_forward.1} parent=11 // pred_region
          _
        $region32: #{feature_cnn_forward.1} parent=11 // pred_fallthru
          _
        // Predicated region
        $region33: #{feature_cnn_forward.1} parent=11 // pred_check
          %p224 = pneg %p168
        $region34: #{feature_cnn_forward.1} parent=11 // pred_check_branch
          %226 = sbr.rel (%p224) target = $region36
        $region35: #{feature_cnn_forward.1} parent=11 // pred_region
          _
        $region36: #{feature_cnn_forward.1} parent=11 // pred_fallthru
          _
      $region12: #{feature_cnn_forward.1} parent=5 // pred_fallthru
        _
      %p227 = scmp.lt.s32.totalorder %s16, 2
      // Predicated region
      $region37: #{feature_cnn_forward.1} parent=5 // pred_check
        %p228 = pneg %p227
      $region38: #{feature_cnn_forward.1} parent=5 // pred_check_branch
        %230 = sbr.rel (%p228) target = $region40
      $region39: #{feature_cnn_forward.1} parent=5 // pred_region
        // Predicated region
        $region41: #{feature_cnn_forward.1} parent=39 // pred_check
          %p231 = pneg %p36
        $region42: #{feature_cnn_forward.1} parent=39 // pred_check_branch
          %233 = sbr.rel (%p231) target = $region44
        $region43: #{feature_cnn_forward.1} parent=39 // pred_region
          %p234 = scmp.lt.s32.totalorder %s16, 1
          %s235 = scalar_select %p234, %s16, 1
          %s236 = smul.addr %s235, 64
          %s237 = smul.addr %s236, 4
          %s238 = scalar_lea.vmem %s0, %s237
        $region44: #{feature_cnn_forward.1} parent=39 // pred_fallthru
          _
      $region40: #{feature_cnn_forward.1} parent=5 // pred_fallthru
        _
      %p239 = scmp.le.s32.totalorder 1, %s16
      %p240 = scmp.lt.s32.totalorder %s16, 3
      %p241 = pnand %p239, %p240
      %p242 = pneg %p241
      // Predicated region
      $region45: #{feature_cnn_forward.1} parent=5 // pred_check
        _
      $region46: #{feature_cnn_forward.1} parent=5 // pred_check_branch
        %244 = sbr.rel (%p241) target = $region48
      $region47: #{feature_cnn_forward.1} parent=5 // pred_region
        %s245 = ssub.s32 %s16, 1
        %p246 = scmp.lt.s32.totalorder %s21, 1
        %s247 = scalar_select %p246, %s21, 1
        %s248 = smul.addr %s247, 64
        %s249 = smul.addr %s248, 4
        %s250 = scalar_lea.vmem %s0, %s249
        %p251 = pneg %p42
        %p252 = pneg %p39
        %p253 = pneg %p63
        %p254 = pneg %p60
        %p255 = pneg %p84
        %p256 = pneg %p81
        %p257 = pneg %p105
        %p258 = pneg %p102
        %p259 = pneg %p126
        %p260 = pneg %p123
        %p261 = pneg %p147
        %p262 = pneg %p144
        %p263 = pneg %p168
        %p264 = pneg %p165
        %p265 = pneg %p194
        %p266 = pneg %p191
        %s267 = sand.u32 %s181, 1
        %s268 = scalar_lea.sflag [#allocation5], %s267
        %s269 = sand.u32 %s181, 1
        %s270 = smul.addr %s269, 4
        %s271 = scalar_lea.vmem [#allocation4], %s270
        %p272 = scmp.lt.s32.totalorder %s21, 1
        %s273 = scalar_select %p272, %s21, 1
        %s274 = smul.addr %s273, 64
        %s275 = smul.addr %s274, 4
        %s276 = scalar_lea.vmem %s0, %s275
        %v278 = vld [vmem:[%s276] sm:$0xf]
        %v279 = vld [vmem:[%s276 + $0x4] sm:$0xf]
        %v280 = vld [vmem:[%s276 + $0x8] sm:$0xf]
        %v281 = vld [vmem:[%s276 + $0xc] sm:$0xf]
        %v282 = vld [vmem:[%s276 + $0x10] sm:$0xf]
        %v283 = vld [vmem:[%s276 + $0x14] sm:$0xf]
        %v284 = vld [vmem:[%s276 + $0x18] sm:$0xf]
        %v285 = vld [vmem:[%s276 + $0x1c] sm:$0xf]
        %v286 = vld [vmem:[%s276 + $0x20] sm:$0xf]
        %v287 = vld [vmem:[%s276 + $0x24] sm:$0xf]
        %v288 = vld [vmem:[%s276 + $0x28] sm:$0xf]
        %v289 = vld [vmem:[%s276 + $0x2c] sm:$0xf]
        %v290 = vld [vmem:[%s276 + $0x30] sm:$0xf]
        %v291 = vld [vmem:[%s276 + $0x34] sm:$0xf]
        %v292 = vld [vmem:[%s276 + $0x38] sm:$0xf]
        %v293 = vld [vmem:[%s276 + $0x3c] sm:$0xf]
        %v294 = vld [vmem:[%s276 + $0x40] sm:$0xf]
        %v295 = vld [vmem:[%s276 + $0x44] sm:$0xf]
        %v296 = vld [vmem:[%s276 + $0x48] sm:$0xf]
        %v297 = vld [vmem:[%s276 + $0x4c] sm:$0xf]
        %v298 = vld [vmem:[%s276 + $0x50] sm:$0xf]
        %v299 = vld [vmem:[%s276 + $0x54] sm:$0xf]
        %v300 = vld [vmem:[%s276 + $0x58] sm:$0xf]
        %v301 = vld [vmem:[%s276 + $0x5c] sm:$0xf]
        %v302 = vld [vmem:[%s276 + $0x60] sm:$0xf]
        %v303 = vld [vmem:[%s276 + $0x64] sm:$0xf]
        %v304 = vld [vmem:[%s276 + $0x68] sm:$0xf]
        %v305 = vld [vmem:[%s276 + $0x6c] sm:$0xf]
        %v306 = vld [vmem:[%s276 + $0x70] sm:$0xf]
        %v307 = vld [vmem:[%s276 + $0x74] sm:$0xf]
        %v308 = vld [vmem:[%s276 + $0x78] sm:$0xf]
        %v309 = vld [vmem:[%s276 + $0x7c] sm:$0xf]
        %v310 = vld [vmem:[%s276 + $0x80] sm:$0xf]
        %v311 = vld [vmem:[%s276 + $0x84] sm:$0xf]
        %v312 = vld [vmem:[%s276 + $0x88] sm:$0xf]
        %v313 = vld [vmem:[%s276 + $0x8c] sm:$0xf]
        %v314 = vld [vmem:[%s276 + $0x90] sm:$0xf]
        %v315 = vld [vmem:[%s276 + $0x94] sm:$0xf]
        %v316 = vld [vmem:[%s276 + $0x98] sm:$0xf]
        %v317 = vld [vmem:[%s276 + $0x9c] sm:$0xf]
        %v318 = vld [vmem:[%s276 + $0xa0] sm:$0xf]
        %v319 = vld [vmem:[%s276 + $0xa4] sm:$0xf]
        %v320 = vld [vmem:[%s276 + $0xa8] sm:$0xf]
        %v321 = vld [vmem:[%s276 + $0xac] sm:$0xf]
        %v322 = vld [vmem:[%s276 + $0xb0] sm:$0xf]
        %v323 = vld [vmem:[%s276 + $0xb4] sm:$0xf]
        %v324 = vld [vmem:[%s276 + $0xb8] sm:$0xf]
        %v325 = vld [vmem:[%s276 + $0xbc] sm:$0xf]
        %v326 = vld [vmem:[%s276 + $0xc0] sm:$0xf]
        %v327 = vld [vmem:[%s276 + $0xc4] sm:$0xf]
        %v328 = vld [vmem:[%s276 + $0xc8] sm:$0xf]
        %v329 = vld [vmem:[%s276 + $0xcc] sm:$0xf]
        %v330 = vld [vmem:[%s276 + $0xd0] sm:$0xf]
        %v331 = vld [vmem:[%s276 + $0xd4] sm:$0xf]
        %v332 = vld [vmem:[%s276 + $0xd8] sm:$0xf]
        %v333 = vld [vmem:[%s276 + $0xdc] sm:$0xf]
        %v334 = vld [vmem:[%s276 + $0xe0] sm:$0xf]
        %v335 = vld [vmem:[%s276 + $0xe4] sm:$0xf]
        %v336 = vld [vmem:[%s276 + $0xe8] sm:$0xf]
        %v337 = vld [vmem:[%s276 + $0xec] sm:$0xf]
        %v338 = vld [vmem:[%s276 + $0xf0] sm:$0xf]
        %v339 = vld [vmem:[%s276 + $0xf4] sm:$0xf]
        %v340 = vld [vmem:[%s276 + $0xf8] sm:$0xf]
        %v341 = vld [vmem:[%s276 + $0xfc] sm:$0xf]
        %v342 = vld [vmem:[%s1] sm:$0xf]
        %v343 = vld [vmem:[%s1 + $0x4] sm:$0x1]
        %v344 = vld [vmem:[%s2] sm:$0x1]
        %v346 = vlaneseq
        %v347 = vshrl.u32 %v346, 7
        %v348 = vsub.s32 0, %v347
        %v349 = vrot.slane %v344, %v348
        %v415 = vunpack.c.l.b16 %v278
        %v416 = vunpack.c.l.b16 %v279
        %v417 = vunpack.c.l.b16 %v280
        %v418 = vunpack.c.l.b16 %v281
        %v419 = vunpack.c.l.b16 %v282
        %v420 = vunpack.c.l.b16 %v283
        %v421 = vunpack.c.l.b16 %v284
        %v422 = vunpack.c.l.b16 %v285
        %v423 = vunpack.c.l.b16 %v286
        %v424 = vunpack.c.l.b16 %v287
        %v425 = vunpack.c.l.b16 %v288
        %v426 = vunpack.c.l.b16 %v289
        %v427 = vunpack.c.l.b16 %v290
        %v428 = vunpack.c.l.b16 %v291
        %v429 = vunpack.c.l.b16 %v292
        %v430 = vunpack.c.l.b16 %v293
        %v431 = vunpack.c.l.b16 %v294
        %v432 = vunpack.c.l.b16 %v295
        %v433 = vunpack.c.l.b16 %v296
        %v434 = vunpack.c.l.b16 %v297
        %v435 = vunpack.c.l.b16 %v298
        %v436 = vunpack.c.l.b16 %v299
        %v437 = vunpack.c.l.b16 %v300
        %v438 = vunpack.c.l.b16 %v301
        %v439 = vunpack.c.l.b16 %v302
        %v440 = vunpack.c.l.b16 %v303
        %v441 = vunpack.c.l.b16 %v304
        %v442 = vunpack.c.l.b16 %v305
        %v443 = vunpack.c.l.b16 %v306
        %v444 = vunpack.c.l.b16 %v307
        %v445 = vunpack.c.l.b16 %v308
        %v446 = vunpack.c.l.b16 %v309
        %v447 = vunpack.c.l.b16 %v310
        %v448 = vunpack.c.l.b16 %v311
        %v449 = vunpack.c.l.b16 %v312
        %v450 = vunpack.c.l.b16 %v313
        %v451 = vunpack.c.l.b16 %v314
        %v452 = vunpack.c.l.b16 %v315
        %v453 = vunpack.c.l.b16 %v316
        %v454 = vunpack.c.l.b16 %v317
        %v455 = vunpack.c.l.b16 %v318
        %v456 = vunpack.c.l.b16 %v319
        %v457 = vunpack.c.l.b16 %v320
        %v458 = vunpack.c.l.b16 %v321
        %v459 = vunpack.c.l.b16 %v322
        %v460 = vunpack.c.l.b16 %v323
        %v461 = vunpack.c.l.b16 %v324
        %v462 = vunpack.c.l.b16 %v325
        %v463 = vunpack.c.l.b16 %v326
        %v464 = vunpack.c.l.b16 %v327
        %v465 = vunpack.c.l.b16 %v328
        %v466 = vunpack.c.l.b16 %v329
        %v467 = vunpack.c.l.b16 %v330
        %v468 = vunpack.c.l.b16 %v331
        %v469 = vunpack.c.l.b16 %v332
        %v470 = vunpack.c.l.b16 %v333
        %v471 = vunpack.c.l.b16 %v334
        %v472 = vunpack.c.l.b16 %v335
        %v473 = vunpack.c.l.b16 %v336
        %v474 = vunpack.c.l.b16 %v337
        %v475 = vunpack.c.l.b16 %v338
        %v476 = vunpack.c.l.b16 %v339
        %v477 = vunpack.c.l.b16 %v340
        %v478 = vunpack.c.l.b16 %v341
        %v479 = vpack.c.b16 %v416, %v415
        %v480 = vpack.c.b16 %v418, %v417
        %v481 = vpack.c.b16 %v420, %v419
        %v482 = vpack.c.b16 %v422, %v421
        %v483 = vpack.c.b16 %v424, %v423
        %v484 = vpack.c.b16 %v426, %v425
        %v485 = vpack.c.b16 %v428, %v427
        %v486 = vpack.c.b16 %v430, %v429
        %v487 = vpack.c.b16 %v432, %v431
        %v488 = vpack.c.b16 %v434, %v433
        %v489 = vpack.c.b16 %v436, %v435
        %v490 = vpack.c.b16 %v438, %v437
        %v491 = vpack.c.b16 %v440, %v439
        %v492 = vpack.c.b16 %v442, %v441
        %v493 = vpack.c.b16 %v444, %v443
        %v494 = vpack.c.b16 %v446, %v445
        %v495 = vpack.c.b16 %v448, %v447
        %v496 = vpack.c.b16 %v450, %v449
        %v497 = vpack.c.b16 %v452, %v451
        %v498 = vpack.c.b16 %v454, %v453
        %v499 = vpack.c.b16 %v456, %v455
        %v500 = vpack.c.b16 %v458, %v457
        %v501 = vpack.c.b16 %v460, %v459
        %v502 = vpack.c.b16 %v462, %v461
        %v503 = vpack.c.b16 %v464, %v463
        %v504 = vpack.c.b16 %v466, %v465
        %v505 = vpack.c.b16 %v468, %v467
        %v506 = vpack.c.b16 %v470, %v469
        %v507 = vpack.c.b16 %v472, %v471
        %v508 = vpack.c.b16 %v474, %v473
        %v509 = vpack.c.b16 %v476, %v475
        %v510 = vpack.c.b16 %v478, %v477
        %v513 = vunpack.c.l.b16 %v342
        %v514 = vunpack.c.l.b16 %v343
        %v515 = vpack.c.b16 %v514, %v513
        %vm516 = vcmask 72704
        %v518 = vsel %vm516, %v479, 0
        %v521 = vsel %vm516, %v480, 0
        %v524 = vsel %vm516, %v481, 0
        %v527 = vsel %vm516, %v482, 0
        %v530 = vsel %vm516, %v483, 0
        %v533 = vsel %vm516, %v484, 0
        %v536 = vsel %vm516, %v485, 0
        %v539 = vsel %vm516, %v486, 0
        %v542 = vsel %vm516, %v487, 0
        %v545 = vsel %vm516, %v488, 0
        %v548 = vsel %vm516, %v489, 0
        %v551 = vsel %vm516, %v490, 0
        %v554 = vsel %vm516, %v491, 0
        %v557 = vsel %vm516, %v492, 0
        %v560 = vsel %vm516, %v493, 0
        %v563 = vsel %vm516, %v494, 0
        %v566 = vsel %vm516, %v495, 0
        %v569 = vsel %vm516, %v496, 0
        %v572 = vsel %vm516, %v497, 0
        %v575 = vsel %vm516, %v498, 0
        %v578 = vsel %vm516, %v499, 0
        %v581 = vsel %vm516, %v500, 0
        %v584 = vsel %vm516, %v501, 0
        %v587 = vsel %vm516, %v502, 0
        %v590 = vsel %vm516, %v503, 0
        %v593 = vsel %vm516, %v504, 0
        %v596 = vsel %vm516, %v505, 0
        %v599 = vsel %vm516, %v506, 0
        %v602 = vsel %vm516, %v507, 0
        %v605 = vsel %vm516, %v508, 0
        %v608 = vsel %vm516, %v509, 0
        %v611 = vsel %vm516, %v510, 0
        %vm613 = vcmask 1043456
        %vm614 = vcmask 1044480
        %v615 = vsel %vm613, 4294967295, 65535
        %v616 = vsel %vm614, %v615, 0
        %v618 = vand.u32 %v515, %v616
        %620 = vmatprep.subr.bf16.mxu0 0
        %621 = vmatpush1.bf16.msra.mxu0 %v618
        %622 = vmatprep.subr.bf16.mxu0 0
        %623 = vmatpush1.bf16.msra.mxu0 0
        %624 = vmatprep.subr.bf16.mxu0 0
        %625 = vmatpush1.bf16.msra.mxu0 0
        %626 = vmatprep.subr.bf16.mxu0 0
        %627 = vmatpush1.bf16.msra.mxu0 0
        %628 = vmatprep.subr.bf16.mxu0 0
        %629 = vmatpush1.bf16.msra.mxu0 0
        %630 = vmatprep.subr.bf16.mxu0 0
        %631 = vmatpush1.bf16.msra.mxu0 0
        %632 = vmatprep.subr.bf16.mxu0 0
        %633 = vmatpush1.bf16.msra.mxu0 0
        %634 = vmatprep.subr.bf16.mxu0 0
        %635 = vmatpush1.bf16.msra.mxu0 0
        %636 = vmatprep.subr.bf16.mxu0 0
        %637 = vmatpush1.bf16.msra.mxu0 0
        %638 = vmatprep.subr.bf16.mxu0 0
        %639 = vmatpush1.bf16.msra.mxu0 0
        %640 = vmatprep.subr.bf16.mxu0 0
        %641 = vmatpush1.bf16.msra.mxu0 0
        %642 = vmatprep.subr.bf16.mxu0 0
        %643 = vmatpush1.bf16.msra.mxu0 0
        %644 = vmatprep.subr.bf16.mxu0 0
        %645 = vmatpush1.bf16.msra.mxu0 0
        %646 = vmatprep.subr.bf16.mxu0 0
        %647 = vmatpush1.bf16.msra.mxu0 0
        %648 = vmatprep.subr.bf16.mxu0 0
        %649 = vmatpush1.bf16.msra.mxu0 0
        %650 = vmatprep.subr.bf16.mxu0 0
        %651 = vmatpush1.bf16.msra.mxu0 0
        %652 = vmatprep.mubr.bf16.mxu0 0
        %653 = vmatmul.mubr.bf16.gmra.mrb[0].mxu0 %v518
        %v654 = vpop.f32.mrb[0].mxu0
        %v655 = vadd.f32 %v349, %v654
        %v656 = vpop.f32.mrb[0].mxu0
        %v657 = vpop.f32.mrb[0].mxu0
        %v658 = vadd.f32 %v349, %v657
        %v659 = vpop.f32.mrb[0].mxu0
        %660 = vmatprep.mubr.bf16.mxu0 0
        %661 = vmatmul.mubr.bf16.gmra.mrb[0].mxu0 %v521
        %v662 = vpop.f32.mrb[0].mxu0
        %v663 = vadd.f32 %v349, %v662
        %v664 = vpop.f32.mrb[0].mxu0
        %v665 = vpop.f32.mrb[0].mxu0
        %v666 = vadd.f32 %v349, %v665
        %v667 = vpop.f32.mrb[0].mxu0
        %668 = vmatprep.mubr.bf16.mxu0 0
        %669 = vmatmul.mubr.bf16.gmra.mrb[0].mxu0 %v524
        %v670 = vpop.f32.mrb[0].mxu0
        %v671 = vadd.f32 %v349, %v670
        %v672 = vpop.f32.mrb[0].mxu0
        %v673 = vpop.f32.mrb[0].mxu0
        %v674 = vadd.f32 %v349, %v673
        %v675 = vpop.f32.mrb[0].mxu0
        %676 = vmatprep.mubr.bf16.mxu0 0
        %677 = vmatmul.mubr.bf16.gmra.mrb[0].mxu0 %v527
        %v678 = vpop.f32.mrb[0].mxu0
        %v679 = vadd.f32 %v349, %v678
        %v680 = vpop.f32.mrb[0].mxu0
        %v681 = vpop.f32.mrb[0].mxu0
        %v682 = vadd.f32 %v349, %v681
        %v683 = vpop.f32.mrb[0].mxu0
        %684 = vmatprep.mubr.bf16.mxu0 0
        %685 = vmatmul.mubr.bf16.gmra.mrb[0].mxu0 %v530
        %v686 = vpop.f32.mrb[0].mxu0
        %v687 = vadd.f32 %v349, %v686
        %v688 = vpop.f32.mrb[0].mxu0
        %v689 = vpop.f32.mrb[0].mxu0
        %v690 = vadd.f32 %v349, %v689
        %v691 = vpop.f32.mrb[0].mxu0
        %692 = vmatprep.mubr.bf16.mxu0 0
        %693 = vmatmul.mubr.bf16.gmra.mrb[0].mxu0 %v533
        %v694 = vpop.f32.mrb[0].mxu0
        %v695 = vadd.f32 %v349, %v694
        %v696 = vpop.f32.mrb[0].mxu0
        %v697 = vpop.f32.mrb[0].mxu0
        %v698 = vadd.f32 %v349, %v697
        %v699 = vpop.f32.mrb[0].mxu0
        %700 = vmatprep.mubr.bf16.mxu0 0
        %701 = vmatmul.mubr.bf16.gmra.mrb[0].mxu0 %v536
        %v702 = vpop.f32.mrb[0].mxu0
        %v703 = vadd.f32 %v349, %v702
        %v704 = vpop.f32.mrb[0].mxu0
        %v705 = vpop.f32.mrb[0].mxu0
        %v706 = vadd.f32 %v349, %v705
        %v707 = vpop.f32.mrb[0].mxu0
        %708 = vmatprep.mubr.bf16.mxu0 0
        %709 = vmatmul.mubr.bf16.gmra.mrb[0].mxu0 %v539
        %v710 = vpop.f32.mrb[0].mxu0
        %v711 = vadd.f32 %v349, %v710
        %v712 = vpop.f32.mrb[0].mxu0
        %v713 = vpop.f32.mrb[0].mxu0
        %v714 = vadd.f32 %v349, %v713
        %v715 = vpop.f32.mrb[0].mxu0
        %716 = vmatprep.mubr.bf16.mxu0 0
        %717 = vmatmul.mubr.bf16.gmra.mrb[0].mxu0 %v542
        %v718 = vpop.f32.mrb[0].mxu0
        %v719 = vadd.f32 %v349, %v718
        %v720 = vpop.f32.mrb[0].mxu0
        %v721 = vpop.f32.mrb[0].mxu0
        %v722 = vadd.f32 %v349, %v721
        %v723 = vpop.f32.mrb[0].mxu0
        %724 = vmatprep.mubr.bf16.mxu0 0
        %725 = vmatmul.mubr.bf16.gmra.mrb[0].mxu0 %v545
        %v726 = vpop.f32.mrb[0].mxu0
        %v727 = vadd.f32 %v349, %v726
        %v728 = vpop.f32.mrb[0].mxu0
        %v729 = vpop.f32.mrb[0].mxu0
        %v730 = vadd.f32 %v349, %v729
        %v731 = vpop.f32.mrb[0].mxu0
        %732 = vmatprep.mubr.bf16.mxu0 0
        %733 = vmatmul.mubr.bf16.gmra.mrb[0].mxu0 %v548
        %v734 = vpop.f32.mrb[0].mxu0
        %v735 = vadd.f32 %v349, %v734
        %v736 = vpop.f32.mrb[0].mxu0
        %v737 = vpop.f32.mrb[0].mxu0
        %v738 = vadd.f32 %v349, %v737
        %v739 = vpop.f32.mrb[0].mxu0
        %740 = vmatprep.mubr.bf16.mxu0 0
        %741 = vmatmul.mubr.bf16.gmra.mrb[0].mxu0 %v551
        %v742 = vpop.f32.mrb[0].mxu0
        %v743 = vadd.f32 %v349, %v742
        %v744 = vpop.f32.mrb[0].mxu0
        %v745 = vpop.f32.mrb[0].mxu0
        %v746 = vadd.f32 %v349, %v745
        %v747 = vpop.f32.mrb[0].mxu0
        %748 = vmatprep.mubr.bf16.mxu0 0
        %749 = vmatmul.mubr.bf16.gmra.mrb[0].mxu0 %v554
        %v750 = vpop.f32.mrb[0].mxu0
        %v751 = vadd.f32 %v349, %v750
        %v752 = vpop.f32.mrb[0].mxu0
        %v753 = vpop.f32.mrb[0].mxu0
        %v754 = vadd.f32 %v349, %v753
        %v755 = vpop.f32.mrb[0].mxu0
        %756 = vmatprep.mubr.bf16.mxu0 0
        %757 = vmatmul.mubr.bf16.gmra.mrb[0].mxu0 %v557
        %v758 = vpop.f32.mrb[0].mxu0
        %v759 = vadd.f32 %v349, %v758
        %v760 = vpop.f32.mrb[0].mxu0
        %v761 = vpop.f32.mrb[0].mxu0
        %v762 = vadd.f32 %v349, %v761
        %v763 = vpop.f32.mrb[0].mxu0
        %764 = vmatprep.mubr.bf16.mxu0 0
        %765 = vmatmul.mubr.bf16.gmra.mrb[0].mxu0 %v560
        %v766 = vpop.f32.mrb[0].mxu0
        %v767 = vadd.f32 %v349, %v766
        %v768 = vpop.f32.mrb[0].mxu0
        %v769 = vpop.f32.mrb[0].mxu0
        %v770 = vadd.f32 %v349, %v769
        %v771 = vpop.f32.mrb[0].mxu0
        %772 = vmatprep.mubr.bf16.mxu0 0
        %773 = vmatmul.mubr.bf16.gmra.mrb[0].mxu0 %v563
        %v774 = vpop.f32.mrb[0].mxu0
        %v775 = vadd.f32 %v349, %v774
        %v776 = vpop.f32.mrb[0].mxu0
        %v777 = vpop.f32.mrb[0].mxu0
        %v778 = vadd.f32 %v349, %v777
        %v779 = vpop.f32.mrb[0].mxu0
        %780 = vmatprep.mubr.bf16.mxu0 0
        %781 = vmatmul.mubr.bf16.gmra.mrb[0].mxu0 %v566
        %v782 = vpop.f32.mrb[0].mxu0
        %v783 = vadd.f32 %v349, %v782
        %v784 = vpop.f32.mrb[0].mxu0
        %v785 = vpop.f32.mrb[0].mxu0
        %v786 = vadd.f32 %v349, %v785
        %v787 = vpop.f32.mrb[0].mxu0
        %788 = vmatprep.mubr.bf16.mxu0 0
        %789 = vmatmul.mubr.bf16.gmra.mrb[0].mxu0 %v569
        %v790 = vpop.f32.mrb[0].mxu0
        %v791 = vadd.f32 %v349, %v790
        %v792 = vpop.f32.mrb[0].mxu0
        %v793 = vpop.f32.mrb[0].mxu0
        %v794 = vadd.f32 %v349, %v793
        %v795 = vpop.f32.mrb[0].mxu0
        %796 = vmatprep.mubr.bf16.mxu0 0
        %797 = vmatmul.mubr.bf16.gmra.mrb[0].mxu0 %v572
        %v798 = vpop.f32.mrb[0].mxu0
        %v799 = vadd.f32 %v349, %v798
        %v800 = vpop.f32.mrb[0].mxu0
        %v801 = vpop.f32.mrb[0].mxu0
        %v802 = vadd.f32 %v349, %v801
        %v803 = vpop.f32.mrb[0].mxu0
        %804 = vmatprep.mubr.bf16.mxu0 0
        %805 = vmatmul.mubr.bf16.gmra.mrb[0].mxu0 %v575
        %v806 = vpop.f32.mrb[0].mxu0
        %v807 = vadd.f32 %v349, %v806
        %v808 = vpop.f32.mrb[0].mxu0
        %v809 = vpop.f32.mrb[0].mxu0
        %v810 = vadd.f32 %v349, %v809
        %v811 = vpop.f32.mrb[0].mxu0
        %812 = vmatprep.mubr.bf16.mxu0 0
        %813 = vmatmul.mubr.bf16.gmra.mrb[0].mxu0 %v578
        %v814 = vpop.f32.mrb[0].mxu0
        %v815 = vadd.f32 %v349, %v814
        %v816 = vpop.f32.mrb[0].mxu0
        %v817 = vpop.f32.mrb[0].mxu0
        %v818 = vadd.f32 %v349, %v817
        %v819 = vpop.f32.mrb[0].mxu0
        %820 = vmatprep.mubr.bf16.mxu0 0
        %821 = vmatmul.mubr.bf16.gmra.mrb[0].mxu0 %v581
        %v822 = vpop.f32.mrb[0].mxu0
        %v823 = vadd.f32 %v349, %v822
        %v824 = vpop.f32.mrb[0].mxu0
        %v825 = vpop.f32.mrb[0].mxu0
        %v826 = vadd.f32 %v349, %v825
        %v827 = vpop.f32.mrb[0].mxu0
        %828 = vmatprep.mubr.bf16.mxu0 0
        %829 = vmatmul.mubr.bf16.gmra.mrb[0].mxu0 %v584
        %v830 = vpop.f32.mrb[0].mxu0
        %v831 = vadd.f32 %v349, %v830
        %v832 = vpop.f32.mrb[0].mxu0
        %v833 = vpop.f32.mrb[0].mxu0
        %v834 = vadd.f32 %v349, %v833
        %v835 = vpop.f32.mrb[0].mxu0
        %836 = vmatprep.mubr.bf16.mxu0 0
        %837 = vmatmul.mubr.bf16.gmra.mrb[0].mxu0 %v587
        %v838 = vpop.f32.mrb[0].mxu0
        %v839 = vadd.f32 %v349, %v838
        %v840 = vpop.f32.mrb[0].mxu0
        %v841 = vpop.f32.mrb[0].mxu0
        %v842 = vadd.f32 %v349, %v841
        %v843 = vpop.f32.mrb[0].mxu0
        %844 = vmatprep.mubr.bf16.mxu0 0
        %845 = vmatmul.mubr.bf16.gmra.mrb[0].mxu0 %v590
        %v846 = vpop.f32.mrb[0].mxu0
        %v847 = vadd.f32 %v349, %v846
        %v848 = vpop.f32.mrb[0].mxu0
        %v849 = vpop.f32.mrb[0].mxu0
        %v850 = vadd.f32 %v349, %v849
        %v851 = vpop.f32.mrb[0].mxu0
        %852 = vmatprep.mubr.bf16.mxu0 0
        %853 = vmatmul.mubr.bf16.gmra.mrb[0].mxu0 %v593
        %v854 = vpop.f32.mrb[0].mxu0
        %v855 = vadd.f32 %v349, %v854
        %v856 = vpop.f32.mrb[0].mxu0
        %v857 = vpop.f32.mrb[0].mxu0
        %v858 = vadd.f32 %v349, %v857
        %v859 = vpop.f32.mrb[0].mxu0
        %860 = vmatprep.mubr.bf16.mxu0 0
        %861 = vmatmul.mubr.bf16.gmra.mrb[0].mxu0 %v596
        %v862 = vpop.f32.mrb[0].mxu0
        %v863 = vadd.f32 %v349, %v862
        %v864 = vpop.f32.mrb[0].mxu0
        %v865 = vpop.f32.mrb[0].mxu0
        %v866 = vadd.f32 %v349, %v865
        %v867 = vpop.f32.mrb[0].mxu0
        %868 = vmatprep.mubr.bf16.mxu0 0
        %869 = vmatmul.mubr.bf16.gmra.mrb[0].mxu0 %v599
        %v870 = vpop.f32.mrb[0].mxu0
        %v871 = vadd.f32 %v349, %v870
        %v872 = vpop.f32.mrb[0].mxu0
        %v873 = vpop.f32.mrb[0].mxu0
        %v874 = vadd.f32 %v349, %v873
        %v875 = vpop.f32.mrb[0].mxu0
        %876 = vmatprep.mubr.bf16.mxu0 0
        %877 = vmatmul.mubr.bf16.gmra.mrb[0].mxu0 %v602
        %v878 = vpop.f32.mrb[0].mxu0
        %v879 = vadd.f32 %v349, %v878
        %v880 = vpop.f32.mrb[0].mxu0
        %v881 = vpop.f32.mrb[0].mxu0
        %v882 = vadd.f32 %v349, %v881
        %v883 = vpop.f32.mrb[0].mxu0
        %884 = vmatprep.mubr.bf16.mxu0 0
        %885 = vmatmul.mubr.bf16.gmra.mrb[0].mxu0 %v605
        %v886 = vpop.f32.mrb[0].mxu0
        %v887 = vadd.f32 %v349, %v886
        %v888 = vpop.f32.mrb[0].mxu0
        %v889 = vpop.f32.mrb[0].mxu0
        %v890 = vadd.f32 %v349, %v889
        %v891 = vpop.f32.mrb[0].mxu0
        %892 = vmatprep.mubr.bf16.mxu0 0
        %893 = vmatmul.mubr.bf16.gmra.mrb[0].mxu0 %v608
        %v894 = vpop.f32.mrb[0].mxu0
        %v895 = vadd.f32 %v349, %v894
        %v896 = vpop.f32.mrb[0].mxu0
        %v897 = vpop.f32.mrb[0].mxu0
        %v898 = vadd.f32 %v349, %v897
        %v899 = vpop.f32.mrb[0].mxu0
        %900 = vmatprep.mubr.bf16.mxu0 0
        %901 = vmatmul.mubr.bf16.gmra.mrb[0].mxu0 %v611
        %v902 = vpop.f32.mrb[0].mxu0
        %v903 = vadd.f32 %v349, %v902
        %v904 = vpop.f32.mrb[0].mxu0
        %v905 = vpop.f32.mrb[0].mxu0
        %v906 = vadd.f32 %v349, %v905
        %v907 = vpop.f32.mrb[0].mxu0
        %908 = vdwg.mxu0
        %v909 = vmax.f32 %v655, 0.0
        %v910 = vmax.f32 %v658, 0.0
        %v911 = vmax.f32 %v663, 0.0
        %v912 = vmax.f32 %v666, 0.0
        %v913 = vmax.f32 %v671, 0.0
        %v914 = vmax.f32 %v674, 0.0
        %v915 = vmax.f32 %v679, 0.0
        %v916 = vmax.f32 %v682, 0.0
        %v917 = vmax.f32 %v687, 0.0
        %v918 = vmax.f32 %v690, 0.0
        %v919 = vmax.f32 %v695, 0.0
        %v920 = vmax.f32 %v698, 0.0
        %v921 = vmax.f32 %v703, 0.0
        %v922 = vmax.f32 %v706, 0.0
        %v923 = vmax.f32 %v711, 0.0
        %v924 = vmax.f32 %v714, 0.0
        %v925 = vmax.f32 %v719, 0.0
        %v926 = vmax.f32 %v722, 0.0
        %v927 = vmax.f32 %v727, 0.0
        %v928 = vmax.f32 %v730, 0.0
        %v929 = vmax.f32 %v735, 0.0
        %v930 = vmax.f32 %v738, 0.0
        %v931 = vmax.f32 %v743, 0.0
        %v932 = vmax.f32 %v746, 0.0
        %v933 = vmax.f32 %v751, 0.0
        %v934 = vmax.f32 %v754, 0.0
        %v935 = vmax.f32 %v759, 0.0
        %v936 = vmax.f32 %v762, 0.0
        %v937 = vmax.f32 %v767, 0.0
        %v938 = vmax.f32 %v770, 0.0
        %v939 = vmax.f32 %v775, 0.0
        %v940 = vmax.f32 %v778, 0.0
        %v941 = vmax.f32 %v783, 0.0
        %v942 = vmax.f32 %v786, 0.0
        %v943 = vmax.f32 %v791, 0.0
        %v944 = vmax.f32 %v794, 0.0
        %v945 = vmax.f32 %v799, 0.0
        %v946 = vmax.f32 %v802, 0.0
        %v947 = vmax.f32 %v807, 0.0
        %v948 = vmax.f32 %v810, 0.0
        %v949 = vmax.f32 %v815, 0.0
        %v950 = vmax.f32 %v818, 0.0
        %v951 = vmax.f32 %v823, 0.0
        %v952 = vmax.f32 %v826, 0.0
        %v953 = vmax.f32 %v831, 0.0
        %v954 = vmax.f32 %v834, 0.0
        %v955 = vmax.f32 %v839, 0.0
        %v956 = vmax.f32 %v842, 0.0
        %v957 = vmax.f32 %v847, 0.0
        %v958 = vmax.f32 %v850, 0.0
        %v959 = vmax.f32 %v855, 0.0
        %v960 = vmax.f32 %v858, 0.0
        %v961 = vmax.f32 %v863, 0.0
        %v962 = vmax.f32 %v866, 0.0
        %v963 = vmax.f32 %v871, 0.0
        %v964 = vmax.f32 %v874, 0.0
        %v965 = vmax.f32 %v879, 0.0
        %v966 = vmax.f32 %v882, 0.0
        %v967 = vmax.f32 %v887, 0.0
        %v968 = vmax.f32 %v890, 0.0
        %v969 = vmax.f32 %v895, 0.0
        %v970 = vmax.f32 %v898, 0.0
        %v971 = vmax.f32 %v903, 0.0
        %v972 = vmax.f32 %v906, 0.0
        %v973 = vmax.f32 %v909, %v913
        %v974 = vmax.f32 %v910, %v914
        %v975 = vmax.f32 %v911, %v915
        %v976 = vmax.f32 %v912, %v916
        %v977 = vmax.f32 %v917, %v921
        %v978 = vmax.f32 %v918, %v922
        %v979 = vmax.f32 %v919, %v923
        %v980 = vmax.f32 %v920, %v924
        %v981 = vmax.f32 %v925, %v929
        %v982 = vmax.f32 %v926, %v930
        %v983 = vmax.f32 %v927, %v931
        %v984 = vmax.f32 %v928, %v932
        %v985 = vmax.f32 %v933, %v937
        %v986 = vmax.f32 %v934, %v938
        %v987 = vmax.f32 %v935, %v939
        %v988 = vmax.f32 %v936, %v940
        %v989 = vmax.f32 %v941, %v945
        %v990 = vmax.f32 %v942, %v946
        %v991 = vmax.f32 %v943, %v947
        %v992 = vmax.f32 %v944, %v948
        %v993 = vmax.f32 %v949, %v953
        %v994 = vmax.f32 %v950, %v954
        %v995 = vmax.f32 %v951, %v955
        %v996 = vmax.f32 %v952, %v956
        %v997 = vmax.f32 %v957, %v961
        %v998 = vmax.f32 %v958, %v962
        %v999 = vmax.f32 %v959, %v963
        %v1000 = vmax.f32 %v960, %v964
        %v1001 = vmax.f32 %v965, %v969
        %v1002 = vmax.f32 %v966, %v970
        %v1003 = vmax.f32 %v967, %v971
        %v1004 = vmax.f32 %v968, %v972
        %vm1005 = vcmask 261120
        %1006 = vst.msk [vmem:[#allocation2] sm:$0xff] %vm1005, %v973
        %1007 = vst.msk [vmem:[#allocation2 + $0x8] sm:$0xff] %vm1005, %v974
        %1008 = vst.msk [vmem:[#allocation2 + $0x10] sm:$0xff] %vm1005, %v975
        %1009 = vst.msk [vmem:[#allocation2 + $0x18] sm:$0xff] %vm1005, %v976
        %1010 = vst.msk [vmem:[#allocation2 + $0x20] sm:$0xff] %vm1005, %v977
        %1011 = vst.msk [vmem:[#allocation2 + $0x28] sm:$0xff] %vm1005, %v978
        %1012 = vst.msk [vmem:[#allocation2 + $0x30] sm:$0xff] %vm1005, %v979
        %1013 = vst.msk [vmem:[#allocation2 + $0x38] sm:$0xff] %vm1005, %v980
        %1014 = vst.msk [vmem:[#allocation2 + $0x40] sm:$0xff] %vm1005, %v981
        %1015 = vst.msk [vmem:[#allocation2 + $0x48] sm:$0xff] %vm1005, %v982
        %1016 = vst.msk [vmem:[#allocation2 + $0x50] sm:$0xff] %vm1005, %v983
        %1017 = vst.msk [vmem:[#allocation2 + $0x58] sm:$0xff] %vm1005, %v984
        %1018 = vst.msk [vmem:[#allocation2 + $0x60] sm:$0xff] %vm1005, %v985
        %1019 = vst.msk [vmem:[#allocation2 + $0x68] sm:$0xff] %vm1005, %v986
        %1020 = vst.msk [vmem:[#allocation2 + $0x70] sm:$0xff] %vm1005, %v987
        %1021 = vst.msk [vmem:[#allocation2 + $0x78] sm:$0xff] %vm1005, %v988
        %1022 = vst.msk [vmem:[#allocation2 + $0x80] sm:$0xff] %vm1005, %v989
        %1023 = vst.msk [vmem:[#allocation2 + $0x88] sm:$0xff] %vm1005, %v990
        %1024 = vst.msk [vmem:[#allocation2 + $0x90] sm:$0xff] %vm1005, %v991
        %1025 = vst.msk [vmem:[#allocation2 + $0x98] sm:$0xff] %vm1005, %v992
        %1026 = vst.msk [vmem:[#allocation2 + $0xa0] sm:$0xff] %vm1005, %v993
        %1027 = vst.msk [vmem:[#allocation2 + $0xa8] sm:$0xff] %vm1005, %v994
        %1028 = vst.msk [vmem:[#allocation2 + $0xb0] sm:$0xff] %vm1005, %v995
        %1029 = vst.msk [vmem:[#allocation2 + $0xb8] sm:$0xff] %vm1005, %v996
        %1030 = vst.msk [vmem:[#allocation2 + $0xc0] sm:$0xff] %vm1005, %v997
        %1031 = vst.msk [vmem:[#allocation2 + $0xc8] sm:$0xff] %vm1005, %v998
        %1032 = vst.msk [vmem:[#allocation2 + $0xd0] sm:$0xff] %vm1005, %v999
        %1033 = vst.msk [vmem:[#allocation2 + $0xd8] sm:$0xff] %vm1005, %v1000
        %1034 = vst.msk [vmem:[#allocation2 + $0xe0] sm:$0xff] %vm1005, %v1001
        %1035 = vst.msk [vmem:[#allocation2 + $0xe8] sm:$0xff] %vm1005, %v1002
        %1036 = vst.msk [vmem:[#allocation2 + $0xf0] sm:$0xff] %vm1005, %v1003
        %1037 = vst.msk [vmem:[#allocation2 + $0xf8] sm:$0xff] %vm1005, %v1004
        %v1038 = vld [vmem:[#allocation2] ss:$2 sm:$0xff]
        %s1039 = scalar_lea.vmem [#allocation2], 16
        %v1040 = vld [vmem:[%s1039] ss:$2 sm:$0xff]
        %s1041 = scalar_lea.vmem [#allocation2], 32
        %v1042 = vld [vmem:[%s1041] ss:$2 sm:$0xff]
        %s1043 = scalar_lea.vmem [#allocation2], 48
        %v1044 = vld [vmem:[%s1043] ss:$2 sm:$0xff]
        %s1045 = scalar_lea.vmem [#allocation2], 64
        %v1046 = vld [vmem:[%s1045] ss:$2 sm:$0xff]
        %s1047 = scalar_lea.vmem [#allocation2], 80
        %v1048 = vld [vmem:[%s1047] ss:$2 sm:$0xff]
        %s1049 = scalar_lea.vmem [#allocation2], 96
        %v1050 = vld [vmem:[%s1049] ss:$2 sm:$0xff]
        %s1051 = scalar_lea.vmem [#allocation2], 112
        %v1052 = vld [vmem:[%s1051] ss:$2 sm:$0xff]
        %s1053 = scalar_lea.vmem [#allocation2], 128
        %v1054 = vld [vmem:[%s1053] ss:$2 sm:$0xff]
        %s1055 = scalar_lea.vmem [#allocation2], 144
        %v1056 = vld [vmem:[%s1055] ss:$2 sm:$0xff]
        %s1057 = scalar_lea.vmem [#allocation2], 160
        %v1058 = vld [vmem:[%s1057] ss:$2 sm:$0xff]
        %s1059 = scalar_lea.vmem [#allocation2], 176
        %v1060 = vld [vmem:[%s1059] ss:$2 sm:$0xff]
        %s1061 = scalar_lea.vmem [#allocation2], 192
        %v1062 = vld [vmem:[%s1061] ss:$2 sm:$0xff]
        %s1063 = scalar_lea.vmem [#allocation2], 208
        %v1064 = vld [vmem:[%s1063] ss:$2 sm:$0xff]
        %s1065 = scalar_lea.vmem [#allocation2], 224
        %v1066 = vld [vmem:[%s1065] ss:$2 sm:$0xff]
        %s1067 = scalar_lea.vmem [#allocation2], 240
        %v1068 = vld [vmem:[%s1067] ss:$2 sm:$0xff]
        %s1069 = scalar_lea.vmem [#allocation2], 1
        %v1070 = vld [vmem:[%s1069] ss:$2 sm:$0xff]
        %s1071 = scalar_lea.vmem [#allocation2], 17
        %v1072 = vld [vmem:[%s1071] ss:$2 sm:$0xff]
        %s1073 = scalar_lea.vmem [#allocation2], 33
        %v1074 = vld [vmem:[%s1073] ss:$2 sm:$0xff]
        %s1075 = scalar_lea.vmem [#allocation2], 49
        %v1076 = vld [vmem:[%s1075] ss:$2 sm:$0xff]
        %s1077 = scalar_lea.vmem [#allocation2], 65
        %v1078 = vld [vmem:[%s1077] ss:$2 sm:$0xff]
        %s1079 = scalar_lea.vmem [#allocation2], 81
        %v1080 = vld [vmem:[%s1079] ss:$2 sm:$0xff]
        %s1081 = scalar_lea.vmem [#allocation2], 97
        %v1082 = vld [vmem:[%s1081] ss:$2 sm:$0xff]
        %s1083 = scalar_lea.vmem [#allocation2], 113
        %v1084 = vld [vmem:[%s1083] ss:$2 sm:$0xff]
        %s1085 = scalar_lea.vmem [#allocation2], 129
        %v1086 = vld [vmem:[%s1085] ss:$2 sm:$0xff]
        %s1087 = scalar_lea.vmem [#allocation2], 145
        %v1088 = vld [vmem:[%s1087] ss:$2 sm:$0xff]
        %s1089 = scalar_lea.vmem [#allocation2], 161
        %v1090 = vld [vmem:[%s1089] ss:$2 sm:$0xff]
        %s1091 = scalar_lea.vmem [#allocation2], 177
        %v1092 = vld [vmem:[%s1091] ss:$2 sm:$0xff]
        %s1093 = scalar_lea.vmem [#allocation2], 193
        %v1094 = vld [vmem:[%s1093] ss:$2 sm:$0xff]
        %s1095 = scalar_lea.vmem [#allocation2], 209
        %v1096 = vld [vmem:[%s1095] ss:$2 sm:$0xff]
        %s1097 = scalar_lea.vmem [#allocation2], 225
        %v1098 = vld [vmem:[%s1097] ss:$2 sm:$0xff]
        %s1099 = scalar_lea.vmem [#allocation2], 241
        %v1100 = vld [vmem:[%s1099] ss:$2 sm:$0xff]
        %v1101 = vmax.f32 %v1038, %v1070
        %v1102 = vmax.f32 %v1040, %v1072
        %v1103 = vmax.f32 %v1042, %v1074
        %v1104 = vmax.f32 %v1044, %v1076
        %v1105 = vmax.f32 %v1046, %v1078
        %v1106 = vmax.f32 %v1048, %v1080
        %v1107 = vmax.f32 %v1050, %v1082
        %v1108 = vmax.f32 %v1052, %v1084
        %v1109 = vmax.f32 %v1054, %v1086
        %v1110 = vmax.f32 %v1056, %v1088
        %v1111 = vmax.f32 %v1058, %v1090
        %v1112 = vmax.f32 %v1060, %v1092
        %v1113 = vmax.f32 %v1062, %v1094
        %v1114 = vmax.f32 %v1064, %v1096
        %v1115 = vmax.f32 %v1066, %v1098
        %v1116 = vmax.f32 %v1068, %v1100
        %v1117 = vlaneseq
        %v1118 = vshrl.u32 %v1117, 7
        %v1119 = vadd.s32 %v1118, 8
        %v1120 = vadd.s32 %v1118, 16
        %v1121 = vadd.s32 %v1118, 24
        %v1122 = vadd.s32 %v1118, 32
        %v1123 = vadd.s32 %v1118, 40
        %v1124 = vadd.s32 %v1118, 48
        %v1125 = vadd.s32 %v1118, 56
        %v1126 = vadd.s32 %v1118, 64
        %v1127 = vadd.s32 %v1118, 72
        %v1128 = vadd.s32 %v1118, 80
        %v1129 = vadd.s32 %v1118, 88
        %v1130 = vadd.s32 %v1118, 96
        %v1131 = vadd.s32 %v1118, 104
        %v1132 = vadd.s32 %v1118, 112
        %v1133 = vadd.s32 %v1118, 120
        %vm1134 = vcmp.lt.s32.totalorder %v1118, 0
        %v1135 = vsub.s32 0, %v1118
        %v1136 = vsel %vm1134, %v1135, %v1118
        %v1137 = vshrl.u32 %v1136, 4
        %v1138 = vand.u32 %v1136, 15
        %v1139 = vsub.s32 0, %v1138
        %v1140 = vsel %vm1134, %v1139, %v1138
        %vm1141 = vcmp.lt.s32.totalorder %v1119, 0
        %v1142 = vsub.s32 0, %v1119
        %v1143 = vsel %vm1141, %v1142, %v1119
        %v1144 = vshrl.u32 %v1143, 4
        %v1145 = vand.u32 %v1143, 15
        %v1146 = vsub.s32 0, %v1145
        %v1147 = vsel %vm1141, %v1146, %v1145
        %vm1148 = vcmp.lt.s32.totalorder %v1120, 0
        %v1149 = vsub.s32 0, %v1120
        %v1150 = vsel %vm1148, %v1149, %v1120
        %v1151 = vshrl.u32 %v1150, 4
        %v1152 = vand.u32 %v1150, 15
        %v1153 = vsub.s32 0, %v1152
        %v1154 = vsel %vm1148, %v1153, %v1152
        %vm1155 = vcmp.lt.s32.totalorder %v1121, 0
        %v1156 = vsub.s32 0, %v1121
        %v1157 = vsel %vm1155, %v1156, %v1121
        %v1158 = vshrl.u32 %v1157, 4
        %v1159 = vand.u32 %v1157, 15
        %v1160 = vsub.s32 0, %v1159
        %v1161 = vsel %vm1155, %v1160, %v1159
        %vm1162 = vcmp.lt.s32.totalorder %v1122, 0
        %v1163 = vsub.s32 0, %v1122
        %v1164 = vsel %vm1162, %v1163, %v1122
        %v1165 = vshrl.u32 %v1164, 4
        %v1166 = vand.u32 %v1164, 15
        %v1167 = vsub.s32 0, %v1166
        %v1168 = vsel %vm1162, %v1167, %v1166
        %vm1169 = vcmp.lt.s32.totalorder %v1123, 0
        %v1170 = vsub.s32 0, %v1123
        %v1171 = vsel %vm1169, %v1170, %v1123
        %v1172 = vshrl.u32 %v1171, 4
        %v1173 = vand.u32 %v1171, 15
        %v1174 = vsub.s32 0, %v1173
        %v1175 = vsel %vm1169, %v1174, %v1173
        %vm1176 = vcmp.lt.s32.totalorder %v1124, 0
        %v1177 = vsub.s32 0, %v1124
        %v1178 = vsel %vm1176, %v1177, %v1124
        %v1179 = vshrl.u32 %v1178, 4
        %v1180 = vand.u32 %v1178, 15
        %v1181 = vsub.s32 0, %v1180
        %v1182 = vsel %vm1176, %v1181, %v1180
        %vm1183 = vcmp.lt.s32.totalorder %v1125, 0
        %v1184 = vsub.s32 0, %v1125
        %v1185 = vsel %vm1183, %v1184, %v1125
        %v1186 = vshrl.u32 %v1185, 4
        %v1187 = vand.u32 %v1185, 15
        %v1188 = vsub.s32 0, %v1187
        %v1189 = vsel %vm1183, %v1188, %v1187
        %vm1190 = vcmp.lt.s32.totalorder %v1126, 0
        %v1191 = vsub.s32 0, %v1126
        %v1192 = vsel %vm1190, %v1191, %v1126
        %v1193 = vshrl.u32 %v1192, 4
        %v1194 = vand.u32 %v1192, 15
        %v1195 = vsub.s32 0, %v1194
        %v1196 = vsel %vm1190, %v1195, %v1194
        %vm1197 = vcmp.lt.s32.totalorder %v1127, 0
        %v1198 = vsub.s32 0, %v1127
        %v1199 = vsel %vm1197, %v1198, %v1127
        %v1200 = vshrl.u32 %v1199, 4
        %v1201 = vand.u32 %v1199, 15
        %v1202 = vsub.s32 0, %v1201
        %v1203 = vsel %vm1197, %v1202, %v1201
        %vm1204 = vcmp.lt.s32.totalorder %v1128, 0
        %v1205 = vsub.s32 0, %v1128
        %v1206 = vsel %vm1204, %v1205, %v1128
        %v1207 = vshrl.u32 %v1206, 4
        %v1208 = vand.u32 %v1206, 15
        %v1209 = vsub.s32 0, %v1208
        %v1210 = vsel %vm1204, %v1209, %v1208
        %vm1211 = vcmp.lt.s32.totalorder %v1129, 0
        %v1212 = vsub.s32 0, %v1129
        %v1213 = vsel %vm1211, %v1212, %v1129
        %v1214 = vshrl.u32 %v1213, 4
        %v1215 = vand.u32 %v1213, 15
        %v1216 = vsub.s32 0, %v1215
        %v1217 = vsel %vm1211, %v1216, %v1215
        %vm1218 = vcmp.lt.s32.totalorder %v1130, 0
        %v1219 = vsub.s32 0, %v1130
        %v1220 = vsel %vm1218, %v1219, %v1130
        %v1221 = vshrl.u32 %v1220, 4
        %v1222 = vand.u32 %v1220, 15
        %v1223 = vsub.s32 0, %v1222
        %v1224 = vsel %vm1218, %v1223, %v1222
        %vm1225 = vcmp.lt.s32.totalorder %v1131, 0
        %v1226 = vsub.s32 0, %v1131
        %v1227 = vsel %vm1225, %v1226, %v1131
        %v1228 = vshrl.u32 %v1227, 4
        %v1229 = vand.u32 %v1227, 15
        %v1230 = vsub.s32 0, %v1229
        %v1231 = vsel %vm1225, %v1230, %v1229
        %vm1232 = vcmp.lt.s32.totalorder %v1132, 0
        %v1233 = vsub.s32 0, %v1132
        %v1234 = vsel %vm1232, %v1233, %v1132
        %v1235 = vshrl.u32 %v1234, 4
        %v1236 = vand.u32 %v1234, 15
        %v1237 = vsub.s32 0, %v1236
        %v1238 = vsel %vm1232, %v1237, %v1236
        %vm1239 = vcmp.lt.s32.totalorder %v1133, 0
        %v1240 = vsub.s32 0, %v1133
        %v1241 = vsel %vm1239, %v1240, %v1133
        %v1242 = vshrl.u32 %v1241, 4
        %v1243 = vand.u32 %v1241, 15
        %v1244 = vsub.s32 0, %v1243
        %v1245 = vsel %vm1239, %v1244, %v1243
        %vm1246 = vcmp.ne.s32.totalorder %v1140, 0
        %vm1247 = vcmp.ne.s32.totalorder %v1147, 0
        %vm1248 = vcmp.ne.s32.totalorder %v1154, 0
        %vm1249 = vcmp.ne.s32.totalorder %v1161, 0
        %vm1250 = vcmp.ne.s32.totalorder %v1168, 0
        %vm1251 = vcmp.ne.s32.totalorder %v1175, 0
        %vm1252 = vcmp.ne.s32.totalorder %v1182, 0
        %vm1253 = vcmp.ne.s32.totalorder %v1189, 0
        %vm1254 = vcmp.ne.s32.totalorder %v1196, 0
        %vm1255 = vcmp.ne.s32.totalorder %v1203, 0
        %vm1256 = vcmp.ne.s32.totalorder %v1210, 0
        %vm1257 = vcmp.ne.s32.totalorder %v1217, 0
        %vm1258 = vcmp.ne.s32.totalorder %v1224, 0
        %vm1259 = vcmp.ne.s32.totalorder %v1231, 0
        %vm1260 = vcmp.ne.s32.totalorder %v1238, 0
        %vm1261 = vcmp.ne.s32.totalorder %v1245, 0
        %vm1262 = vcmp.lt.s32.totalorder %v1140, 0
        %vm1263 = vcmp.lt.s32.totalorder %v1147, 0
        %vm1264 = vcmp.lt.s32.totalorder %v1154, 0
        %vm1265 = vcmp.lt.s32.totalorder %v1161, 0
        %vm1266 = vcmp.lt.s32.totalorder %v1168, 0
        %vm1267 = vcmp.lt.s32.totalorder %v1175, 0
        %vm1268 = vcmp.lt.s32.totalorder %v1182, 0
        %vm1269 = vcmp.lt.s32.totalorder %v1189, 0
        %vm1270 = vcmp.lt.s32.totalorder %v1196, 0
        %vm1271 = vcmp.lt.s32.totalorder %v1203, 0
        %vm1272 = vcmp.lt.s32.totalorder %v1210, 0
        %vm1273 = vcmp.lt.s32.totalorder %v1217, 0
        %vm1274 = vcmp.lt.s32.totalorder %v1224, 0
        %vm1275 = vcmp.lt.s32.totalorder %v1231, 0
        %vm1276 = vcmp.lt.s32.totalorder %v1238, 0
        %vm1277 = vcmp.lt.s32.totalorder %v1245, 0
        %vm1278 = vmand %vm1262, %vm1246
        %vm1279 = vmand %vm1263, %vm1247
        %vm1280 = vmand %vm1264, %vm1248
        %vm1281 = vmand %vm1265, %vm1249
        %vm1282 = vmand %vm1266, %vm1250
        %vm1283 = vmand %vm1267, %vm1251
        %vm1284 = vmand %vm1268, %vm1252
        %vm1285 = vmand %vm1269, %vm1253
        %vm1286 = vmand %vm1270, %vm1254
        %vm1287 = vmand %vm1271, %vm1255
        %vm1288 = vmand %vm1272, %vm1256
        %vm1289 = vmand %vm1273, %vm1257
        %vm1290 = vmand %vm1274, %vm1258
        %vm1291 = vmand %vm1275, %vm1259
        %vm1292 = vmand %vm1276, %vm1260
        %vm1293 = vmand %vm1277, %vm1261
        %v1294 = vadd.s32 %v1140, 16
        %v1295 = vadd.s32 %v1147, 16
        %v1296 = vadd.s32 %v1154, 16
        %v1297 = vadd.s32 %v1161, 16
        %v1298 = vadd.s32 %v1168, 16
        %v1299 = vadd.s32 %v1175, 16
        %v1300 = vadd.s32 %v1182, 16
        %v1301 = vadd.s32 %v1189, 16
        %v1302 = vadd.s32 %v1196, 16
        %v1303 = vadd.s32 %v1203, 16
        %v1304 = vadd.s32 %v1210, 16
        %v1305 = vadd.s32 %v1217, 16
        %v1306 = vadd.s32 %v1224, 16
        %v1307 = vadd.s32 %v1231, 16
        %v1308 = vadd.s32 %v1238, 16
        %v1309 = vadd.s32 %v1245, 16
        %v1310 = vsel %vm1278, %v1294, %v1140
        %v1311 = vsel %vm1279, %v1295, %v1147
        %v1312 = vsel %vm1280, %v1296, %v1154
        %v1313 = vsel %vm1281, %v1297, %v1161
        %v1314 = vsel %vm1282, %v1298, %v1168
        %v1315 = vsel %vm1283, %v1299, %v1175
        %v1316 = vsel %vm1284, %v1300, %v1182
        %v1317 = vsel %vm1285, %v1301, %v1189
        %v1318 = vsel %vm1286, %v1302, %v1196
        %v1319 = vsel %vm1287, %v1303, %v1203
        %v1320 = vsel %vm1288, %v1304, %v1210
        %v1321 = vsel %vm1289, %v1305, %v1217
        %v1322 = vsel %vm1290, %v1306, %v1224
        %v1323 = vsel %vm1291, %v1307, %v1231
        %v1324 = vsel %vm1292, %v1308, %v1238
        %v1325 = vsel %vm1293, %v1309, %v1245
        %vm1326 = vcmp.lt.s32.totalorder %v1310, 8
        %vm1327 = vcmp.lt.s32.totalorder %v1311, 8
        %vm1328 = vcmp.lt.s32.totalorder %v1312, 8
        %vm1329 = vcmp.lt.s32.totalorder %v1313, 8
        %vm1330 = vcmp.lt.s32.totalorder %v1314, 8
        %vm1331 = vcmp.lt.s32.totalorder %v1315, 8
        %vm1332 = vcmp.lt.s32.totalorder %v1316, 8
        %vm1333 = vcmp.lt.s32.totalorder %v1317, 8
        %vm1334 = vcmp.lt.s32.totalorder %v1318, 8
        %vm1335 = vcmp.lt.s32.totalorder %v1319, 8
        %vm1336 = vcmp.lt.s32.totalorder %v1320, 8
        %vm1337 = vcmp.lt.s32.totalorder %v1321, 8
        %vm1338 = vcmp.lt.s32.totalorder %v1322, 8
        %vm1339 = vcmp.lt.s32.totalorder %v1323, 8
        %vm1340 = vcmp.lt.s32.totalorder %v1324, 8
        %vm1341 = vcmp.lt.s32.totalorder %v1325, 8
        %v1342 = vsel %vm1326, %v1101, 0.0
        %v1343 = vsel %vm1327, %v1102, 0.0
        %v1344 = vsel %vm1328, %v1103, 0.0
        %v1345 = vsel %vm1329, %v1104, 0.0
        %v1346 = vsel %vm1330, %v1105, 0.0
        %v1347 = vsel %vm1331, %v1106, 0.0
        %v1348 = vsel %vm1332, %v1107, 0.0
        %v1349 = vsel %vm1333, %v1108, 0.0
        %v1350 = vsel %vm1334, %v1109, 0.0
        %v1351 = vsel %vm1335, %v1110, 0.0
        %v1352 = vsel %vm1336, %v1111, 0.0
        %v1353 = vsel %vm1337, %v1112, 0.0
        %v1354 = vsel %vm1338, %v1113, 0.0
        %v1355 = vsel %vm1339, %v1114, 0.0
        %v1356 = vsel %vm1340, %v1115, 0.0
        %v1357 = vsel %vm1341, %v1116, 0.0
        %v1358 = vpack.c.bf16 %v1343, %v1342
        %v1359 = vpack.c.bf16 %v1345, %v1344
        %v1360 = vpack.c.bf16 %v1347, %v1346
        %v1361 = vpack.c.bf16 %v1349, %v1348
        %v1362 = vpack.c.bf16 %v1351, %v1350
        %v1363 = vpack.c.bf16 %v1353, %v1352
        %v1364 = vpack.c.bf16 %v1355, %v1354
        %v1365 = vpack.c.bf16 %v1357, %v1356
        %v1366 = vld [vmem:[%s3] sm:$0xf]
        %v1367 = vld [vmem:[%s3 + $0x4] sm:$0xf]
        %v1368 = vld [vmem:[%s3 + $0x8] sm:$0xf]
        %v1369 = vld [vmem:[%s3 + $0xc] sm:$0xf]
        %v1370 = vld [vmem:[%s3 + $0x30] sm:$0xf]
        %v1371 = vld [vmem:[%s3 + $0x34] sm:$0xf]
        %v1372 = vld [vmem:[%s3 + $0x38] sm:$0xf]
        %v1373 = vld [vmem:[%s3 + $0x3c] sm:$0xf]
        %vm1374 = vsmask.f32 256
        %v1376 = vshrl.u32 0, 16
        %v1378 = vrot.slane %v1376, 7
        %v1380 = vshrl.u32 %v1358, 16
        %v1382 = vrot.slane %v1380, 7
        %v1383 = vshll.u32 %v1358, 16
        %v1385 = vor.u32 %v1382, %v1383
        %v1386 = vsel %vm1374, %v1378, %v1385
        %v1388 = vshrl.u32 %v1359, 16
        %v1390 = vrot.slane %v1388, 7
        %v1391 = vshll.u32 %v1359, 16
        %v1393 = vor.u32 %v1390, %v1391
        %v1394 = vsel %vm1374, %v1382, %v1393
        %v1396 = vshrl.u32 %v1360, 16
        %v1398 = vrot.slane %v1396, 7
        %v1399 = vshll.u32 %v1360, 16
        %v1401 = vor.u32 %v1398, %v1399
        %v1402 = vsel %vm1374, %v1390, %v1401
        %v1404 = vshrl.u32 %v1361, 16
        %v1406 = vrot.slane %v1404, 7
        %v1407 = vshll.u32 %v1361, 16
        %v1409 = vor.u32 %v1406, %v1407
        %v1410 = vsel %vm1374, %v1398, %v1409
        %v1412 = vshrl.u32 %v1362, 16
        %v1414 = vrot.slane %v1412, 7
        %v1415 = vshll.u32 %v1362, 16
        %v1417 = vor.u32 %v1414, %v1415
        %v1418 = vsel %vm1374, %v1406, %v1417
        %v1420 = vshrl.u32 %v1363, 16
        %v1422 = vrot.slane %v1420, 7
        %v1423 = vshll.u32 %v1363, 16
        %v1425 = vor.u32 %v1422, %v1423
        %v1426 = vsel %vm1374, %v1414, %v1425
        %v1428 = vshrl.u32 %v1364, 16
        %v1430 = vrot.slane %v1428, 7
        %v1431 = vshll.u32 %v1364, 16
        %v1433 = vor.u32 %v1430, %v1431
        %v1434 = vsel %vm1374, %v1422, %v1433
        %v1436 = vshrl.u32 %v1365, 16
        %v1438 = vrot.slane %v1436, 7
        %v1439 = vshll.u32 %v1365, 16
        %v1441 = vor.u32 %v1438, %v1439
        %v1442 = vsel %vm1374, %v1430, %v1441
        %v1447 = vunpack.c.l.b16 %v1370
        %v1448 = vunpack.c.l.b16 %v1371
        %v1449 = vunpack.c.l.b16 %v1372
        %v1450 = vunpack.c.l.b16 %v1373
        %v1451 = vpack.c.b16 %v1448, %v1447
        %v1452 = vpack.c.b16 %v1450, %v1449
        %v1456 = vsel %vm1005, %v1386, 0
        %v1459 = vsel %vm1005, %v1394, 0
        %v1462 = vsel %vm1005, %v1402, 0
        %v1465 = vsel %vm1005, %v1410, 0
        %v1468 = vsel %vm1005, %v1418, 0
        %v1471 = vsel %vm1005, %v1426, 0
        %v1474 = vsel %vm1005, %v1434, 0
        %v1477 = vsel %vm1005, %v1442, 0
        %1479 = vmatprep.subr.bf16.mxu0 0
        %1480 = vmatpush1.bf16.msra.mxu0 %v1451
        %1481 = vmatprep.subr.bf16.mxu0 0
        %1482 = vmatpush1.bf16.msra.mxu0 %v1452
        %1483 = vmatprep.subr.bf16.mxu0 0
        %1484 = vmatpush1.bf16.msra.mxu0 0
        %1485 = vmatprep.subr.bf16.mxu0 0
        %1486 = vmatpush1.bf16.msra.mxu0 0
        %1487 = vmatprep.subr.bf16.mxu0 0
        %1488 = vmatpush1.bf16.msra.mxu0 0
        %1489 = vmatprep.subr.bf16.mxu0 0
        %1490 = vmatpush1.bf16.msra.mxu0 0
        %1491 = vmatprep.subr.bf16.mxu0 0
        %1492 = vmatpush1.bf16.msra.mxu0 0
        %1493 = vmatprep.subr.bf16.mxu0 0
        %1494 = vmatpush1.bf16.msra.mxu0 0
        %1495 = vmatprep.subr.bf16.mxu0 0
        %1496 = vmatpush1.bf16.msra.mxu0 0
        %1497 = vmatprep.subr.bf16.mxu0 0
        %1498 = vmatpush1.bf16.msra.mxu0 0
        %1499 = vmatprep.subr.bf16.mxu0 0
        %1500 = vmatpush1.bf16.msra.mxu0 0
        %1501 = vmatprep.subr.bf16.mxu0 0
        %1502 = vmatpush1.bf16.msra.mxu0 0
        %1503 = vmatprep.subr.bf16.mxu0 0
        %1504 = vmatpush1.bf16.msra.mxu0 0
        %1505 = vmatprep.subr.bf16.mxu0 0
        %1506 = vmatpush1.bf16.msra.mxu0 0
        %1507 = vmatprep.subr.bf16.mxu0 0
        %1508 = vmatpush1.bf16.msra.mxu0 0
        %1509 = vmatprep.subr.bf16.mxu0 0
        %1510 = vmatpush1.bf16.msra.mxu0 0
        %1511 = vmatprep.mubr.bf16.mxu0 0
        %1512 = vmatmul.mubr.bf16.gmra.mrb[0].mxu0 %v1456
        %v1513 = vpop.f32.mrb[0].mxu0
        %v1514 = vadd.f32 0.0, %v1513
        %v1515 = vpop.f32.mrb[0].mxu0
        %v1516 = vpop.f32.mrb[0].mxu0
        %v1517 = vadd.f32 0.0, %v1516
        %v1518 = vpop.f32.mrb[0].mxu0
        %1519 = vmatprep.mubr.bf16.mxu0 0
        %1520 = vmatmul.mubr.bf16.gmra.mrb[0].mxu0 %v1459
        %v1521 = vpop.f32.mrb[0].mxu0
        %v1522 = vadd.f32 0.0, %v1521
        %v1523 = vpop.f32.mrb[0].mxu0
        %v1524 = vpop.f32.mrb[0].mxu0
        %v1525 = vadd.f32 0.0, %v1524
        %v1526 = vpop.f32.mrb[0].mxu0
        %1527 = vmatprep.mubr.bf16.mxu0 0
        %1528 = vmatmul.mubr.bf16.gmra.mrb[0].mxu0 %v1462
        %v1529 = vpop.f32.mrb[0].mxu0
        %v1530 = vadd.f32 0.0, %v1529
        %v1531 = vpop.f32.mrb[0].mxu0
        %v1532 = vpop.f32.mrb[0].mxu0
        %v1533 = vadd.f32 0.0, %v1532
        %v1534 = vpop.f32.mrb[0].mxu0
        %1535 = vmatprep.mubr.bf16.mxu0 0
        %1536 = vmatmul.mubr.bf16.gmra.mrb[0].mxu0 %v1465
        %v1537 = vpop.f32.mrb[0].mxu0
        %v1538 = vadd.f32 0.0, %v1537
        %v1539 = vpop.f32.mrb[0].mxu0
        %v1540 = vpop.f32.mrb[0].mxu0
        %v1541 = vadd.f32 0.0, %v1540
        %v1542 = vpop.f32.mrb[0].mxu0
        %1543 = vmatprep.mubr.bf16.mxu0 0
        %1544 = vmatmul.mubr.bf16.gmra.mrb[0].mxu0 %v1468
        %v1545 = vpop.f32.mrb[0].mxu0
        %v1546 = vadd.f32 0.0, %v1545
        %v1547 = vpop.f32.mrb[0].mxu0
        %v1548 = vpop.f32.mrb[0].mxu0
        %v1549 = vadd.f32 0.0, %v1548
        %v1550 = vpop.f32.mrb[0].mxu0
        %1551 = vmatprep.mubr.bf16.mxu0 0
        %1552 = vmatmul.mubr.bf16.gmra.mrb[0].mxu0 %v1471
        %v1553 = vpop.f32.mrb[0].mxu0
        %v1554 = vadd.f32 0.0, %v1553
        %v1555 = vpop.f32.mrb[0].mxu0
        %v1556 = vpop.f32.mrb[0].mxu0
        %v1557 = vadd.f32 0.0, %v1556
        %v1558 = vpop.f32.mrb[0].mxu0
        %1559 = vmatprep.mubr.bf16.mxu0 0
        %1560 = vmatmul.mubr.bf16.gmra.mrb[0].mxu0 %v1474
        %v1561 = vpop.f32.mrb[0].mxu0
        %v1562 = vadd.f32 0.0, %v1561
        %v1563 = vpop.f32.mrb[0].mxu0
        %v1564 = vpop.f32.mrb[0].mxu0
        %v1565 = vadd.f32 0.0, %v1564
        %v1566 = vpop.f32.mrb[0].mxu0
        %1567 = vmatprep.mubr.bf16.mxu0 0
        %1568 = vmatmul.mubr.bf16.gmra.mrb[0].mxu0 %v1477
        %v1569 = vpop.f32.mrb[0].mxu0
        %v1570 = vadd.f32 0.0, %v1569
        %v1571 = vpop.f32.mrb[0].mxu0
        %v1572 = vpop.f32.mrb[0].mxu0
        %v1573 = vadd.f32 0.0, %v1572
        %v1574 = vpop.f32.mrb[0].mxu0
        %1575 = vdwg.mxu0
        %v1576 = vshll.u32 0, 16
        %v1578 = vor.u32 %v1378, %v1576
        %v1579 = vsel %vm1374, %v1378, %v1578
        %v1584 = vunpack.c.l.b16 %v1366
        %v1585 = vunpack.c.l.b16 %v1367
        %v1586 = vunpack.c.l.b16 %v1368
        %v1587 = vunpack.c.l.b16 %v1369
        %v1588 = vpack.c.b16 %v1585, %v1584
        %v1589 = vpack.c.b16 %v1587, %v1586
        %v1593 = vsel %vm1005, %v1579, 0
        %1595 = vmatprep.subr.bf16.mxu0 0
        %1596 = vmatpush1.bf16.msra.mxu0 %v1588
        %1597 = vmatprep.subr.bf16.mxu0 0
        %1598 = vmatpush1.bf16.msra.mxu0 %v1589
        %1599 = vmatprep.subr.bf16.mxu0 0
        %1600 = vmatpush1.bf16.msra.mxu0 0
        %1601 = vmatprep.subr.bf16.mxu0 0
        %1602 = vmatpush1.bf16.msra.mxu0 0
        %1603 = vmatprep.subr.bf16.mxu0 0
        %1604 = vmatpush1.bf16.msra.mxu0 0
        %1605 = vmatprep.subr.bf16.mxu0 0
        %1606 = vmatpush1.bf16.msra.mxu0 0
        %1607 = vmatprep.subr.bf16.mxu0 0
        %1608 = vmatpush1.bf16.msra.mxu0 0
        %1609 = vmatprep.subr.bf16.mxu0 0
        %1610 = vmatpush1.bf16.msra.mxu0 0
        %1611 = vmatprep.subr.bf16.mxu0 0
        %1612 = vmatpush1.bf16.msra.mxu0 0
        %1613 = vmatprep.subr.bf16.mxu0 0
        %1614 = vmatpush1.bf16.msra.mxu0 0
        %1615 = vmatprep.subr.bf16.mxu0 0
        %1616 = vmatpush1.bf16.msra.mxu0 0
        %1617 = vmatprep.subr.bf16.mxu0 0
        %1618 = vmatpush1.bf16.msra.mxu0 0
        %1619 = vmatprep.subr.bf16.mxu0 0
        %1620 = vmatpush1.bf16.msra.mxu0 0
        %1621 = vmatprep.subr.bf16.mxu0 0
        %1622 = vmatpush1.bf16.msra.mxu0 0
        %1623 = vmatprep.subr.bf16.mxu0 0
        %1624 = vmatpush1.bf16.msra.mxu0 0
        %1625 = vmatprep.subr.bf16.mxu0 0
        %1626 = vmatpush1.bf16.msra.mxu0 0
        %1627 = vmatprep.mubr.bf16.mxu0 0
        %1628 = vmatmul.mubr.bf16.gmra.mrb[0].mxu0 %v1593
        %v1629 = vpop.f32.mrb[0].mxu0
        %v1630 = vadd.f32 %v1514, %v1629
        %v1631 = vpop.f32.mrb[0].mxu0
        %v1632 = vpop.f32.mrb[0].mxu0
        %v1633 = vadd.f32 %v1517, %v1632
        %v1634 = vpop.f32.mrb[0].mxu0
        %1635 = vmatprep.mubr.bf16.mxu0 0
        %1636 = vmatmul.mubr.bf16.gmra.mrb[0].mxu0 %v1456
        %v1637 = vpop.f32.mrb[0].mxu0
        %v1638 = vadd.f32 %v1522, %v1637
        %v1639 = vpop.f32.mrb[0].mxu0
        %v1640 = vpop.f32.mrb[0].mxu0
        %v1641 = vadd.f32 %v1525, %v1640
        %v1642 = vpop.f32.mrb[0].mxu0
        %1643 = vmatprep.mubr.bf16.mxu0 0
        %1644 = vmatmul.mubr.bf16.gmra.mrb[0].mxu0 %v1459
        %v1645 = vpop.f32.mrb[0].mxu0
        %v1646 = vadd.f32 %v1530, %v1645
        %v1647 = vpop.f32.mrb[0].mxu0
        %v1648 = vpop.f32.mrb[0].mxu0
        %v1649 = vadd.f32 %v1533, %v1648
        %v1650 = vpop.f32.mrb[0].mxu0
        %1651 = vmatprep.mubr.bf16.mxu0 0
        %1652 = vmatmul.mubr.bf16.gmra.mrb[0].mxu0 %v1462
        %v1653 = vpop.f32.mrb[0].mxu0
        %v1654 = vadd.f32 %v1538, %v1653
        %v1655 = vpop.f32.mrb[0].mxu0
        %v1656 = vpop.f32.mrb[0].mxu0
        %v1657 = vadd.f32 %v1541, %v1656
        %v1658 = vpop.f32.mrb[0].mxu0
        %1659 = vmatprep.mubr.bf16.mxu0 0
        %1660 = vmatmul.mubr.bf16.gmra.mrb[0].mxu0 %v1465
        %v1661 = vpop.f32.mrb[0].mxu0
        %v1662 = vadd.f32 %v1546, %v1661
        %v1663 = vpop.f32.mrb[0].mxu0
        %v1664 = vpop.f32.mrb[0].mxu0
        %v1665 = vadd.f32 %v1549, %v1664
        %v1666 = vpop.f32.mrb[0].mxu0
        %1667 = vmatprep.mubr.bf16.mxu0 0
        %1668 = vmatmul.mubr.bf16.gmra.mrb[0].mxu0 %v1468
        %v1669 = vpop.f32.mrb[0].mxu0
        %v1670 = vadd.f32 %v1554, %v1669
        %v1671 = vpop.f32.mrb[0].mxu0
        %v1672 = vpop.f32.mrb[0].mxu0
        %v1673 = vadd.f32 %v1557, %v1672
        %v1674 = vpop.f32.mrb[0].mxu0
        %1675 = vmatprep.mubr.bf16.mxu0 0
        %1676 = vmatmul.mubr.bf16.gmra.mrb[0].mxu0 %v1471
        %v1677 = vpop.f32.mrb[0].mxu0
        %v1678 = vadd.f32 %v1562, %v1677
        %v1679 = vpop.f32.mrb[0].mxu0
        %v1680 = vpop.f32.mrb[0].mxu0
        %v1681 = vadd.f32 %v1565, %v1680
        %v1682 = vpop.f32.mrb[0].mxu0
        %1683 = vmatprep.mubr.bf16.mxu0 0
        %1684 = vmatmul.mubr.bf16.gmra.mrb[0].mxu0 %v1474
        %v1685 = vpop.f32.mrb[0].mxu0
        %v1686 = vadd.f32 %v1570, %v1685
        %v1687 = vpop.f32.mrb[0].mxu0
        %v1688 = vpop.f32.mrb[0].mxu0
        %v1689 = vadd.f32 %v1573, %v1688
        %v1690 = vpop.f32.mrb[0].mxu0
        %1691 = vdwg.mxu0
        %v1692 = vld [vmem:[%s3 + $0x60] sm:$0xf]
        %v1693 = vld [vmem:[%s3 + $0x64] sm:$0xf]
        %v1694 = vld [vmem:[%s3 + $0x68] sm:$0xf]
        %v1695 = vld [vmem:[%s3 + $0x6c] sm:$0xf]
        %v1696 = vsel %vm1374, %v1438, %v1578
        %v1701 = vunpack.c.l.b16 %v1692
        %v1702 = vunpack.c.l.b16 %v1693
        %v1703 = vunpack.c.l.b16 %v1694
        %v1704 = vunpack.c.l.b16 %v1695
        %v1705 = vpack.c.b16 %v1702, %v1701
        %v1706 = vpack.c.b16 %v1704, %v1703
        %v1710 = vsel %vm1005, %v1696, 0
        %1712 = vmatprep.subr.bf16.mxu0 0
        %1713 = vmatpush1.bf16.msra.mxu0 %v1705
        %1714 = vmatprep.subr.bf16.mxu0 0
        %1715 = vmatpush1.bf16.msra.mxu0 %v1706
        %1716 = vmatprep.subr.bf16.mxu0 0
        %1717 = vmatpush1.bf16.msra.mxu0 0
        %1718 = vmatprep.subr.bf16.mxu0 0
        %1719 = vmatpush1.bf16.msra.mxu0 0
        %1720 = vmatprep.subr.bf16.mxu0 0
        %1721 = vmatpush1.bf16.msra.mxu0 0
        %1722 = vmatprep.subr.bf16.mxu0 0
        %1723 = vmatpush1.bf16.msra.mxu0 0
        %1724 = vmatprep.subr.bf16.mxu0 0
        %1725 = vmatpush1.bf16.msra.mxu0 0
        %1726 = vmatprep.subr.bf16.mxu0 0
        %1727 = vmatpush1.bf16.msra.mxu0 0
        %1728 = vmatprep.subr.bf16.mxu0 0
        %1729 = vmatpush1.bf16.msra.mxu0 0
        %1730 = vmatprep.subr.bf16.mxu0 0
        %1731 = vmatpush1.bf16.msra.mxu0 0
        %1732 = vmatprep.subr.bf16.mxu0 0
        %1733 = vmatpush1.bf16.msra.mxu0 0
        %1734 = vmatprep.subr.bf16.mxu0 0
        %1735 = vmatpush1.bf16.msra.mxu0 0
        %1736 = vmatprep.subr.bf16.mxu0 0
        %1737 = vmatpush1.bf16.msra.mxu0 0
        %1738 = vmatprep.subr.bf16.mxu0 0
        %1739 = vmatpush1.bf16.msra.mxu0 0
        %1740 = vmatprep.subr.bf16.mxu0 0
        %1741 = vmatpush1.bf16.msra.mxu0 0
        %1742 = vmatprep.subr.bf16.mxu0 0
        %1743 = vmatpush1.bf16.msra.mxu0 0
        %1744 = vmatprep.mubr.bf16.mxu0 0
        %1745 = vmatmul.mubr.bf16.gmra.mrb[0].mxu0 %v1459
        %v1746 = vpop.f32.mrb[0].mxu0
        %v1747 = vadd.f32 0.0, %v1746
        %v1748 = vpop.f32.mrb[0].mxu0
        %v1749 = vpop.f32.mrb[0].mxu0
        %v1750 = vadd.f32 0.0, %v1749
        %v1751 = vpop.f32.mrb[0].mxu0
        %1752 = vmatprep.mubr.bf16.mxu0 0
        %1753 = vmatmul.mubr.bf16.gmra.mrb[0].mxu0 %v1462
        %v1754 = vpop.f32.mrb[0].mxu0
        %v1755 = vadd.f32 0.0, %v1754
        %v1756 = vpop.f32.mrb[0].mxu0
        %v1757 = vpop.f32.mrb[0].mxu0
        %v1758 = vadd.f32 0.0, %v1757
        %v1759 = vpop.f32.mrb[0].mxu0
        %1760 = vmatprep.mubr.bf16.mxu0 0
        %1761 = vmatmul.mubr.bf16.gmra.mrb[0].mxu0 %v1465
        %v1762 = vpop.f32.mrb[0].mxu0
        %v1763 = vadd.f32 0.0, %v1762
        %v1764 = vpop.f32.mrb[0].mxu0
        %v1765 = vpop.f32.mrb[0].mxu0
        %v1766 = vadd.f32 0.0, %v1765
        %v1767 = vpop.f32.mrb[0].mxu0
        %1768 = vmatprep.mubr.bf16.mxu0 0
        %1769 = vmatmul.mubr.bf16.gmra.mrb[0].mxu0 %v1468
        %v1770 = vpop.f32.mrb[0].mxu0
        %v1771 = vadd.f32 0.0, %v1770
        %v1772 = vpop.f32.mrb[0].mxu0
        %v1773 = vpop.f32.mrb[0].mxu0
        %v1774 = vadd.f32 0.0, %v1773
        %v1775 = vpop.f32.mrb[0].mxu0
        %1776 = vmatprep.mubr.bf16.mxu0 0
        %1777 = vmatmul.mubr.bf16.gmra.mrb[0].mxu0 %v1471
        %v1778 = vpop.f32.mrb[0].mxu0
        %v1779 = vadd.f32 0.0, %v1778
        %v1780 = vpop.f32.mrb[0].mxu0
        %v1781 = vpop.f32.mrb[0].mxu0
        %v1782 = vadd.f32 0.0, %v1781
        %v1783 = vpop.f32.mrb[0].mxu0
        %1784 = vmatprep.mubr.bf16.mxu0 0
        %1785 = vmatmul.mubr.bf16.gmra.mrb[0].mxu0 %v1474
        %v1786 = vpop.f32.mrb[0].mxu0
        %v1787 = vadd.f32 0.0, %v1786
        %v1788 = vpop.f32.mrb[0].mxu0
        %v1789 = vpop.f32.mrb[0].mxu0
        %v1790 = vadd.f32 0.0, %v1789
        %v1791 = vpop.f32.mrb[0].mxu0
        %1792 = vmatprep.mubr.bf16.mxu0 0
        %1793 = vmatmul.mubr.bf16.gmra.mrb[0].mxu0 %v1477
        %v1794 = vpop.f32.mrb[0].mxu0
        %v1795 = vadd.f32 0.0, %v1794
        %v1796 = vpop.f32.mrb[0].mxu0
        %v1797 = vpop.f32.mrb[0].mxu0
        %v1798 = vadd.f32 0.0, %v1797
        %v1799 = vpop.f32.mrb[0].mxu0
        %1800 = vmatprep.mubr.bf16.mxu0 0
        %1801 = vmatmul.mubr.bf16.gmra.mrb[0].mxu0 %v1710
        %v1802 = vpop.f32.mrb[0].mxu0
        %v1803 = vadd.f32 0.0, %v1802
        %v1804 = vpop.f32.mrb[0].mxu0
        %v1805 = vpop.f32.mrb[0].mxu0
        %v1806 = vadd.f32 0.0, %v1805
        %v1807 = vpop.f32.mrb[0].mxu0
        %1808 = vdwg.mxu0
        %v1809 = vadd.f32 %v1630, %v1747
        %v1810 = vadd.f32 %v1633, %v1750
        %v1811 = vadd.f32 %v1638, %v1755
        %v1812 = vadd.f32 %v1641, %v1758
        %v1813 = vadd.f32 %v1646, %v1763
        %v1814 = vadd.f32 %v1649, %v1766
        %v1815 = vadd.f32 %v1654, %v1771
        %v1816 = vadd.f32 %v1657, %v1774
        %v1817 = vadd.f32 %v1662, %v1779
        %v1818 = vadd.f32 %v1665, %v1782
        %v1819 = vadd.f32 %v1670, %v1787
        %v1820 = vadd.f32 %v1673, %v1790
        %v1821 = vadd.f32 %v1678, %v1795
        %v1822 = vadd.f32 %v1681, %v1798
        %v1823 = vadd.f32 %v1686, %v1803
        %v1824 = vadd.f32 %v1689, %v1806
        %v1825 = vld [vmem:[%s3 + $0x10] sm:$0xf]
        %v1826 = vld [vmem:[%s3 + $0x14] sm:$0xf]
        %v1827 = vld [vmem:[%s3 + $0x18] sm:$0xf]
        %v1828 = vld [vmem:[%s3 + $0x1c] sm:$0xf]
        %v1833 = vunpack.c.l.b16 %v1825
        %v1834 = vunpack.c.l.b16 %v1826
        %v1835 = vunpack.c.l.b16 %v1827
        %v1836 = vunpack.c.l.b16 %v1828
        %v1837 = vpack.c.b16 %v1834, %v1833
        %v1838 = vpack.c.b16 %v1836, %v1835
        %v1841 = vsel %vm1005, 0, 0
        %v1843 = vsel %vm1005, %v1358, 0
        %v1845 = vsel %vm1005, %v1359, 0
        %v1847 = vsel %vm1005, %v1360, 0
        %v1849 = vsel %vm1005, %v1361, 0
        %v1851 = vsel %vm1005, %v1362, 0
        %v1853 = vsel %vm1005, %v1363, 0
        %v1855 = vsel %vm1005, %v1364, 0
        %1857 = vmatprep.subr.bf16.mxu0 0
        %1858 = vmatpush1.bf16.msra.mxu0 %v1837
        %1859 = vmatprep.subr.bf16.mxu0 0
        %1860 = vmatpush1.bf16.msra.mxu0 %v1838
        %1861 = vmatprep.subr.bf16.mxu0 0
        %1862 = vmatpush1.bf16.msra.mxu0 0
        %1863 = vmatprep.subr.bf16.mxu0 0
        %1864 = vmatpush1.bf16.msra.mxu0 0
        %1865 = vmatprep.subr.bf16.mxu0 0
        %1866 = vmatpush1.bf16.msra.mxu0 0
        %1867 = vmatprep.subr.bf16.mxu0 0
        %1868 = vmatpush1.bf16.msra.mxu0 0
        %1869 = vmatprep.subr.bf16.mxu0 0
        %1870 = vmatpush1.bf16.msra.mxu0 0
        %1871 = vmatprep.subr.bf16.mxu0 0
        %1872 = vmatpush1.bf16.msra.mxu0 0
        %1873 = vmatprep.subr.bf16.mxu0 0
        %1874 = vmatpush1.bf16.msra.mxu0 0
        %1875 = vmatprep.subr.bf16.mxu0 0
        %1876 = vmatpush1.bf16.msra.mxu0 0
        %1877 = vmatprep.subr.bf16.mxu0 0
        %1878 = vmatpush1.bf16.msra.mxu0 0
        %1879 = vmatprep.subr.bf16.mxu0 0
        %1880 = vmatpush1.bf16.msra.mxu0 0
        %1881 = vmatprep.subr.bf16.mxu0 0
        %1882 = vmatpush1.bf16.msra.mxu0 0
        %1883 = vmatprep.subr.bf16.mxu0 0
        %1884 = vmatpush1.bf16.msra.mxu0 0
        %1885 = vmatprep.subr.bf16.mxu0 0
        %1886 = vmatpush1.bf16.msra.mxu0 0
        %1887 = vmatprep.subr.bf16.mxu0 0
        %1888 = vmatpush1.bf16.msra.mxu0 0
        %1889 = vmatprep.mubr.bf16.mxu0 0
        %1890 = vmatmul.mubr.bf16.gmra.mrb[0].mxu0 %v1841
        %v1891 = vpop.f32.mrb[0].mxu0
        %v1892 = vadd.f32 0.0, %v1891
        %v1893 = vpop.f32.mrb[0].mxu0
        %v1894 = vpop.f32.mrb[0].mxu0
        %v1895 = vadd.f32 0.0, %v1894
        %v1896 = vpop.f32.mrb[0].mxu0
        %1897 = vmatprep.mubr.bf16.mxu0 0
        %1898 = vmatmul.mubr.bf16.gmra.mrb[0].mxu0 %v1843
        %v1899 = vpop.f32.mrb[0].mxu0
        %v1900 = vadd.f32 0.0, %v1899
        %v1901 = vpop.f32.mrb[0].mxu0
        %v1902 = vpop.f32.mrb[0].mxu0
        %v1903 = vadd.f32 0.0, %v1902
        %v1904 = vpop.f32.mrb[0].mxu0
        %1905 = vmatprep.mubr.bf16.mxu0 0
        %1906 = vmatmul.mubr.bf16.gmra.mrb[0].mxu0 %v1845
        %v1907 = vpop.f32.mrb[0].mxu0
        %v1908 = vadd.f32 0.0, %v1907
        %v1909 = vpop.f32.mrb[0].mxu0
        %v1910 = vpop.f32.mrb[0].mxu0
        %v1911 = vadd.f32 0.0, %v1910
        %v1912 = vpop.f32.mrb[0].mxu0
        %1913 = vmatprep.mubr.bf16.mxu0 0
        %1914 = vmatmul.mubr.bf16.gmra.mrb[0].mxu0 %v1847
        %v1915 = vpop.f32.mrb[0].mxu0
        %v1916 = vadd.f32 0.0, %v1915
        %v1917 = vpop.f32.mrb[0].mxu0
        %v1918 = vpop.f32.mrb[0].mxu0
        %v1919 = vadd.f32 0.0, %v1918
        %v1920 = vpop.f32.mrb[0].mxu0
        %1921 = vmatprep.mubr.bf16.mxu0 0
        %1922 = vmatmul.mubr.bf16.gmra.mrb[0].mxu0 %v1849
        %v1923 = vpop.f32.mrb[0].mxu0
        %v1924 = vadd.f32 0.0, %v1923
        %v1925 = vpop.f32.mrb[0].mxu0
        %v1926 = vpop.f32.mrb[0].mxu0
        %v1927 = vadd.f32 0.0, %v1926
        %v1928 = vpop.f32.mrb[0].mxu0
        %1929 = vmatprep.mubr.bf16.mxu0 0
        %1930 = vmatmul.mubr.bf16.gmra.mrb[0].mxu0 %v1851
        %v1931 = vpop.f32.mrb[0].mxu0
        %v1932 = vadd.f32 0.0, %v1931
        %v1933 = vpop.f32.mrb[0].mxu0
        %v1934 = vpop.f32.mrb[0].mxu0
        %v1935 = vadd.f32 0.0, %v1934
        %v1936 = vpop.f32.mrb[0].mxu0
        %1937 = vmatprep.mubr.bf16.mxu0 0
        %1938 = vmatmul.mubr.bf16.gmra.mrb[0].mxu0 %v1853
        %v1939 = vpop.f32.mrb[0].mxu0
        %v1940 = vadd.f32 0.0, %v1939
        %v1941 = vpop.f32.mrb[0].mxu0
        %v1942 = vpop.f32.mrb[0].mxu0
        %v1943 = vadd.f32 0.0, %v1942
        %v1944 = vpop.f32.mrb[0].mxu0
        %1945 = vmatprep.mubr.bf16.mxu0 0
        %1946 = vmatmul.mubr.bf16.gmra.mrb[0].mxu0 %v1855
        %v1947 = vpop.f32.mrb[0].mxu0
        %v1948 = vadd.f32 0.0, %v1947
        %v1949 = vpop.f32.mrb[0].mxu0
        %v1950 = vpop.f32.mrb[0].mxu0
        %v1951 = vadd.f32 0.0, %v1950
        %v1952 = vpop.f32.mrb[0].mxu0
        %1953 = vdwg.mxu0
        %v1954 = vadd.f32 %v1809, %v1892
        %v1955 = vadd.f32 %v1810, %v1895
        %v1956 = vadd.f32 %v1811, %v1900
        %v1957 = vadd.f32 %v1812, %v1903
        %v1958 = vadd.f32 %v1813, %v1908
        %v1959 = vadd.f32 %v1814, %v1911
        %v1960 = vadd.f32 %v1815, %v1916
        %v1961 = vadd.f32 %v1816, %v1919
        %v1962 = vadd.f32 %v1817, %v1924
        %v1963 = vadd.f32 %v1818, %v1927
        %v1964 = vadd.f32 %v1819, %v1932
        %v1965 = vadd.f32 %v1820, %v1935
        %v1966 = vadd.f32 %v1821, %v1940
        %v1967 = vadd.f32 %v1822, %v1943
        %v1968 = vadd.f32 %v1823, %v1948
        %v1969 = vadd.f32 %v1824, %v1951
        %v1970 = vld [vmem:[%s3 + $0x40] sm:$0xf]
        %v1971 = vld [vmem:[%s3 + $0x44] sm:$0xf]
        %v1972 = vld [vmem:[%s3 + $0x48] sm:$0xf]
        %v1973 = vld [vmem:[%s3 + $0x4c] sm:$0xf]
        %v1978 = vunpack.c.l.b16 %v1970
        %v1979 = vunpack.c.l.b16 %v1971
        %v1980 = vunpack.c.l.b16 %v1972
        %v1981 = vunpack.c.l.b16 %v1973
        %v1982 = vpack.c.b16 %v1979, %v1978
        %v1983 = vpack.c.b16 %v1981, %v1980
        %v1986 = vsel %vm1005, %v1365, 0
        %1988 = vmatprep.subr.bf16.mxu0 0
        %1989 = vmatpush1.bf16.msra.mxu0 %v1982
        %1990 = vmatprep.subr.bf16.mxu0 0
        %1991 = vmatpush1.bf16.msra.mxu0 %v1983
        %1992 = vmatprep.subr.bf16.mxu0 0
        %1993 = vmatpush1.bf16.msra.mxu0 0
        %1994 = vmatprep.subr.bf16.mxu0 0
        %1995 = vmatpush1.bf16.msra.mxu0 0
        %1996 = vmatprep.subr.bf16.mxu0 0
        %1997 = vmatpush1.bf16.msra.mxu0 0
        %1998 = vmatprep.subr.bf16.mxu0 0
        %1999 = vmatpush1.bf16.msra.mxu0 0
        %2000 = vmatprep.subr.bf16.mxu0 0
        %2001 = vmatpush1.bf16.msra.mxu0 0
        %2002 = vmatprep.subr.bf16.mxu0 0
        %2003 = vmatpush1.bf16.msra.mxu0 0
        %2004 = vmatprep.subr.bf16.mxu0 0
        %2005 = vmatpush1.bf16.msra.mxu0 0
        %2006 = vmatprep.subr.bf16.mxu0 0
        %2007 = vmatpush1.bf16.msra.mxu0 0
        %2008 = vmatprep.subr.bf16.mxu0 0
        %2009 = vmatpush1.bf16.msra.mxu0 0
        %2010 = vmatprep.subr.bf16.mxu0 0
        %2011 = vmatpush1.bf16.msra.mxu0 0
        %2012 = vmatprep.subr.bf16.mxu0 0
        %2013 = vmatpush1.bf16.msra.mxu0 0
        %2014 = vmatprep.subr.bf16.mxu0 0
        %2015 = vmatpush1.bf16.msra.mxu0 0
        %2016 = vmatprep.subr.bf16.mxu0 0
        %2017 = vmatpush1.bf16.msra.mxu0 0
        %2018 = vmatprep.subr.bf16.mxu0 0
        %2019 = vmatpush1.bf16.msra.mxu0 0
        %2020 = vmatprep.mubr.bf16.mxu0 0
        %2021 = vmatmul.mubr.bf16.gmra.mrb[0].mxu0 %v1843
        %v2022 = vpop.f32.mrb[0].mxu0
        %v2023 = vadd.f32 0.0, %v2022
        %v2024 = vpop.f32.mrb[0].mxu0
        %v2025 = vpop.f32.mrb[0].mxu0
        %v2026 = vadd.f32 0.0, %v2025
        %v2027 = vpop.f32.mrb[0].mxu0
        %2028 = vmatprep.mubr.bf16.mxu0 0
        %2029 = vmatmul.mubr.bf16.gmra.mrb[0].mxu0 %v1845
        %v2030 = vpop.f32.mrb[0].mxu0
        %v2031 = vadd.f32 0.0, %v2030
        %v2032 = vpop.f32.mrb[0].mxu0
        %v2033 = vpop.f32.mrb[0].mxu0
        %v2034 = vadd.f32 0.0, %v2033
        %v2035 = vpop.f32.mrb[0].mxu0
        %2036 = vmatprep.mubr.bf16.mxu0 0
        %2037 = vmatmul.mubr.bf16.gmra.mrb[0].mxu0 %v1847
        %v2038 = vpop.f32.mrb[0].mxu0
        %v2039 = vadd.f32 0.0, %v2038
        %v2040 = vpop.f32.mrb[0].mxu0
        %v2041 = vpop.f32.mrb[0].mxu0
        %v2042 = vadd.f32 0.0, %v2041
        %v2043 = vpop.f32.mrb[0].mxu0
        %2044 = vmatprep.mubr.bf16.mxu0 0
        %2045 = vmatmul.mubr.bf16.gmra.mrb[0].mxu0 %v1849
        %v2046 = vpop.f32.mrb[0].mxu0
        %v2047 = vadd.f32 0.0, %v2046
        %v2048 = vpop.f32.mrb[0].mxu0
        %v2049 = vpop.f32.mrb[0].mxu0
        %v2050 = vadd.f32 0.0, %v2049
        %v2051 = vpop.f32.mrb[0].mxu0
        %2052 = vmatprep.mubr.bf16.mxu0 0
        %2053 = vmatmul.mubr.bf16.gmra.mrb[0].mxu0 %v1851
        %v2054 = vpop.f32.mrb[0].mxu0
        %v2055 = vadd.f32 0.0, %v2054
        %v2056 = vpop.f32.mrb[0].mxu0
        %v2057 = vpop.f32.mrb[0].mxu0
        %v2058 = vadd.f32 0.0, %v2057
        %v2059 = vpop.f32.mrb[0].mxu0
        %2060 = vmatprep.mubr.bf16.mxu0 0
        %2061 = vmatmul.mubr.bf16.gmra.mrb[0].mxu0 %v1853
        %v2062 = vpop.f32.mrb[0].mxu0
        %v2063 = vadd.f32 0.0, %v2062
        %v2064 = vpop.f32.mrb[0].mxu0
        %v2065 = vpop.f32.mrb[0].mxu0
        %v2066 = vadd.f32 0.0, %v2065
        %v2067 = vpop.f32.mrb[0].mxu0
        %2068 = vmatprep.mubr.bf16.mxu0 0
        %2069 = vmatmul.mubr.bf16.gmra.mrb[0].mxu0 %v1855
        %v2070 = vpop.f32.mrb[0].mxu0
        %v2071 = vadd.f32 0.0, %v2070
        %v2072 = vpop.f32.mrb[0].mxu0
        %v2073 = vpop.f32.mrb[0].mxu0
        %v2074 = vadd.f32 0.0, %v2073
        %v2075 = vpop.f32.mrb[0].mxu0
        %2076 = vmatprep.mubr.bf16.mxu0 0
        %2077 = vmatmul.mubr.bf16.gmra.mrb[0].mxu0 %v1986
        %v2078 = vpop.f32.mrb[0].mxu0
        %v2079 = vadd.f32 0.0, %v2078
        %v2080 = vpop.f32.mrb[0].mxu0
        %v2081 = vpop.f32.mrb[0].mxu0
        %v2082 = vadd.f32 0.0, %v2081
        %v2083 = vpop.f32.mrb[0].mxu0
        %2084 = vdwg.mxu0
        %v2085 = vadd.f32 %v1954, %v2023
        %v2086 = vadd.f32 %v1955, %v2026
        %v2087 = vadd.f32 %v1956, %v2031
        %v2088 = vadd.f32 %v1957, %v2034
        %v2089 = vadd.f32 %v1958, %v2039
        %v2090 = vadd.f32 %v1959, %v2042
        %v2091 = vadd.f32 %v1960, %v2047
        %v2092 = vadd.f32 %v1961, %v2050
        %v2093 = vadd.f32 %v1962, %v2055
        %v2094 = vadd.f32 %v1963, %v2058
        %v2095 = vadd.f32 %v1964, %v2063
        %v2096 = vadd.f32 %v1965, %v2066
        %v2097 = vadd.f32 %v1966, %v2071
        %v2098 = vadd.f32 %v1967, %v2074
        %v2099 = vadd.f32 %v1968, %v2079
        %v2100 = vadd.f32 %v1969, %v2082
        %v2101 = vld [vmem:[%s3 + $0x70] sm:$0xf]
        %v2102 = vld [vmem:[%s3 + $0x74] sm:$0xf]
        %v2103 = vld [vmem:[%s3 + $0x78] sm:$0xf]
        %v2104 = vld [vmem:[%s3 + $0x7c] sm:$0xf]
        %v2109 = vunpack.c.l.b16 %v2101
        %v2110 = vunpack.c.l.b16 %v2102
        %v2111 = vunpack.c.l.b16 %v2103
        %v2112 = vunpack.c.l.b16 %v2104
        %v2113 = vpack.c.b16 %v2110, %v2109
        %v2114 = vpack.c.b16 %v2112, %v2111
        %2117 = vmatprep.subr.bf16.mxu0 0
        %2118 = vmatpush1.bf16.msra.mxu0 %v2113
        %2119 = vmatprep.subr.bf16.mxu0 0
        %2120 = vmatpush1.bf16.msra.mxu0 %v2114
        %2121 = vmatprep.subr.bf16.mxu0 0
        %2122 = vmatpush1.bf16.msra.mxu0 0
        %2123 = vmatprep.subr.bf16.mxu0 0
        %2124 = vmatpush1.bf16.msra.mxu0 0
        %2125 = vmatprep.subr.bf16.mxu0 0
        %2126 = vmatpush1.bf16.msra.mxu0 0
        %2127 = vmatprep.subr.bf16.mxu0 0
        %2128 = vmatpush1.bf16.msra.mxu0 0
        %2129 = vmatprep.subr.bf16.mxu0 0
        %2130 = vmatpush1.bf16.msra.mxu0 0
        %2131 = vmatprep.subr.bf16.mxu0 0
        %2132 = vmatpush1.bf16.msra.mxu0 0
        %2133 = vmatprep.subr.bf16.mxu0 0
        %2134 = vmatpush1.bf16.msra.mxu0 0
        %2135 = vmatprep.subr.bf16.mxu0 0
        %2136 = vmatpush1.bf16.msra.mxu0 0
        %2137 = vmatprep.subr.bf16.mxu0 0
        %2138 = vmatpush1.bf16.msra.mxu0 0
        %2139 = vmatprep.subr.bf16.mxu0 0
        %2140 = vmatpush1.bf16.msra.mxu0 0
        %2141 = vmatprep.subr.bf16.mxu0 0
        %2142 = vmatpush1.bf16.msra.mxu0 0
        %2143 = vmatprep.subr.bf16.mxu0 0
        %2144 = vmatpush1.bf16.msra.mxu0 0
        %2145 = vmatprep.subr.bf16.mxu0 0
        %2146 = vmatpush1.bf16.msra.mxu0 0
        %2147 = vmatprep.subr.bf16.mxu0 0
        %2148 = vmatpush1.bf16.msra.mxu0 0
        %2149 = vmatprep.mubr.bf16.mxu0 0
        %2150 = vmatmul.mubr.bf16.gmra.mrb[0].mxu0 %v1845
        %v2151 = vpop.f32.mrb[0].mxu0
        %v2152 = vadd.f32 0.0, %v2151
        %v2153 = vpop.f32.mrb[0].mxu0
        %v2154 = vpop.f32.mrb[0].mxu0
        %v2155 = vadd.f32 0.0, %v2154
        %v2156 = vpop.f32.mrb[0].mxu0
        %2157 = vmatprep.mubr.bf16.mxu0 0
        %2158 = vmatmul.mubr.bf16.gmra.mrb[0].mxu0 %v1847
        %v2159 = vpop.f32.mrb[0].mxu0
        %v2160 = vadd.f32 0.0, %v2159
        %v2161 = vpop.f32.mrb[0].mxu0
        %v2162 = vpop.f32.mrb[0].mxu0
        %v2163 = vadd.f32 0.0, %v2162
        %v2164 = vpop.f32.mrb[0].mxu0
        %2165 = vmatprep.mubr.bf16.mxu0 0
        %2166 = vmatmul.mubr.bf16.gmra.mrb[0].mxu0 %v1849
        %v2167 = vpop.f32.mrb[0].mxu0
        %v2168 = vadd.f32 0.0, %v2167
        %v2169 = vpop.f32.mrb[0].mxu0
        %v2170 = vpop.f32.mrb[0].mxu0
        %v2171 = vadd.f32 0.0, %v2170
        %v2172 = vpop.f32.mrb[0].mxu0
        %2173 = vmatprep.mubr.bf16.mxu0 0
        %2174 = vmatmul.mubr.bf16.gmra.mrb[0].mxu0 %v1851
        %v2175 = vpop.f32.mrb[0].mxu0
        %v2176 = vadd.f32 0.0, %v2175
        %v2177 = vpop.f32.mrb[0].mxu0
        %v2178 = vpop.f32.mrb[0].mxu0
        %v2179 = vadd.f32 0.0, %v2178
        %v2180 = vpop.f32.mrb[0].mxu0
        %2181 = vmatprep.mubr.bf16.mxu0 0
        %2182 = vmatmul.mubr.bf16.gmra.mrb[0].mxu0 %v1853
        %v2183 = vpop.f32.mrb[0].mxu0
        %v2184 = vadd.f32 0.0, %v2183
        %v2185 = vpop.f32.mrb[0].mxu0
        %v2186 = vpop.f32.mrb[0].mxu0
        %v2187 = vadd.f32 0.0, %v2186
        %v2188 = vpop.f32.mrb[0].mxu0
        %2189 = vmatprep.mubr.bf16.mxu0 0
        %2190 = vmatmul.mubr.bf16.gmra.mrb[0].mxu0 %v1855
        %v2191 = vpop.f32.mrb[0].mxu0
        %v2192 = vadd.f32 0.0, %v2191
        %v2193 = vpop.f32.mrb[0].mxu0
        %v2194 = vpop.f32.mrb[0].mxu0
        %v2195 = vadd.f32 0.0, %v2194
        %v2196 = vpop.f32.mrb[0].mxu0
        %2197 = vmatprep.mubr.bf16.mxu0 0
        %2198 = vmatmul.mubr.bf16.gmra.mrb[0].mxu0 %v1986
        %v2199 = vpop.f32.mrb[0].mxu0
        %v2200 = vadd.f32 0.0, %v2199
        %v2201 = vpop.f32.mrb[0].mxu0
        %v2202 = vpop.f32.mrb[0].mxu0
        %v2203 = vadd.f32 0.0, %v2202
        %v2204 = vpop.f32.mrb[0].mxu0
        %2205 = vmatprep.mubr.bf16.mxu0 0
        %2206 = vmatmul.mubr.bf16.gmra.mrb[0].mxu0 %v1841
        %v2207 = vpop.f32.mrb[0].mxu0
        %v2208 = vadd.f32 0.0, %v2207
        %v2209 = vpop.f32.mrb[0].mxu0
        %v2210 = vpop.f32.mrb[0].mxu0
        %v2211 = vadd.f32 0.0, %v2210
        %v2212 = vpop.f32.mrb[0].mxu0
        %2213 = vdwg.mxu0
        %v2214 = vadd.f32 %v2085, %v2152
        %v2215 = vadd.f32 %v2086, %v2155
        %v2216 = vadd.f32 %v2087, %v2160
        %v2217 = vadd.f32 %v2088, %v2163
        %v2218 = vadd.f32 %v2089, %v2168
        %v2219 = vadd.f32 %v2090, %v2171
        %v2220 = vadd.f32 %v2091, %v2176
        %v2221 = vadd.f32 %v2092, %v2179
        %v2222 = vadd.f32 %v2093, %v2184
        %v2223 = vadd.f32 %v2094, %v2187
        %v2224 = vadd.f32 %v2095, %v2192
        %v2225 = vadd.f32 %v2096, %v2195
        %v2226 = vadd.f32 %v2097, %v2200
        %v2227 = vadd.f32 %v2098, %v2203
        %v2228 = vadd.f32 %v2099, %v2208
        %v2229 = vadd.f32 %v2100, %v2211
        %v2230 = vld [vmem:[%s3 + $0x20] sm:$0xf]
        %v2231 = vld [vmem:[%s3 + $0x24] sm:$0xf]
        %v2232 = vld [vmem:[%s3 + $0x28] sm:$0xf]
        %v2233 = vld [vmem:[%s3 + $0x2c] sm:$0xf]
        %vm2234 = vsmask.f32 7424
        %v2235 = vrot.slane %v1576, 1
        %v2236 = vor.u32 %v1376, %v2235
        %v2237 = vrot.slane %v1383, 1
        %v2238 = vsel %vm2234, %v2236, %v2237
        %v2239 = vor.u32 %v1380, %v2237
        %v2240 = vrot.slane %v1391, 1
        %v2241 = vsel %vm2234, %v2239, %v2240
        %v2242 = vor.u32 %v1388, %v2240
        %v2243 = vrot.slane %v1399, 1
        %v2244 = vsel %vm2234, %v2242, %v2243
        %v2245 = vor.u32 %v1396, %v2243
        %v2246 = vrot.slane %v1407, 1
        %v2247 = vsel %vm2234, %v2245, %v2246
        %v2248 = vor.u32 %v1404, %v2246
        %v2249 = vrot.slane %v1415, 1
        %v2250 = vsel %vm2234, %v2248, %v2249
        %v2251 = vor.u32 %v1412, %v2249
        %v2252 = vrot.slane %v1423, 1
        %v2253 = vsel %vm2234, %v2251, %v2252
        %v2254 = vor.u32 %v1420, %v2252
        %v2255 = vrot.slane %v1431, 1
        %v2256 = vsel %vm2234, %v2254, %v2255
        %v2257 = vor.u32 %v1428, %v2255
        %v2258 = vrot.slane %v1439, 1
        %v2259 = vsel %vm2234, %v2257, %v2258
        %v2264 = vunpack.c.l.b16 %v2230
        %v2265 = vunpack.c.l.b16 %v2231
        %v2266 = vunpack.c.l.b16 %v2232
        %v2267 = vunpack.c.l.b16 %v2233
        %v2268 = vpack.c.b16 %v2265, %v2264
        %v2269 = vpack.c.b16 %v2267, %v2266
        %v2273 = vsel %vm1005, %v2238, 0
        %v2276 = vsel %vm1005, %v2241, 0
        %v2279 = vsel %vm1005, %v2244, 0
        %v2282 = vsel %vm1005, %v2247, 0
        %v2285 = vsel %vm1005, %v2250, 0
        %v2288 = vsel %vm1005, %v2253, 0
        %v2291 = vsel %vm1005, %v2256, 0
        %v2294 = vsel %vm1005, %v2259, 0
        %2296 = vmatprep.subr.bf16.mxu0 0
        %2297 = vmatpush1.bf16.msra.mxu0 %v2268
        %2298 = vmatprep.subr.bf16.mxu0 0
        %2299 = vmatpush1.bf16.msra.mxu0 %v2269
        %2300 = vmatprep.subr.bf16.mxu0 0
        %2301 = vmatpush1.bf16.msra.mxu0 0
        %2302 = vmatprep.subr.bf16.mxu0 0
        %2303 = vmatpush1.bf16.msra.mxu0 0
        %2304 = vmatprep.subr.bf16.mxu0 0
        %2305 = vmatpush1.bf16.msra.mxu0 0
        %2306 = vmatprep.subr.bf16.mxu0 0
        %2307 = vmatpush1.bf16.msra.mxu0 0
        %2308 = vmatprep.subr.bf16.mxu0 0
        %2309 = vmatpush1.bf16.msra.mxu0 0
        %2310 = vmatprep.subr.bf16.mxu0 0
        %2311 = vmatpush1.bf16.msra.mxu0 0
        %2312 = vmatprep.subr.bf16.mxu0 0
        %2313 = vmatpush1.bf16.msra.mxu0 0
        %2314 = vmatprep.subr.bf16.mxu0 0
        %2315 = vmatpush1.bf16.msra.mxu0 0
        %2316 = vmatprep.subr.bf16.mxu0 0
        %2317 = vmatpush1.bf16.msra.mxu0 0
        %2318 = vmatprep.subr.bf16.mxu0 0
        %2319 = vmatpush1.bf16.msra.mxu0 0
        %2320 = vmatprep.subr.bf16.mxu0 0
        %2321 = vmatpush1.bf16.msra.mxu0 0
        %2322 = vmatprep.subr.bf16.mxu0 0
        %2323 = vmatpush1.bf16.msra.mxu0 0
        %2324 = vmatprep.subr.bf16.mxu0 0
        %2325 = vmatpush1.bf16.msra.mxu0 0
        %2326 = vmatprep.subr.bf16.mxu0 0
        %2327 = vmatpush1.bf16.msra.mxu0 0
        %2328 = vmatprep.mubr.bf16.mxu0 0
        %2329 = vmatmul.mubr.bf16.gmra.mrb[0].mxu0 %v2273
        %v2330 = vpop.f32.mrb[0].mxu0
        %v2331 = vadd.f32 0.0, %v2330
        %v2332 = vpop.f32.mrb[0].mxu0
        %v2333 = vpop.f32.mrb[0].mxu0
        %v2334 = vadd.f32 0.0, %v2333
        %v2335 = vpop.f32.mrb[0].mxu0
        %2336 = vmatprep.mubr.bf16.mxu0 0
        %2337 = vmatmul.mubr.bf16.gmra.mrb[0].mxu0 %v2276
        %v2338 = vpop.f32.mrb[0].mxu0
        %v2339 = vadd.f32 0.0, %v2338
        %v2340 = vpop.f32.mrb[0].mxu0
        %v2341 = vpop.f32.mrb[0].mxu0
        %v2342 = vadd.f32 0.0, %v2341
        %v2343 = vpop.f32.mrb[0].mxu0
        %2344 = vmatprep.mubr.bf16.mxu0 0
        %2345 = vmatmul.mubr.bf16.gmra.mrb[0].mxu0 %v2279
        %v2346 = vpop.f32.mrb[0].mxu0
        %v2347 = vadd.f32 0.0, %v2346
        %v2348 = vpop.f32.mrb[0].mxu0
        %v2349 = vpop.f32.mrb[0].mxu0
        %v2350 = vadd.f32 0.0, %v2349
        %v2351 = vpop.f32.mrb[0].mxu0
        %2352 = vmatprep.mubr.bf16.mxu0 0
        %2353 = vmatmul.mubr.bf16.gmra.mrb[0].mxu0 %v2282
        %v2354 = vpop.f32.mrb[0].mxu0
        %v2355 = vadd.f32 0.0, %v2354
        %v2356 = vpop.f32.mrb[0].mxu0
        %v2357 = vpop.f32.mrb[0].mxu0
        %v2358 = vadd.f32 0.0, %v2357
        %v2359 = vpop.f32.mrb[0].mxu0
        %2360 = vmatprep.mubr.bf16.mxu0 0
        %2361 = vmatmul.mubr.bf16.gmra.mrb[0].mxu0 %v2285
        %v2362 = vpop.f32.mrb[0].mxu0
        %v2363 = vadd.f32 0.0, %v2362
        %v2364 = vpop.f32.mrb[0].mxu0
        %v2365 = vpop.f32.mrb[0].mxu0
        %v2366 = vadd.f32 0.0, %v2365
        %v2367 = vpop.f32.mrb[0].mxu0
        %2368 = vmatprep.mubr.bf16.mxu0 0
        %2369 = vmatmul.mubr.bf16.gmra.mrb[0].mxu0 %v2288
        %v2370 = vpop.f32.mrb[0].mxu0
        %v2371 = vadd.f32 0.0, %v2370
        %v2372 = vpop.f32.mrb[0].mxu0
        %v2373 = vpop.f32.mrb[0].mxu0
        %v2374 = vadd.f32 0.0, %v2373
        %v2375 = vpop.f32.mrb[0].mxu0
        %2376 = vmatprep.mubr.bf16.mxu0 0
        %2377 = vmatmul.mubr.bf16.gmra.mrb[0].mxu0 %v2291
        %v2378 = vpop.f32.mrb[0].mxu0
        %v2379 = vadd.f32 0.0, %v2378
        %v2380 = vpop.f32.mrb[0].mxu0
        %v2381 = vpop.f32.mrb[0].mxu0
        %v2382 = vadd.f32 0.0, %v2381
        %v2383 = vpop.f32.mrb[0].mxu0
        %2384 = vmatprep.mubr.bf16.mxu0 0
        %2385 = vmatmul.mubr.bf16.gmra.mrb[0].mxu0 %v2294
        %v2386 = vpop.f32.mrb[0].mxu0
        %v2387 = vadd.f32 0.0, %v2386
        %v2388 = vpop.f32.mrb[0].mxu0
        %v2389 = vpop.f32.mrb[0].mxu0
        %v2390 = vadd.f32 0.0, %v2389
        %v2391 = vpop.f32.mrb[0].mxu0
        %2392 = vdwg.mxu0
        %v2393 = vadd.f32 %v2214, %v2331
        %v2394 = vadd.f32 %v2215, %v2334
        %v2395 = vadd.f32 %v2216, %v2339
        %v2396 = vadd.f32 %v2217, %v2342
        %v2397 = vadd.f32 %v2218, %v2347
        %v2398 = vadd.f32 %v2219, %v2350
        %v2399 = vadd.f32 %v2220, %v2355
        %v2400 = vadd.f32 %v2221, %v2358
        %v2401 = vadd.f32 %v2222, %v2363
        %v2402 = vadd.f32 %v2223, %v2366
        %v2403 = vadd.f32 %v2224, %v2371
        %v2404 = vadd.f32 %v2225, %v2374
        %v2405 = vadd.f32 %v2226, %v2379
        %v2406 = vadd.f32 %v2227, %v2382
        %v2407 = vadd.f32 %v2228, %v2387
        %v2408 = vadd.f32 %v2229, %v2390
        %v2409 = vld [vmem:[%s3 + $0x50] sm:$0xf]
        %v2410 = vld [vmem:[%s3 + $0x54] sm:$0xf]
        %v2411 = vld [vmem:[%s3 + $0x58] sm:$0xf]
        %v2412 = vld [vmem:[%s3 + $0x5c] sm:$0xf]
        %v2413 = vor.u32 %v1436, %v2258
        %v2414 = vsel %vm2234, %v2413, %v2235
        %v2419 = vunpack.c.l.b16 %v2409
        %v2420 = vunpack.c.l.b16 %v2410
        %v2421 = vunpack.c.l.b16 %v2411
        %v2422 = vunpack.c.l.b16 %v2412
        %v2423 = vpack.c.b16 %v2420, %v2419
        %v2424 = vpack.c.b16 %v2422, %v2421
        %v2428 = vsel %vm1005, %v2414, 0
        %2430 = vmatprep.subr.bf16.mxu0 0
        %2431 = vmatpush1.bf16.msra.mxu0 %v2423
        %2432 = vmatprep.subr.bf16.mxu0 0
        %2433 = vmatpush1.bf16.msra.mxu0 %v2424
        %2434 = vmatprep.subr.bf16.mxu0 0
        %2435 = vmatpush1.bf16.msra.mxu0 0
        %2436 = vmatprep.subr.bf16.mxu0 0
        %2437 = vmatpush1.bf16.msra.mxu0 0
        %2438 = vmatprep.subr.bf16.mxu0 0
        %2439 = vmatpush1.bf16.msra.mxu0 0
        %2440 = vmatprep.subr.bf16.mxu0 0
        %2441 = vmatpush1.bf16.msra.mxu0 0
        %2442 = vmatprep.subr.bf16.mxu0 0
        %2443 = vmatpush1.bf16.msra.mxu0 0
        %2444 = vmatprep.subr.bf16.mxu0 0
        %2445 = vmatpush1.bf16.msra.mxu0 0
        %2446 = vmatprep.subr.bf16.mxu0 0
        %2447 = vmatpush1.bf16.msra.mxu0 0
        %2448 = vmatprep.subr.bf16.mxu0 0
        %2449 = vmatpush1.bf16.msra.mxu0 0
        %2450 = vmatprep.subr.bf16.mxu0 0
        %2451 = vmatpush1.bf16.msra.mxu0 0
        %2452 = vmatprep.subr.bf16.mxu0 0
        %2453 = vmatpush1.bf16.msra.mxu0 0
        %2454 = vmatprep.subr.bf16.mxu0 0
        %2455 = vmatpush1.bf16.msra.mxu0 0
        %2456 = vmatprep.subr.bf16.mxu0 0
        %2457 = vmatpush1.bf16.msra.mxu0 0
        %2458 = vmatprep.subr.bf16.mxu0 0
        %2459 = vmatpush1.bf16.msra.mxu0 0
        %2460 = vmatprep.subr.bf16.mxu0 0
        %2461 = vmatpush1.bf16.msra.mxu0 0
        %2462 = vmatprep.mubr.bf16.mxu0 0
        %2463 = vmatmul.mubr.bf16.gmra.mrb[0].mxu0 %v2276
        %v2464 = vpop.f32.mrb[0].mxu0
        %v2465 = vadd.f32 0.0, %v2464
        %v2466 = vpop.f32.mrb[0].mxu0
        %v2467 = vpop.f32.mrb[0].mxu0
        %v2468 = vadd.f32 0.0, %v2467
        %v2469 = vpop.f32.mrb[0].mxu0
        %2470 = vmatprep.mubr.bf16.mxu0 0
        %2471 = vmatmul.mubr.bf16.gmra.mrb[0].mxu0 %v2279
        %v2472 = vpop.f32.mrb[0].mxu0
        %v2473 = vadd.f32 0.0, %v2472
        %v2474 = vpop.f32.mrb[0].mxu0
        %v2475 = vpop.f32.mrb[0].mxu0
        %v2476 = vadd.f32 0.0, %v2475
        %v2477 = vpop.f32.mrb[0].mxu0
        %2478 = vmatprep.mubr.bf16.mxu0 0
        %2479 = vmatmul.mubr.bf16.gmra.mrb[0].mxu0 %v2282
        %v2480 = vpop.f32.mrb[0].mxu0
        %v2481 = vadd.f32 0.0, %v2480
        %v2482 = vpop.f32.mrb[0].mxu0
        %v2483 = vpop.f32.mrb[0].mxu0
        %v2484 = vadd.f32 0.0, %v2483
        %v2485 = vpop.f32.mrb[0].mxu0
        %2486 = vmatprep.mubr.bf16.mxu0 0
        %2487 = vmatmul.mubr.bf16.gmra.mrb[0].mxu0 %v2285
        %v2488 = vpop.f32.mrb[0].mxu0
        %v2489 = vadd.f32 0.0, %v2488
        %v2490 = vpop.f32.mrb[0].mxu0
        %v2491 = vpop.f32.mrb[0].mxu0
        %v2492 = vadd.f32 0.0, %v2491
        %v2493 = vpop.f32.mrb[0].mxu0
        %2494 = vmatprep.mubr.bf16.mxu0 0
        %2495 = vmatmul.mubr.bf16.gmra.mrb[0].mxu0 %v2288
        %v2496 = vpop.f32.mrb[0].mxu0
        %v2497 = vadd.f32 0.0, %v2496
        %v2498 = vpop.f32.mrb[0].mxu0
        %v2499 = vpop.f32.mrb[0].mxu0
        %v2500 = vadd.f32 0.0, %v2499
        %v2501 = vpop.f32.mrb[0].mxu0
        %2502 = vmatprep.mubr.bf16.mxu0 0
        %2503 = vmatmul.mubr.bf16.gmra.mrb[0].mxu0 %v2291
        %v2504 = vpop.f32.mrb[0].mxu0
        %v2505 = vadd.f32 0.0, %v2504
        %v2506 = vpop.f32.mrb[0].mxu0
        %v2507 = vpop.f32.mrb[0].mxu0
        %v2508 = vadd.f32 0.0, %v2507
        %v2509 = vpop.f32.mrb[0].mxu0
        %2510 = vmatprep.mubr.bf16.mxu0 0
        %2511 = vmatmul.mubr.bf16.gmra.mrb[0].mxu0 %v2294
        %v2512 = vpop.f32.mrb[0].mxu0
        %v2513 = vadd.f32 0.0, %v2512
        %v2514 = vpop.f32.mrb[0].mxu0
        %v2515 = vpop.f32.mrb[0].mxu0
        %v2516 = vadd.f32 0.0, %v2515
        %v2517 = vpop.f32.mrb[0].mxu0
        %2518 = vmatprep.mubr.bf16.mxu0 0
        %2519 = vmatmul.mubr.bf16.gmra.mrb[0].mxu0 %v2428
        %v2520 = vpop.f32.mrb[0].mxu0
        %v2521 = vadd.f32 0.0, %v2520
        %v2522 = vpop.f32.mrb[0].mxu0
        %v2523 = vpop.f32.mrb[0].mxu0
        %v2524 = vadd.f32 0.0, %v2523
        %v2525 = vpop.f32.mrb[0].mxu0
        %2526 = vdwg.mxu0
        %v2527 = vadd.f32 %v2393, %v2465
        %v2528 = vadd.f32 %v2394, %v2468
        %v2529 = vadd.f32 %v2395, %v2473
        %v2530 = vadd.f32 %v2396, %v2476
        %v2531 = vadd.f32 %v2397, %v2481
        %v2532 = vadd.f32 %v2398, %v2484
        %v2533 = vadd.f32 %v2399, %v2489
        %v2534 = vadd.f32 %v2400, %v2492
        %v2535 = vadd.f32 %v2401, %v2497
        %v2536 = vadd.f32 %v2402, %v2500
        %v2537 = vadd.f32 %v2403, %v2505
        %v2538 = vadd.f32 %v2404, %v2508
        %v2539 = vadd.f32 %v2405, %v2513
        %v2540 = vadd.f32 %v2406, %v2516
        %v2541 = vadd.f32 %v2407, %v2521
        %v2542 = vadd.f32 %v2408, %v2524
        %v2543 = vld [vmem:[%s3 + $0x80] sm:$0xf]
        %v2544 = vld [vmem:[%s3 + $0x84] sm:$0xf]
        %v2545 = vld [vmem:[%s3 + $0x88] sm:$0xf]
        %v2546 = vld [vmem:[%s3 + $0x8c] sm:$0xf]
        %v2547 = vsel %vm2234, %v2236, %v2235
        %v2552 = vunpack.c.l.b16 %v2543
        %v2553 = vunpack.c.l.b16 %v2544
        %v2554 = vunpack.c.l.b16 %v2545
        %v2555 = vunpack.c.l.b16 %v2546
        %v2556 = vpack.c.b16 %v2553, %v2552
        %v2557 = vpack.c.b16 %v2555, %v2554
        %v2561 = vsel %vm1005, %v2547, 0
        %2563 = vmatprep.subr.bf16.mxu0 0
        %2564 = vmatpush1.bf16.msra.mxu0 %v2556
        %2565 = vmatprep.subr.bf16.mxu0 0
        %2566 = vmatpush1.bf16.msra.mxu0 %v2557
        %2567 = vmatprep.subr.bf16.mxu0 0
        %2568 = vmatpush1.bf16.msra.mxu0 0
        %2569 = vmatprep.subr.bf16.mxu0 0
        %2570 = vmatpush1.bf16.msra.mxu0 0
        %2571 = vmatprep.subr.bf16.mxu0 0
        %2572 = vmatpush1.bf16.msra.mxu0 0
        %2573 = vmatprep.subr.bf16.mxu0 0
        %2574 = vmatpush1.bf16.msra.mxu0 0
        %2575 = vmatprep.subr.bf16.mxu0 0
        %2576 = vmatpush1.bf16.msra.mxu0 0
        %2577 = vmatprep.subr.bf16.mxu0 0
        %2578 = vmatpush1.bf16.msra.mxu0 0
        %2579 = vmatprep.subr.bf16.mxu0 0
        %2580 = vmatpush1.bf16.msra.mxu0 0
        %2581 = vmatprep.subr.bf16.mxu0 0
        %2582 = vmatpush1.bf16.msra.mxu0 0
        %2583 = vmatprep.subr.bf16.mxu0 0
        %2584 = vmatpush1.bf16.msra.mxu0 0
        %2585 = vmatprep.subr.bf16.mxu0 0
        %2586 = vmatpush1.bf16.msra.mxu0 0
        %2587 = vmatprep.subr.bf16.mxu0 0
        %2588 = vmatpush1.bf16.msra.mxu0 0
        %2589 = vmatprep.subr.bf16.mxu0 0
        %2590 = vmatpush1.bf16.msra.mxu0 0
        %2591 = vmatprep.subr.bf16.mxu0 0
        %2592 = vmatpush1.bf16.msra.mxu0 0
        %2593 = vmatprep.subr.bf16.mxu0 0
        %2594 = vmatpush1.bf16.msra.mxu0 0
        %2595 = vmatprep.mubr.bf16.mxu0 0
        %2596 = vmatmul.mubr.bf16.gmra.mrb[0].mxu0 %v2279
        %v2597 = vpop.f32.mrb[0].mxu0
        %v2598 = vadd.f32 0.0, %v2597
        %v2599 = vpop.f32.mrb[0].mxu0
        %v2600 = vpop.f32.mrb[0].mxu0
        %v2601 = vadd.f32 0.0, %v2600
        %v2602 = vpop.f32.mrb[0].mxu0
        %2603 = vmatprep.mubr.bf16.mxu0 0
        %2604 = vmatmul.mubr.bf16.gmra.mrb[0].mxu0 %v2282
        %v2605 = vpop.f32.mrb[0].mxu0
        %v2606 = vadd.f32 0.0, %v2605
        %v2607 = vpop.f32.mrb[0].mxu0
        %v2608 = vpop.f32.mrb[0].mxu0
        %v2609 = vadd.f32 0.0, %v2608
        %v2610 = vpop.f32.mrb[0].mxu0
        %2611 = vmatprep.mubr.bf16.mxu0 0
        %2612 = vmatmul.mubr.bf16.gmra.mrb[0].mxu0 %v2285
        %v2613 = vpop.f32.mrb[0].mxu0
        %v2614 = vadd.f32 0.0, %v2613
        %v2615 = vpop.f32.mrb[0].mxu0
        %v2616 = vpop.f32.mrb[0].mxu0
        %v2617 = vadd.f32 0.0, %v2616
        %v2618 = vpop.f32.mrb[0].mxu0
        %2619 = vmatprep.mubr.bf16.mxu0 0
        %2620 = vmatmul.mubr.bf16.gmra.mrb[0].mxu0 %v2288
        %v2621 = vpop.f32.mrb[0].mxu0
        %v2622 = vadd.f32 0.0, %v2621
        %v2623 = vpop.f32.mrb[0].mxu0
        %v2624 = vpop.f32.mrb[0].mxu0
        %v2625 = vadd.f32 0.0, %v2624
        %v2626 = vpop.f32.mrb[0].mxu0
        %2627 = vmatprep.mubr.bf16.mxu0 0
        %2628 = vmatmul.mubr.bf16.gmra.mrb[0].mxu0 %v2291
        %v2629 = vpop.f32.mrb[0].mxu0
        %v2630 = vadd.f32 0.0, %v2629
        %v2631 = vpop.f32.mrb[0].mxu0
        %v2632 = vpop.f32.mrb[0].mxu0
        %v2633 = vadd.f32 0.0, %v2632
        %v2634 = vpop.f32.mrb[0].mxu0
        %2635 = vmatprep.mubr.bf16.mxu0 0
        %2636 = vmatmul.mubr.bf16.gmra.mrb[0].mxu0 %v2294
        %v2637 = vpop.f32.mrb[0].mxu0
        %v2638 = vadd.f32 0.0, %v2637
        %v2639 = vpop.f32.mrb[0].mxu0
        %v2640 = vpop.f32.mrb[0].mxu0
        %v2641 = vadd.f32 0.0, %v2640
        %v2642 = vpop.f32.mrb[0].mxu0
        %2643 = vmatprep.mubr.bf16.mxu0 0
        %2644 = vmatmul.mubr.bf16.gmra.mrb[0].mxu0 %v2428
        %v2645 = vpop.f32.mrb[0].mxu0
        %v2646 = vadd.f32 0.0, %v2645
        %v2647 = vpop.f32.mrb[0].mxu0
        %v2648 = vpop.f32.mrb[0].mxu0
        %v2649 = vadd.f32 0.0, %v2648
        %v2650 = vpop.f32.mrb[0].mxu0
        %2651 = vmatprep.mubr.bf16.mxu0 0
        %2652 = vmatmul.mubr.bf16.gmra.mrb[0].mxu0 %v2561
        %v2653 = vpop.f32.mrb[0].mxu0
        %v2654 = vadd.f32 0.0, %v2653
        %v2655 = vpop.f32.mrb[0].mxu0
        %v2656 = vpop.f32.mrb[0].mxu0
        %v2657 = vadd.f32 0.0, %v2656
        %v2658 = vpop.f32.mrb[0].mxu0
        %2659 = vdwg.mxu0
        %v2660 = vadd.f32 %v2527, %v2598
        %v2661 = vadd.f32 %v2528, %v2601
        %v2662 = vadd.f32 %v2529, %v2606
        %v2663 = vadd.f32 %v2530, %v2609
        %v2664 = vadd.f32 %v2531, %v2614
        %v2665 = vadd.f32 %v2532, %v2617
        %v2666 = vadd.f32 %v2533, %v2622
        %v2667 = vadd.f32 %v2534, %v2625
        %v2668 = vadd.f32 %v2535, %v2630
        %v2669 = vadd.f32 %v2536, %v2633
        %v2670 = vadd.f32 %v2537, %v2638
        %v2671 = vadd.f32 %v2538, %v2641
        %v2672 = vadd.f32 %v2539, %v2646
        %v2673 = vadd.f32 %v2540, %v2649
        %v2674 = vadd.f32 %v2541, %v2654
        %v2675 = vadd.f32 %v2542, %v2657
        %v2676 = vld [vmem:[%s4] sm:$0x1]
        %v2678 = vlaneseq
        %v2679 = vshrl.u32 %v2678, 7
        %v2680 = vsub.s32 0, %v2679
        %v2681 = vrot.slane %v2676, %v2680
        %v2683 = vadd.f32 %v2660, %v2681
        %v2684 = vadd.f32 %v2661, %v2681
        %v2685 = vadd.f32 %v2662, %v2681
        %v2686 = vadd.f32 %v2663, %v2681
        %v2687 = vadd.f32 %v2664, %v2681
        %v2688 = vadd.f32 %v2665, %v2681
        %v2689 = vadd.f32 %v2666, %v2681
        %v2690 = vadd.f32 %v2667, %v2681
        %v2691 = vadd.f32 %v2668, %v2681
        %v2692 = vadd.f32 %v2669, %v2681
        %v2693 = vadd.f32 %v2670, %v2681
        %v2694 = vadd.f32 %v2671, %v2681
        %v2695 = vadd.f32 %v2672, %v2681
        %v2696 = vadd.f32 %v2673, %v2681
        %v2697 = vadd.f32 %v2674, %v2681
        %v2698 = vadd.f32 %v2675, %v2681
        %v2699 = vmax.f32 %v2683, 0.0
        %v2700 = vmax.f32 %v2684, 0.0
        %v2701 = vmax.f32 %v2685, 0.0
        %v2702 = vmax.f32 %v2686, 0.0
        %v2703 = vmax.f32 %v2687, 0.0
        %v2704 = vmax.f32 %v2688, 0.0
        %v2705 = vmax.f32 %v2689, 0.0
        %v2706 = vmax.f32 %v2690, 0.0
        %v2707 = vmax.f32 %v2691, 0.0
        %v2708 = vmax.f32 %v2692, 0.0
        %v2709 = vmax.f32 %v2693, 0.0
        %v2710 = vmax.f32 %v2694, 0.0
        %v2711 = vmax.f32 %v2695, 0.0
        %v2712 = vmax.f32 %v2696, 0.0
        %v2713 = vmax.f32 %v2697, 0.0
        %v2714 = vmax.f32 %v2698, 0.0
        %v2715 = vmax.f32 %v2699, %v2701
        %v2716 = vmax.f32 %v2700, %v2702
        %v2717 = vmax.f32 %v2703, %v2705
        %v2718 = vmax.f32 %v2704, %v2706
        %v2719 = vmax.f32 %v2707, %v2709
        %v2720 = vmax.f32 %v2708, %v2710
        %v2721 = vmax.f32 %v2711, %v2713
        %v2722 = vmax.f32 %v2712, %v2714
        %vm2723 = vcmask 523264
        %2724 = vst.msk [vmem:[#allocation3] sm:$0xff] %vm2723, %v2715
        %2725 = vst.msk [vmem:[#allocation3 + $0x8] sm:$0xff] %vm2723, %v2716
        %2726 = vst.msk [vmem:[#allocation3 + $0x10] sm:$0xff] %vm2723, %v2717
        %2727 = vst.msk [vmem:[#allocation3 + $0x18] sm:$0xff] %vm2723, %v2718
        %2728 = vst.msk [vmem:[#allocation3 + $0x20] sm:$0xff] %vm2723, %v2719
        %2729 = vst.msk [vmem:[#allocation3 + $0x28] sm:$0xff] %vm2723, %v2720
        %2730 = vst.msk [vmem:[#allocation3 + $0x30] sm:$0xff] %vm2723, %v2721
        %2731 = vst.msk [vmem:[#allocation3 + $0x38] sm:$0xff] %vm2723, %v2722
        %v2732 = vld [vmem:[#allocation3] ss:$2 sm:$0xff]
        %s2733 = scalar_lea.vmem [#allocation3], 16
        %v2734 = vld [vmem:[%s2733] ss:$2 sm:$0xff]
        %s2735 = scalar_lea.vmem [#allocation3], 32
        %v2736 = vld [vmem:[%s2735] ss:$2 sm:$0xff]
        %s2737 = scalar_lea.vmem [#allocation3], 48
        %v2738 = vld [vmem:[%s2737] ss:$2 sm:$0xff]
        %s2739 = scalar_lea.vmem [#allocation3], 1
        %v2740 = vld [vmem:[%s2739] ss:$2 sm:$0xff]
        %s2741 = scalar_lea.vmem [#allocation3], 17
        %v2742 = vld [vmem:[%s2741] ss:$2 sm:$0xff]
        %s2743 = scalar_lea.vmem [#allocation3], 33
        %v2744 = vld [vmem:[%s2743] ss:$2 sm:$0xff]
        %s2745 = scalar_lea.vmem [#allocation3], 49
        %v2746 = vld [vmem:[%s2745] ss:$2 sm:$0xff]
        %v2747 = vmax.f32 %v2732, %v2740
        %v2748 = vmax.f32 %v2734, %v2742
        %v2749 = vmax.f32 %v2736, %v2744
        %v2750 = vmax.f32 %v2738, %v2746
        %vm2751 = vcmp.lt.s32.totalorder %v1118, 0
        %v2752 = vsub.s32 0, %v1118
        %v2753 = vsel %vm2751, %v2752, %v1118
        %v2754 = vshrl.u32 %v2753, 3
        %v2755 = vand.u32 %v2753, 7
        %v2756 = vsub.s32 0, %v2755
        %v2757 = vsel %vm2751, %v2756, %v2755
        %vm2758 = vcmp.lt.s32.totalorder %v1119, 0
        %v2759 = vsub.s32 0, %v1119
        %v2760 = vsel %vm2758, %v2759, %v1119
        %v2761 = vshrl.u32 %v2760, 3
        %v2762 = vand.u32 %v2760, 7
        %v2763 = vsub.s32 0, %v2762
        %v2764 = vsel %vm2758, %v2763, %v2762
        %vm2765 = vcmp.lt.s32.totalorder %v1120, 0
        %v2766 = vsub.s32 0, %v1120
        %v2767 = vsel %vm2765, %v2766, %v1120
        %v2768 = vshrl.u32 %v2767, 3
        %v2769 = vand.u32 %v2767, 7
        %v2770 = vsub.s32 0, %v2769
        %v2771 = vsel %vm2765, %v2770, %v2769
        %vm2772 = vcmp.lt.s32.totalorder %v1121, 0
        %v2773 = vsub.s32 0, %v1121
        %v2774 = vsel %vm2772, %v2773, %v1121
        %v2775 = vshrl.u32 %v2774, 3
        %v2776 = vand.u32 %v2774, 7
        %v2777 = vsub.s32 0, %v2776
        %v2778 = vsel %vm2772, %v2777, %v2776
        %vm2779 = vcmp.ne.s32.totalorder %v2757, 0
        %vm2780 = vcmp.ne.s32.totalorder %v2764, 0
        %vm2781 = vcmp.ne.s32.totalorder %v2771, 0
        %vm2782 = vcmp.ne.s32.totalorder %v2778, 0
        %vm2783 = vcmp.lt.s32.totalorder %v2757, 0
        %vm2784 = vcmp.lt.s32.totalorder %v2764, 0
        %vm2785 = vcmp.lt.s32.totalorder %v2771, 0
        %vm2786 = vcmp.lt.s32.totalorder %v2778, 0
        %vm2787 = vmand %vm2783, %vm2779
        %vm2788 = vmand %vm2784, %vm2780
        %vm2789 = vmand %vm2785, %vm2781
        %vm2790 = vmand %vm2786, %vm2782
        %v2791 = vadd.s32 %v2757, 8
        %v2792 = vadd.s32 %v2764, 8
        %v2793 = vadd.s32 %v2771, 8
        %v2794 = vadd.s32 %v2778, 8
        %v2795 = vsel %vm2787, %v2791, %v2757
        %v2796 = vsel %vm2788, %v2792, %v2764
        %v2797 = vsel %vm2789, %v2793, %v2771
        %v2798 = vsel %vm2790, %v2794, %v2778
        %vm2799 = vcmp.lt.s32.totalorder %v2795, 4
        %vm2800 = vcmp.lt.s32.totalorder %v2796, 4
        %vm2801 = vcmp.lt.s32.totalorder %v2797, 4
        %vm2802 = vcmp.lt.s32.totalorder %v2798, 4
        %v2803 = vsel %vm2799, %v2747, 0.0
        %v2804 = vsel %vm2800, %v2748, 0.0
        %v2805 = vsel %vm2801, %v2749, 0.0
        %v2806 = vsel %vm2802, %v2750, 0.0
        %v2807 = vpack.c.bf16 %v2804, %v2803
        %v2808 = vpack.c.bf16 %v2806, %v2805
        %v2809 = vld [vmem:[%s5] sm:$0xf]
        %v2810 = vld [vmem:[%s5 + $0x4] sm:$0xf]
        %v2811 = vld [vmem:[%s5 + $0x8] sm:$0xf]
        %v2812 = vld [vmem:[%s5 + $0xc] sm:$0xf]
        %v2813 = vld [vmem:[%s5 + $0x10] sm:$0xf]
        %v2814 = vld [vmem:[%s5 + $0x14] sm:$0xf]
        %v2815 = vld [vmem:[%s5 + $0x18] sm:$0xf]
        %v2816 = vld [vmem:[%s5 + $0x1c] sm:$0xf]
        %v2817 = vld [vmem:[%s5 + $0x60] sm:$0xf]
        %v2818 = vld [vmem:[%s5 + $0x64] sm:$0xf]
        %v2819 = vld [vmem:[%s5 + $0x68] sm:$0xf]
        %v2820 = vld [vmem:[%s5 + $0x6c] sm:$0xf]
        %v2821 = vld [vmem:[%s5 + $0x70] sm:$0xf]
        %v2822 = vld [vmem:[%s5 + $0x74] sm:$0xf]
        %v2823 = vld [vmem:[%s5 + $0x78] sm:$0xf]
        %v2824 = vld [vmem:[%s5 + $0x7c] sm:$0xf]
        %v2826 = vshrl.u32 %v2807, 16
        %v2828 = vrot.slane %v2826, 7
        %v2829 = vshll.u32 %v2807, 16
        %v2831 = vor.u32 %v2828, %v2829
        %v2832 = vsel %vm1374, %v1378, %v2831
        %v2834 = vshrl.u32 %v2808, 16
        %v2836 = vrot.slane %v2834, 7
        %v2837 = vshll.u32 %v2808, 16
        %v2839 = vor.u32 %v2836, %v2837
        %v2840 = vsel %vm1374, %v2828, %v2839
        %v2849 = vunpack.c.l.b16 %v2817
        %v2850 = vunpack.c.l.b16 %v2818
        %v2851 = vunpack.c.l.b16 %v2819
        %v2852 = vunpack.c.l.b16 %v2820
        %v2853 = vunpack.c.l.b16 %v2821
        %v2854 = vunpack.c.l.b16 %v2822
        %v2855 = vunpack.c.l.b16 %v2823
        %v2856 = vunpack.c.l.b16 %v2824
        %v2857 = vpack.c.b16 %v2850, %v2849
        %v2858 = vpack.c.b16 %v2852, %v2851
        %v2859 = vpack.c.b16 %v2854, %v2853
        %v2860 = vpack.c.b16 %v2856, %v2855
        %v2866 = vsel %vm2723, %v2832, 0
        %v2869 = vsel %vm2723, %v2840, 0
        %2871 = vmatprep.subr.bf16.mxu0 0
        %2872 = vmatpush1.bf16.msra.mxu0 %v2857
        %2873 = vmatprep.subr.bf16.mxu0 0
        %2874 = vmatpush1.bf16.msra.mxu0 %v2858
        %2875 = vmatprep.subr.bf16.mxu0 0
        %2876 = vmatpush1.bf16.msra.mxu0 %v2859
        %2877 = vmatprep.subr.bf16.mxu0 0
        %2878 = vmatpush1.bf16.msra.mxu0 %v2860
        %2879 = vmatprep.subr.bf16.mxu0 0
        %2880 = vmatpush1.bf16.msra.mxu0 0
        %2881 = vmatprep.subr.bf16.mxu0 0
        %2882 = vmatpush1.bf16.msra.mxu0 0
        %2883 = vmatprep.subr.bf16.mxu0 0
        %2884 = vmatpush1.bf16.msra.mxu0 0
        %2885 = vmatprep.subr.bf16.mxu0 0
        %2886 = vmatpush1.bf16.msra.mxu0 0
        %2887 = vmatprep.subr.bf16.mxu0 0
        %2888 = vmatpush1.bf16.msra.mxu0 0
        %2889 = vmatprep.subr.bf16.mxu0 0
        %2890 = vmatpush1.bf16.msra.mxu0 0
        %2891 = vmatprep.subr.bf16.mxu0 0
        %2892 = vmatpush1.bf16.msra.mxu0 0
        %2893 = vmatprep.subr.bf16.mxu0 0
        %2894 = vmatpush1.bf16.msra.mxu0 0
        %2895 = vmatprep.subr.bf16.mxu0 0
        %2896 = vmatpush1.bf16.msra.mxu0 0
        %2897 = vmatprep.subr.bf16.mxu0 0
        %2898 = vmatpush1.bf16.msra.mxu0 0
        %2899 = vmatprep.subr.bf16.mxu0 0
        %2900 = vmatpush1.bf16.msra.mxu0 0
        %2901 = vmatprep.subr.bf16.mxu0 0
        %2902 = vmatpush1.bf16.msra.mxu0 0
        %2903 = vmatprep.mubr.bf16.mxu0 0
        %2904 = vmatmul.mubr.bf16.gmra.mrb[0].mxu0 %v2866
        %v2905 = vpop.f32.mrb[0].mxu0
        %v2906 = vadd.f32 0.0, %v2905
        %v2907 = vpop.f32.mrb[0].mxu0
        %v2908 = vpop.f32.mrb[0].mxu0
        %v2909 = vadd.f32 0.0, %v2908
        %v2910 = vpop.f32.mrb[0].mxu0
        %2911 = vmatprep.mubr.bf16.mxu0 0
        %2912 = vmatmul.mubr.bf16.gmra.mrb[0].mxu0 %v2869
        %v2913 = vpop.f32.mrb[0].mxu0
        %v2914 = vadd.f32 0.0, %v2913
        %v2915 = vpop.f32.mrb[0].mxu0
        %v2916 = vpop.f32.mrb[0].mxu0
        %v2917 = vadd.f32 0.0, %v2916
        %v2918 = vpop.f32.mrb[0].mxu0
        %2919 = vdwg.mxu0
        %vm2920 = vsmask.f32 4352
        %v2921 = vrot.slane %v1376, 3
        %v2922 = vrot.slane %v1576, 4
        %v2923 = vor.u32 %v2921, %v2922
        %v2924 = vrot.slane %v2826, 3
        %v2925 = vrot.slane %v2829, 4
        %v2926 = vor.u32 %v2924, %v2925
        %v2927 = vsel %vm2920, %v2923, %v2926
        %v2928 = vrot.slane %v2834, 3
        %v2929 = vrot.slane %v2837, 4
        %v2930 = vor.u32 %v2928, %v2929
        %v2931 = vsel %vm2920, %v2926, %v2930
        %v2940 = vunpack.c.l.b16 %v2809
        %v2941 = vunpack.c.l.b16 %v2810
        %v2942 = vunpack.c.l.b16 %v2811
        %v2943 = vunpack.c.l.b16 %v2812
        %v2944 = vunpack.c.l.b16 %v2813
        %v2945 = vunpack.c.l.b16 %v2814
        %v2946 = vunpack.c.l.b16 %v2815
        %v2947 = vunpack.c.l.b16 %v2816
        %v2948 = vpack.c.b16 %v2941, %v2940
        %v2949 = vpack.c.b16 %v2943, %v2942
        %v2950 = vpack.c.b16 %v2945, %v2944
        %v2951 = vpack.c.b16 %v2947, %v2946
        %v2957 = vsel %vm2723, %v2927, 0
        %v2960 = vsel %vm2723, %v2931, 0
        %2962 = vmatprep.subr.bf16.mxu0 0
        %2963 = vmatpush1.bf16.msra.mxu0 %v2948
        %2964 = vmatprep.subr.bf16.mxu0 0
        %2965 = vmatpush1.bf16.msra.mxu0 %v2949
        %2966 = vmatprep.subr.bf16.mxu0 0
        %2967 = vmatpush1.bf16.msra.mxu0 %v2950
        %2968 = vmatprep.subr.bf16.mxu0 0
        %2969 = vmatpush1.bf16.msra.mxu0 %v2951
        %2970 = vmatprep.subr.bf16.mxu0 0
        %2971 = vmatpush1.bf16.msra.mxu0 0
        %2972 = vmatprep.subr.bf16.mxu0 0
        %2973 = vmatpush1.bf16.msra.mxu0 0
        %2974 = vmatprep.subr.bf16.mxu0 0
        %2975 = vmatpush1.bf16.msra.mxu0 0
        %2976 = vmatprep.subr.bf16.mxu0 0
        %2977 = vmatpush1.bf16.msra.mxu0 0
        %2978 = vmatprep.subr.bf16.mxu0 0
        %2979 = vmatpush1.bf16.msra.mxu0 0
        %2980 = vmatprep.subr.bf16.mxu0 0
        %2981 = vmatpush1.bf16.msra.mxu0 0
        %2982 = vmatprep.subr.bf16.mxu0 0
        %2983 = vmatpush1.bf16.msra.mxu0 0
        %2984 = vmatprep.subr.bf16.mxu0 0
        %2985 = vmatpush1.bf16.msra.mxu0 0
        %2986 = vmatprep.subr.bf16.mxu0 0
        %2987 = vmatpush1.bf16.msra.mxu0 0
        %2988 = vmatprep.subr.bf16.mxu0 0
        %2989 = vmatpush1.bf16.msra.mxu0 0
        %2990 = vmatprep.subr.bf16.mxu0 0
        %2991 = vmatpush1.bf16.msra.mxu0 0
        %2992 = vmatprep.subr.bf16.mxu0 0
        %2993 = vmatpush1.bf16.msra.mxu0 0
        %2994 = vmatprep.mubr.bf16.mxu0 0
        %2995 = vmatmul.mubr.bf16.gmra.mrb[0].mxu0 %v2957
        %v2996 = vpop.f32.mrb[0].mxu0
        %v2997 = vadd.f32 %v2906, %v2996
        %v2998 = vpop.f32.mrb[0].mxu0
        %v2999 = vpop.f32.mrb[0].mxu0
        %v3000 = vadd.f32 %v2909, %v2999
        %v3001 = vpop.f32.mrb[0].mxu0
        %3002 = vmatprep.mubr.bf16.mxu0 0
        %3003 = vmatmul.mubr.bf16.gmra.mrb[0].mxu0 %v2960
        %v3004 = vpop.f32.mrb[0].mxu0
        %v3005 = vadd.f32 %v2914, %v3004
        %v3006 = vpop.f32.mrb[0].mxu0
        %v3007 = vpop.f32.mrb[0].mxu0
        %v3008 = vadd.f32 %v2917, %v3007
        %v3009 = vpop.f32.mrb[0].mxu0
        %3010 = vdwg.mxu0
        %v3011 = vld [vmem:[%s5 + $0xc0] sm:$0xf]
        %v3012 = vld [vmem:[%s5 + $0xc4] sm:$0xf]
        %v3013 = vld [vmem:[%s5 + $0xc8] sm:$0xf]
        %v3014 = vld [vmem:[%s5 + $0xcc] sm:$0xf]
        %v3015 = vld [vmem:[%s5 + $0xd0] sm:$0xf]
        %v3016 = vld [vmem:[%s5 + $0xd4] sm:$0xf]
        %v3017 = vld [vmem:[%s5 + $0xd8] sm:$0xf]
        %v3018 = vld [vmem:[%s5 + $0xdc] sm:$0xf]
        %v3019 = vsel %vm2920, %v2930, %v2923
        %v3028 = vunpack.c.l.b16 %v3011
        %v3029 = vunpack.c.l.b16 %v3012
        %v3030 = vunpack.c.l.b16 %v3013
        %v3031 = vunpack.c.l.b16 %v3014
        %v3032 = vunpack.c.l.b16 %v3015
        %v3033 = vunpack.c.l.b16 %v3016
        %v3034 = vunpack.c.l.b16 %v3017
        %v3035 = vunpack.c.l.b16 %v3018
        %v3036 = vpack.c.b16 %v3029, %v3028
        %v3037 = vpack.c.b16 %v3031, %v3030
        %v3038 = vpack.c.b16 %v3033, %v3032
        %v3039 = vpack.c.b16 %v3035, %v3034
        %v3045 = vsel %vm2723, %v3019, 0
        %3047 = vmatprep.subr.bf16.mxu0 0
        %3048 = vmatpush1.bf16.msra.mxu0 %v3036
        %3049 = vmatprep.subr.bf16.mxu0 0
        %3050 = vmatpush1.bf16.msra.mxu0 %v3037
        %3051 = vmatprep.subr.bf16.mxu0 0
        %3052 = vmatpush1.bf16.msra.mxu0 %v3038
        %3053 = vmatprep.subr.bf16.mxu0 0
        %3054 = vmatpush1.bf16.msra.mxu0 %v3039
        %3055 = vmatprep.subr.bf16.mxu0 0
        %3056 = vmatpush1.bf16.msra.mxu0 0
        %3057 = vmatprep.subr.bf16.mxu0 0
        %3058 = vmatpush1.bf16.msra.mxu0 0
        %3059 = vmatprep.subr.bf16.mxu0 0
        %3060 = vmatpush1.bf16.msra.mxu0 0
        %3061 = vmatprep.subr.bf16.mxu0 0
        %3062 = vmatpush1.bf16.msra.mxu0 0
        %3063 = vmatprep.subr.bf16.mxu0 0
        %3064 = vmatpush1.bf16.msra.mxu0 0
        %3065 = vmatprep.subr.bf16.mxu0 0
        %3066 = vmatpush1.bf16.msra.mxu0 0
        %3067 = vmatprep.subr.bf16.mxu0 0
        %3068 = vmatpush1.bf16.msra.mxu0 0
        %3069 = vmatprep.subr.bf16.mxu0 0
        %3070 = vmatpush1.bf16.msra.mxu0 0
        %3071 = vmatprep.subr.bf16.mxu0 0
        %3072 = vmatpush1.bf16.msra.mxu0 0
        %3073 = vmatprep.subr.bf16.mxu0 0
        %3074 = vmatpush1.bf16.msra.mxu0 0
        %3075 = vmatprep.subr.bf16.mxu0 0
        %3076 = vmatpush1.bf16.msra.mxu0 0
        %3077 = vmatprep.subr.bf16.mxu0 0
        %3078 = vmatpush1.bf16.msra.mxu0 0
        %3079 = vmatprep.mubr.bf16.mxu0 0
        %3080 = vmatmul.mubr.bf16.gmra.mrb[0].mxu0 %v2960
        %v3081 = vpop.f32.mrb[0].mxu0
        %v3082 = vadd.f32 0.0, %v3081
        %v3083 = vpop.f32.mrb[0].mxu0
        %v3084 = vpop.f32.mrb[0].mxu0
        %v3085 = vadd.f32 0.0, %v3084
        %v3086 = vpop.f32.mrb[0].mxu0
        %3087 = vmatprep.mubr.bf16.mxu0 0
        %3088 = vmatmul.mubr.bf16.gmra.mrb[0].mxu0 %v3045
        %v3089 = vpop.f32.mrb[0].mxu0
        %v3090 = vadd.f32 0.0, %v3089
        %v3091 = vpop.f32.mrb[0].mxu0
        %v3092 = vpop.f32.mrb[0].mxu0
        %v3093 = vadd.f32 0.0, %v3092
        %v3094 = vpop.f32.mrb[0].mxu0
        %3095 = vdwg.mxu0
        %v3096 = vadd.f32 %v2997, %v3082
        %v3097 = vadd.f32 %v3000, %v3085
        %v3098 = vadd.f32 %v3005, %v3090
        %v3099 = vadd.f32 %v3008, %v3093
        %v3100 = vld [vmem:[%s5 + $0x20] sm:$0xf]
        %v3101 = vld [vmem:[%s5 + $0x24] sm:$0xf]
        %v3102 = vld [vmem:[%s5 + $0x28] sm:$0xf]
        %v3103 = vld [vmem:[%s5 + $0x2c] sm:$0xf]
        %v3104 = vld [vmem:[%s5 + $0x30] sm:$0xf]
        %v3105 = vld [vmem:[%s5 + $0x34] sm:$0xf]
        %v3106 = vld [vmem:[%s5 + $0x38] sm:$0xf]
        %v3107 = vld [vmem:[%s5 + $0x3c] sm:$0xf]
        %vm3111 = vcmask 1043456
        %v3112 = vrot.slane 0, 4
        %v3113 = vrot.slane %v2807, 4
        %v3114 = vsel %vm3111, %v3112, %v3113
        %v3115 = vrot.slane %v2808, 4
        %v3116 = vsel %vm3111, %v3113, %v3115
        %v3125 = vunpack.c.l.b16 %v3100
        %v3126 = vunpack.c.l.b16 %v3101
        %v3127 = vunpack.c.l.b16 %v3102
        %v3128 = vunpack.c.l.b16 %v3103
        %v3129 = vunpack.c.l.b16 %v3104
        %v3130 = vunpack.c.l.b16 %v3105
        %v3131 = vunpack.c.l.b16 %v3106
        %v3132 = vunpack.c.l.b16 %v3107
        %v3133 = vpack.c.b16 %v3126, %v3125
        %v3134 = vpack.c.b16 %v3128, %v3127
        %v3135 = vpack.c.b16 %v3130, %v3129
        %v3136 = vpack.c.b16 %v3132, %v3131
        %v3142 = vsel %vm2723, %v3114, 0
        %v3145 = vsel %vm2723, %v3116, 0
        %3147 = vmatprep.subr.bf16.mxu0 0
        %3148 = vmatpush1.bf16.msra.mxu0 %v3133
        %3149 = vmatprep.subr.bf16.mxu0 0
        %3150 = vmatpush1.bf16.msra.mxu0 %v3134
        %3151 = vmatprep.subr.bf16.mxu0 0
        %3152 = vmatpush1.bf16.msra.mxu0 %v3135
        %3153 = vmatprep.subr.bf16.mxu0 0
        %3154 = vmatpush1.bf16.msra.mxu0 %v3136
        %3155 = vmatprep.subr.bf16.mxu0 0
        %3156 = vmatpush1.bf16.msra.mxu0 0
        %3157 = vmatprep.subr.bf16.mxu0 0
        %3158 = vmatpush1.bf16.msra.mxu0 0
        %3159 = vmatprep.subr.bf16.mxu0 0
        %3160 = vmatpush1.bf16.msra.mxu0 0
        %3161 = vmatprep.subr.bf16.mxu0 0
        %3162 = vmatpush1.bf16.msra.mxu0 0
        %3163 = vmatprep.subr.bf16.mxu0 0
        %3164 = vmatpush1.bf16.msra.mxu0 0
        %3165 = vmatprep.subr.bf16.mxu0 0
        %3166 = vmatpush1.bf16.msra.mxu0 0
        %3167 = vmatprep.subr.bf16.mxu0 0
        %3168 = vmatpush1.bf16.msra.mxu0 0
        %3169 = vmatprep.subr.bf16.mxu0 0
        %3170 = vmatpush1.bf16.msra.mxu0 0
        %3171 = vmatprep.subr.bf16.mxu0 0
        %3172 = vmatpush1.bf16.msra.mxu0 0
        %3173 = vmatprep.subr.bf16.mxu0 0
        %3174 = vmatpush1.bf16.msra.mxu0 0
        %3175 = vmatprep.subr.bf16.mxu0 0
        %3176 = vmatpush1.bf16.msra.mxu0 0
        %3177 = vmatprep.subr.bf16.mxu0 0
        %3178 = vmatpush1.bf16.msra.mxu0 0
        %3179 = vmatprep.mubr.bf16.mxu0 0
        %3180 = vmatmul.mubr.bf16.gmra.mrb[0].mxu0 %v3142
        %v3181 = vpop.f32.mrb[0].mxu0
        %v3182 = vadd.f32 0.0, %v3181
        %v3183 = vpop.f32.mrb[0].mxu0
        %v3184 = vpop.f32.mrb[0].mxu0
        %v3185 = vadd.f32 0.0, %v3184
        %v3186 = vpop.f32.mrb[0].mxu0
        %3187 = vmatprep.mubr.bf16.mxu0 0
        %3188 = vmatmul.mubr.bf16.gmra.mrb[0].mxu0 %v3145
        %v3189 = vpop.f32.mrb[0].mxu0
        %v3190 = vadd.f32 0.0, %v3189
        %v3191 = vpop.f32.mrb[0].mxu0
        %v3192 = vpop.f32.mrb[0].mxu0
        %v3193 = vadd.f32 0.0, %v3192
        %v3194 = vpop.f32.mrb[0].mxu0
        %3195 = vdwg.mxu0
        %v3196 = vadd.f32 %v3096, %v3182
        %v3197 = vadd.f32 %v3097, %v3185
        %v3198 = vadd.f32 %v3098, %v3190
        %v3199 = vadd.f32 %v3099, %v3193
        %v3200 = vld [vmem:[%s5 + $0x80] sm:$0xf]
        %v3201 = vld [vmem:[%s5 + $0x84] sm:$0xf]
        %v3202 = vld [vmem:[%s5 + $0x88] sm:$0xf]
        %v3203 = vld [vmem:[%s5 + $0x8c] sm:$0xf]
        %v3204 = vld [vmem:[%s5 + $0x90] sm:$0xf]
        %v3205 = vld [vmem:[%s5 + $0x94] sm:$0xf]
        %v3206 = vld [vmem:[%s5 + $0x98] sm:$0xf]
        %v3207 = vld [vmem:[%s5 + $0x9c] sm:$0xf]
        %v3216 = vunpack.c.l.b16 %v3200
        %v3217 = vunpack.c.l.b16 %v3201
        %v3218 = vunpack.c.l.b16 %v3202
        %v3219 = vunpack.c.l.b16 %v3203
        %v3220 = vunpack.c.l.b16 %v3204
        %v3221 = vunpack.c.l.b16 %v3205
        %v3222 = vunpack.c.l.b16 %v3206
        %v3223 = vunpack.c.l.b16 %v3207
        %v3224 = vpack.c.b16 %v3217, %v3216
        %v3225 = vpack.c.b16 %v3219, %v3218
        %v3226 = vpack.c.b16 %v3221, %v3220
        %v3227 = vpack.c.b16 %v3223, %v3222
        %v3232 = vsel %vm2723, %v2807, 0
        %v3234 = vsel %vm2723, %v2808, 0
        %3236 = vmatprep.subr.bf16.mxu0 0
        %3237 = vmatpush1.bf16.msra.mxu0 %v3224
        %3238 = vmatprep.subr.bf16.mxu0 0
        %3239 = vmatpush1.bf16.msra.mxu0 %v3225
        %3240 = vmatprep.subr.bf16.mxu0 0
        %3241 = vmatpush1.bf16.msra.mxu0 %v3226
        %3242 = vmatprep.subr.bf16.mxu0 0
        %3243 = vmatpush1.bf16.msra.mxu0 %v3227
        %3244 = vmatprep.subr.bf16.mxu0 0
        %3245 = vmatpush1.bf16.msra.mxu0 0
        %3246 = vmatprep.subr.bf16.mxu0 0
        %3247 = vmatpush1.bf16.msra.mxu0 0
        %3248 = vmatprep.subr.bf16.mxu0 0
        %3249 = vmatpush1.bf16.msra.mxu0 0
        %3250 = vmatprep.subr.bf16.mxu0 0
        %3251 = vmatpush1.bf16.msra.mxu0 0
        %3252 = vmatprep.subr.bf16.mxu0 0
        %3253 = vmatpush1.bf16.msra.mxu0 0
        %3254 = vmatprep.subr.bf16.mxu0 0
        %3255 = vmatpush1.bf16.msra.mxu0 0
        %3256 = vmatprep.subr.bf16.mxu0 0
        %3257 = vmatpush1.bf16.msra.mxu0 0
        %3258 = vmatprep.subr.bf16.mxu0 0
        %3259 = vmatpush1.bf16.msra.mxu0 0
        %3260 = vmatprep.subr.bf16.mxu0 0
        %3261 = vmatpush1.bf16.msra.mxu0 0
        %3262 = vmatprep.subr.bf16.mxu0 0
        %3263 = vmatpush1.bf16.msra.mxu0 0
        %3264 = vmatprep.subr.bf16.mxu0 0
        %3265 = vmatpush1.bf16.msra.mxu0 0
        %3266 = vmatprep.subr.bf16.mxu0 0
        %3267 = vmatpush1.bf16.msra.mxu0 0
        %3268 = vmatprep.mubr.bf16.mxu0 0
        %3269 = vmatmul.mubr.bf16.gmra.mrb[0].mxu0 %v3232
        %v3270 = vpop.f32.mrb[0].mxu0
        %v3271 = vadd.f32 0.0, %v3270
        %v3272 = vpop.f32.mrb[0].mxu0
        %v3273 = vpop.f32.mrb[0].mxu0
        %v3274 = vadd.f32 0.0, %v3273
        %v3275 = vpop.f32.mrb[0].mxu0
        %3276 = vmatprep.mubr.bf16.mxu0 0
        %3277 = vmatmul.mubr.bf16.gmra.mrb[0].mxu0 %v3234
        %v3278 = vpop.f32.mrb[0].mxu0
        %v3279 = vadd.f32 0.0, %v3278
        %v3280 = vpop.f32.mrb[0].mxu0
        %v3281 = vpop.f32.mrb[0].mxu0
        %v3282 = vadd.f32 0.0, %v3281
        %v3283 = vpop.f32.mrb[0].mxu0
        %3284 = vdwg.mxu0
        %v3285 = vadd.f32 %v3196, %v3271
        %v3286 = vadd.f32 %v3197, %v3274
        %v3287 = vadd.f32 %v3198, %v3279
        %v3288 = vadd.f32 %v3199, %v3282
        %v3289 = vld [vmem:[%s5 + $0xe0] sm:$0xf]
        %v3290 = vld [vmem:[%s5 + $0xe4] sm:$0xf]
        %v3291 = vld [vmem:[%s5 + $0xe8] sm:$0xf]
        %v3292 = vld [vmem:[%s5 + $0xec] sm:$0xf]
        %v3293 = vld [vmem:[%s5 + $0xf0] sm:$0xf]
        %v3294 = vld [vmem:[%s5 + $0xf4] sm:$0xf]
        %v3295 = vld [vmem:[%s5 + $0xf8] sm:$0xf]
        %v3296 = vld [vmem:[%s5 + $0xfc] sm:$0xf]
        %v3297 = vsel %vm3111, %v3115, %v3112
        %v3306 = vunpack.c.l.b16 %v3289
        %v3307 = vunpack.c.l.b16 %v3290
        %v3308 = vunpack.c.l.b16 %v3291
        %v3309 = vunpack.c.l.b16 %v3292
        %v3310 = vunpack.c.l.b16 %v3293
        %v3311 = vunpack.c.l.b16 %v3294
        %v3312 = vunpack.c.l.b16 %v3295
        %v3313 = vunpack.c.l.b16 %v3296
        %v3314 = vpack.c.b16 %v3307, %v3306
        %v3315 = vpack.c.b16 %v3309, %v3308
        %v3316 = vpack.c.b16 %v3311, %v3310
        %v3317 = vpack.c.b16 %v3313, %v3312
        %v3323 = vsel %vm2723, %v3297, 0
        %3325 = vmatprep.subr.bf16.mxu0 0
        %3326 = vmatpush1.bf16.msra.mxu0 %v3314
        %3327 = vmatprep.subr.bf16.mxu0 0
        %3328 = vmatpush1.bf16.msra.mxu0 %v3315
        %3329 = vmatprep.subr.bf16.mxu0 0
        %3330 = vmatpush1.bf16.msra.mxu0 %v3316
        %3331 = vmatprep.subr.bf16.mxu0 0
        %3332 = vmatpush1.bf16.msra.mxu0 %v3317
        %3333 = vmatprep.subr.bf16.mxu0 0
        %3334 = vmatpush1.bf16.msra.mxu0 0
        %3335 = vmatprep.subr.bf16.mxu0 0
        %3336 = vmatpush1.bf16.msra.mxu0 0
        %3337 = vmatprep.subr.bf16.mxu0 0
        %3338 = vmatpush1.bf16.msra.mxu0 0
        %3339 = vmatprep.subr.bf16.mxu0 0
        %3340 = vmatpush1.bf16.msra.mxu0 0
        %3341 = vmatprep.subr.bf16.mxu0 0
        %3342 = vmatpush1.bf16.msra.mxu0 0
        %3343 = vmatprep.subr.bf16.mxu0 0
        %3344 = vmatpush1.bf16.msra.mxu0 0
        %3345 = vmatprep.subr.bf16.mxu0 0
        %3346 = vmatpush1.bf16.msra.mxu0 0
        %3347 = vmatprep.subr.bf16.mxu0 0
        %3348 = vmatpush1.bf16.msra.mxu0 0
        %3349 = vmatprep.subr.bf16.mxu0 0
        %3350 = vmatpush1.bf16.msra.mxu0 0
        %3351 = vmatprep.subr.bf16.mxu0 0
        %3352 = vmatpush1.bf16.msra.mxu0 0
        %3353 = vmatprep.subr.bf16.mxu0 0
        %3354 = vmatpush1.bf16.msra.mxu0 0
        %3355 = vmatprep.subr.bf16.mxu0 0
        %3356 = vmatpush1.bf16.msra.mxu0 0
        %3357 = vmatprep.mubr.bf16.mxu0 0
        %3358 = vmatmul.mubr.bf16.gmra.mrb[0].mxu0 %v3145
        %v3359 = vpop.f32.mrb[0].mxu0
        %v3360 = vadd.f32 0.0, %v3359
        %v3361 = vpop.f32.mrb[0].mxu0
        %v3362 = vpop.f32.mrb[0].mxu0
        %v3363 = vadd.f32 0.0, %v3362
        %v3364 = vpop.f32.mrb[0].mxu0
        %3365 = vmatprep.mubr.bf16.mxu0 0
        %3366 = vmatmul.mubr.bf16.gmra.mrb[0].mxu0 %v3323
        %v3367 = vpop.f32.mrb[0].mxu0
        %v3368 = vadd.f32 0.0, %v3367
        %v3369 = vpop.f32.mrb[0].mxu0
        %v3370 = vpop.f32.mrb[0].mxu0
        %v3371 = vadd.f32 0.0, %v3370
        %v3372 = vpop.f32.mrb[0].mxu0
        %3373 = vdwg.mxu0
        %v3374 = vadd.f32 %v3285, %v3360
        %v3375 = vadd.f32 %v3286, %v3363
        %v3376 = vadd.f32 %v3287, %v3368
        %v3377 = vadd.f32 %v3288, %v3371
        %v3378 = vld [vmem:[%s5 + $0x40] sm:$0xf]
        %v3379 = vld [vmem:[%s5 + $0x44] sm:$0xf]
        %v3380 = vld [vmem:[%s5 + $0x48] sm:$0xf]
        %v3381 = vld [vmem:[%s5 + $0x4c] sm:$0xf]
        %v3382 = vld [vmem:[%s5 + $0x50] sm:$0xf]
        %v3383 = vld [vmem:[%s5 + $0x54] sm:$0xf]
        %v3384 = vld [vmem:[%s5 + $0x58] sm:$0xf]
        %v3385 = vld [vmem:[%s5 + $0x5c] sm:$0xf]
        %vm3386 = vsmask.f32 3328
        %v3387 = vrot.slane %v1376, 4
        %v3388 = vrot.slane %v1576, 5
        %v3389 = vor.u32 %v3387, %v3388
        %v3390 = vrot.slane %v2826, 4
        %v3391 = vrot.slane %v2829, 5
        %v3392 = vor.u32 %v3390, %v3391
        %v3393 = vsel %vm3386, %v3389, %v3392
        %v3394 = vrot.slane %v2834, 4
        %v3395 = vrot.slane %v2837, 5
        %v3396 = vor.u32 %v3394, %v3395
        %v3397 = vsel %vm3386, %v3392, %v3396
        %v3406 = vunpack.c.l.b16 %v3378
        %v3407 = vunpack.c.l.b16 %v3379
        %v3408 = vunpack.c.l.b16 %v3380
        %v3409 = vunpack.c.l.b16 %v3381
        %v3410 = vunpack.c.l.b16 %v3382
        %v3411 = vunpack.c.l.b16 %v3383
        %v3412 = vunpack.c.l.b16 %v3384
        %v3413 = vunpack.c.l.b16 %v3385
        %v3414 = vpack.c.b16 %v3407, %v3406
        %v3415 = vpack.c.b16 %v3409, %v3408
        %v3416 = vpack.c.b16 %v3411, %v3410
        %v3417 = vpack.c.b16 %v3413, %v3412
        %v3423 = vsel %vm2723, %v3393, 0
        %v3426 = vsel %vm2723, %v3397, 0
        %3428 = vmatprep.subr.bf16.mxu0 0
        %3429 = vmatpush1.bf16.msra.mxu0 %v3414
        %3430 = vmatprep.subr.bf16.mxu0 0
        %3431 = vmatpush1.bf16.msra.mxu0 %v3415
        %3432 = vmatprep.subr.bf16.mxu0 0
        %3433 = vmatpush1.bf16.msra.mxu0 %v3416
        %3434 = vmatprep.subr.bf16.mxu0 0
        %3435 = vmatpush1.bf16.msra.mxu0 %v3417
        %3436 = vmatprep.subr.bf16.mxu0 0
        %3437 = vmatpush1.bf16.msra.mxu0 0
        %3438 = vmatprep.subr.bf16.mxu0 0
        %3439 = vmatpush1.bf16.msra.mxu0 0
        %3440 = vmatprep.subr.bf16.mxu0 0
        %3441 = vmatpush1.bf16.msra.mxu0 0
        %3442 = vmatprep.subr.bf16.mxu0 0
        %3443 = vmatpush1.bf16.msra.mxu0 0
        %3444 = vmatprep.subr.bf16.mxu0 0
        %3445 = vmatpush1.bf16.msra.mxu0 0
        %3446 = vmatprep.subr.bf16.mxu0 0
        %3447 = vmatpush1.bf16.msra.mxu0 0
        %3448 = vmatprep.subr.bf16.mxu0 0
        %3449 = vmatpush1.bf16.msra.mxu0 0
        %3450 = vmatprep.subr.bf16.mxu0 0
        %3451 = vmatpush1.bf16.msra.mxu0 0
        %3452 = vmatprep.subr.bf16.mxu0 0
        %3453 = vmatpush1.bf16.msra.mxu0 0
        %3454 = vmatprep.subr.bf16.mxu0 0
        %3455 = vmatpush1.bf16.msra.mxu0 0
        %3456 = vmatprep.subr.bf16.mxu0 0
        %3457 = vmatpush1.bf16.msra.mxu0 0
        %3458 = vmatprep.subr.bf16.mxu0 0
        %3459 = vmatpush1.bf16.msra.mxu0 0
        %3460 = vmatprep.mubr.bf16.mxu0 0
        %3461 = vmatmul.mubr.bf16.gmra.mrb[0].mxu0 %v3423
        %v3462 = vpop.f32.mrb[0].mxu0
        %v3463 = vadd.f32 0.0, %v3462
        %v3464 = vpop.f32.mrb[0].mxu0
        %v3465 = vpop.f32.mrb[0].mxu0
        %v3466 = vadd.f32 0.0, %v3465
        %v3467 = vpop.f32.mrb[0].mxu0
        %3468 = vmatprep.mubr.bf16.mxu0 0
        %3469 = vmatmul.mubr.bf16.gmra.mrb[0].mxu0 %v3426
        %v3470 = vpop.f32.mrb[0].mxu0
        %v3471 = vadd.f32 0.0, %v3470
        %v3472 = vpop.f32.mrb[0].mxu0
        %v3473 = vpop.f32.mrb[0].mxu0
        %v3474 = vadd.f32 0.0, %v3473
        %v3475 = vpop.f32.mrb[0].mxu0
        %3476 = vdwg.mxu0
        %v3477 = vadd.f32 %v3374, %v3463
        %v3478 = vadd.f32 %v3375, %v3466
        %v3479 = vadd.f32 %v3376, %v3471
        %v3480 = vadd.f32 %v3377, %v3474
        %v3481 = vld [vmem:[%s5 + $0xa0] sm:$0xf]
        %v3482 = vld [vmem:[%s5 + $0xa4] sm:$0xf]
        %v3483 = vld [vmem:[%s5 + $0xa8] sm:$0xf]
        %v3484 = vld [vmem:[%s5 + $0xac] sm:$0xf]
        %v3485 = vld [vmem:[%s5 + $0xb0] sm:$0xf]
        %v3486 = vld [vmem:[%s5 + $0xb4] sm:$0xf]
        %v3487 = vld [vmem:[%s5 + $0xb8] sm:$0xf]
        %v3488 = vld [vmem:[%s5 + $0xbc] sm:$0xf]
        %v3489 = vrot.slane %v2829, 1
        %v3490 = vor.u32 %v2826, %v3489
        %v3491 = vrot.slane %v2837, 1
        %v3492 = vsel %vm2234, %v3490, %v3491
        %v3493 = vor.u32 %v2834, %v3491
        %v3494 = vsel %vm2234, %v3493, %v2235
        %v3503 = vunpack.c.l.b16 %v3481
        %v3504 = vunpack.c.l.b16 %v3482
        %v3505 = vunpack.c.l.b16 %v3483
        %v3506 = vunpack.c.l.b16 %v3484
        %v3507 = vunpack.c.l.b16 %v3485
        %v3508 = vunpack.c.l.b16 %v3486
        %v3509 = vunpack.c.l.b16 %v3487
        %v3510 = vunpack.c.l.b16 %v3488
        %v3511 = vpack.c.b16 %v3504, %v3503
        %v3512 = vpack.c.b16 %v3506, %v3505
        %v3513 = vpack.c.b16 %v3508, %v3507
        %v3514 = vpack.c.b16 %v3510, %v3509
        %v3520 = vsel %vm2723, %v3492, 0
        %v3523 = vsel %vm2723, %v3494, 0
        %3525 = vmatprep.subr.bf16.mxu0 0
        %3526 = vmatpush1.bf16.msra.mxu0 %v3511
        %3527 = vmatprep.subr.bf16.mxu0 0
        %3528 = vmatpush1.bf16.msra.mxu0 %v3512
        %3529 = vmatprep.subr.bf16.mxu0 0
        %3530 = vmatpush1.bf16.msra.mxu0 %v3513
        %3531 = vmatprep.subr.bf16.mxu0 0
        %3532 = vmatpush1.bf16.msra.mxu0 %v3514
        %3533 = vmatprep.subr.bf16.mxu0 0
        %3534 = vmatpush1.bf16.msra.mxu0 0
        %3535 = vmatprep.subr.bf16.mxu0 0
        %3536 = vmatpush1.bf16.msra.mxu0 0
        %3537 = vmatprep.subr.bf16.mxu0 0
        %3538 = vmatpush1.bf16.msra.mxu0 0
        %3539 = vmatprep.subr.bf16.mxu0 0
        %3540 = vmatpush1.bf16.msra.mxu0 0
        %3541 = vmatprep.subr.bf16.mxu0 0
        %3542 = vmatpush1.bf16.msra.mxu0 0
        %3543 = vmatprep.subr.bf16.mxu0 0
        %3544 = vmatpush1.bf16.msra.mxu0 0
        %3545 = vmatprep.subr.bf16.mxu0 0
        %3546 = vmatpush1.bf16.msra.mxu0 0
        %3547 = vmatprep.subr.bf16.mxu0 0
        %3548 = vmatpush1.bf16.msra.mxu0 0
        %3549 = vmatprep.subr.bf16.mxu0 0
        %3550 = vmatpush1.bf16.msra.mxu0 0
        %3551 = vmatprep.subr.bf16.mxu0 0
        %3552 = vmatpush1.bf16.msra.mxu0 0
        %3553 = vmatprep.subr.bf16.mxu0 0
        %3554 = vmatpush1.bf16.msra.mxu0 0
        %3555 = vmatprep.subr.bf16.mxu0 0
        %3556 = vmatpush1.bf16.msra.mxu0 0
        %3557 = vmatprep.mubr.bf16.mxu0 0
        %3558 = vmatmul.mubr.bf16.gmra.mrb[0].mxu0 %v3520
        %v3559 = vpop.f32.mrb[0].mxu0
        %v3560 = vadd.f32 0.0, %v3559
        %v3561 = vpop.f32.mrb[0].mxu0
        %v3562 = vpop.f32.mrb[0].mxu0
        %v3563 = vadd.f32 0.0, %v3562
        %v3564 = vpop.f32.mrb[0].mxu0
        %3565 = vmatprep.mubr.bf16.mxu0 0
        %3566 = vmatmul.mubr.bf16.gmra.mrb[0].mxu0 %v3523
        %v3567 = vpop.f32.mrb[0].mxu0
        %v3568 = vadd.f32 0.0, %v3567
        %v3569 = vpop.f32.mrb[0].mxu0
        %v3570 = vpop.f32.mrb[0].mxu0
        %v3571 = vadd.f32 0.0, %v3570
        %v3572 = vpop.f32.mrb[0].mxu0
        %3573 = vdwg.mxu0
        %v3574 = vadd.f32 %v3477, %v3560
        %v3575 = vadd.f32 %v3478, %v3563
        %v3576 = vadd.f32 %v3479, %v3568
        %v3577 = vadd.f32 %v3480, %v3571
        %v3578 = vld [vmem:[%s5 + $0x100] sm:$0xf]
        %v3579 = vld [vmem:[%s5 + $0x104] sm:$0xf]
        %v3580 = vld [vmem:[%s5 + $0x108] sm:$0xf]
        %v3581 = vld [vmem:[%s5 + $0x10c] sm:$0xf]
        %v3582 = vld [vmem:[%s5 + $0x110] sm:$0xf]
        %v3583 = vld [vmem:[%s5 + $0x114] sm:$0xf]
        %v3584 = vld [vmem:[%s5 + $0x118] sm:$0xf]
        %v3585 = vld [vmem:[%s5 + $0x11c] sm:$0xf]
        %v3586 = vsel %vm3386, %v3396, %v3389
        %v3595 = vunpack.c.l.b16 %v3578
        %v3596 = vunpack.c.l.b16 %v3579
        %v3597 = vunpack.c.l.b16 %v3580
        %v3598 = vunpack.c.l.b16 %v3581
        %v3599 = vunpack.c.l.b16 %v3582
        %v3600 = vunpack.c.l.b16 %v3583
        %v3601 = vunpack.c.l.b16 %v3584
        %v3602 = vunpack.c.l.b16 %v3585
        %v3603 = vpack.c.b16 %v3596, %v3595
        %v3604 = vpack.c.b16 %v3598, %v3597
        %v3605 = vpack.c.b16 %v3600, %v3599
        %v3606 = vpack.c.b16 %v3602, %v3601
        %v3612 = vsel %vm2723, %v3586, 0
        %3614 = vmatprep.subr.bf16.mxu0 0
        %3615 = vmatpush1.bf16.msra.mxu0 %v3603
        %3616 = vmatprep.subr.bf16.mxu0 0
        %3617 = vmatpush1.bf16.msra.mxu0 %v3604
        %3618 = vmatprep.subr.bf16.mxu0 0
        %3619 = vmatpush1.bf16.msra.mxu0 %v3605
        %3620 = vmatprep.subr.bf16.mxu0 0
        %3621 = vmatpush1.bf16.msra.mxu0 %v3606
        %3622 = vmatprep.subr.bf16.mxu0 0
        %3623 = vmatpush1.bf16.msra.mxu0 0
        %3624 = vmatprep.subr.bf16.mxu0 0
        %3625 = vmatpush1.bf16.msra.mxu0 0
        %3626 = vmatprep.subr.bf16.mxu0 0
        %3627 = vmatpush1.bf16.msra.mxu0 0
        %3628 = vmatprep.subr.bf16.mxu0 0
        %3629 = vmatpush1.bf16.msra.mxu0 0
        %3630 = vmatprep.subr.bf16.mxu0 0
        %3631 = vmatpush1.bf16.msra.mxu0 0
        %3632 = vmatprep.subr.bf16.mxu0 0
        %3633 = vmatpush1.bf16.msra.mxu0 0
        %3634 = vmatprep.subr.bf16.mxu0 0
        %3635 = vmatpush1.bf16.msra.mxu0 0
        %3636 = vmatprep.subr.bf16.mxu0 0
        %3637 = vmatpush1.bf16.msra.mxu0 0
        %3638 = vmatprep.subr.bf16.mxu0 0
        %3639 = vmatpush1.bf16.msra.mxu0 0
        %3640 = vmatprep.subr.bf16.mxu0 0
        %3641 = vmatpush1.bf16.msra.mxu0 0
        %3642 = vmatprep.subr.bf16.mxu0 0
        %3643 = vmatpush1.bf16.msra.mxu0 0
        %3644 = vmatprep.subr.bf16.mxu0 0
        %3645 = vmatpush1.bf16.msra.mxu0 0
        %3646 = vmatprep.mubr.bf16.mxu0 0
        %3647 = vmatmul.mubr.bf16.gmra.mrb[0].mxu0 %v3426
        %v3648 = vpop.f32.mrb[0].mxu0
        %v3649 = vadd.f32 0.0, %v3648
        %v3650 = vpop.f32.mrb[0].mxu0
        %v3651 = vpop.f32.mrb[0].mxu0
        %v3652 = vadd.f32 0.0, %v3651
        %v3653 = vpop.f32.mrb[0].mxu0
        %3654 = vmatprep.mubr.bf16.mxu0 0
        %3655 = vmatmul.mubr.bf16.gmra.mrb[0].mxu0 %v3612
        %v3656 = vpop.f32.mrb[0].mxu0
        %v3657 = vadd.f32 0.0, %v3656
        %v3658 = vpop.f32.mrb[0].mxu0
        %v3659 = vpop.f32.mrb[0].mxu0
        %v3660 = vadd.f32 0.0, %v3659
        %v3661 = vpop.f32.mrb[0].mxu0
        %3662 = vdwg.mxu0
        %v3663 = vadd.f32 %v3574, %v3649
        %v3664 = vadd.f32 %v3575, %v3652
        %v3665 = vadd.f32 %v3576, %v3657
        %v3666 = vadd.f32 %v3577, %v3660
        %v3667 = vld [vmem:[%s6] sm:$0x1]
        %v3669 = vlaneseq
        %v3670 = vshrl.u32 %v3669, 7
        %v3671 = vsub.s32 0, %v3670
        %v3672 = vrot.slane %v3667, %v3671
        %v3674 = vadd.f32 %v3663, %v3672
        %v3675 = vadd.f32 %v3664, %v3672
        %v3676 = vadd.f32 %v3665, %v3672
        %v3677 = vadd.f32 %v3666, %v3672
        %v3678 = vmax.f32 %v3674, 0.0
        %v3679 = vmax.f32 %v3675, 0.0
        %v3680 = vmax.f32 %v3676, 0.0
        %v3681 = vmax.f32 %v3677, 0.0
        %v3682 = vmax.f32 %v3678, %v3679
        %v3683 = vmax.f32 %v3680, %v3681
        %v3685 = vrot.slane %v3682, 1
        %v3687 = vmax.f32 %v3682, %v3685
        %v3689 = vrot.slane %v3683, 1
        %v3691 = vmax.f32 %v3683, %v3689
        %v3693 = vrot.slane %v3687, 1
        %v3696 = vrot.slane %v3691, 6
        %v3698 = vrot.slane %v3691, 7
        %vm3700 = vcmask 1040384
        %v3701 = vsel %vm3700, %v3687, %v3693
        %vm3702 = vcmask 1041408
        %v3703 = vsel %vm3702, %v3701, %v3696
        %vm3704 = vcmask 1042432
        %v3705 = vsel %vm3704, %v3703, %v3698
        %3706 = vst [vmem:[%s271] sm:$0xf] %v3705
        %s3707 = sand.u32 %s181, 1
        %s3708 = scalar_lea.sflag [#allocation5], %s3707
        %s3709 = sand.u32 %s181, 1
        %s3710 = smul.addr %s3709, 4
        %s3711 = scalar_lea.vmem [#allocation4], %s3710
        // Predicated region
        $region49: #{feature_cnn_forward.1} parent=47 // pred_check
          %p3712 = pneg %p191
        $region50: #{feature_cnn_forward.1} parent=47 // pred_check_branch
          %3714 = sbr.rel (%p3712) target = $region52
        $region51: #{feature_cnn_forward.1} parent=47 // pred_region
          %s3716 = ssub.s32 64, 64
          %3717 = vsyncadd %s3708, %s3716
          %s3718 = smul.addr %s21, 64
          %s3719 = scalar_lea.hbm %s7, %s3718
          %s3721 = sshll.u32 %s3711, 4
          %s3722 = int_to_ptr.vmem [resolvable:$true] %s3721
          %3724 = dma.vmem_to_hbm [thread:$0]  %s3722, 64, %s3719, %s3708
        $region52: #{feature_cnn_forward.1} parent=47 // pred_fallthru
          _
      $region48: #{feature_cnn_forward.1} parent=5 // pred_fallthru
        _
      %p3725 = scmp.le.s32.totalorder 2, %s16
      // Predicated region
      $region53: #{feature_cnn_forward.1} parent=5 // pred_check
        %p3726 = pneg %p3725
      $region54: #{feature_cnn_forward.1} parent=5 // pred_check_branch
        %3728 = sbr.rel (%p3726) target = $region56
      $region55: #{feature_cnn_forward.1} parent=5 // pred_region
        %s3729 = ssub.s32 %s16, 2
        // Predicated region
        $region57: #{feature_cnn_forward.1} parent=55 // pred_check
          %p3730 = pneg %p197
        $region58: #{feature_cnn_forward.1} parent=55 // pred_check_branch
          %3732 = sbr.rel (%p3730) target = $region60
        $region59: #{feature_cnn_forward.1} parent=55 // pred_region
          %s3733 = sand.u32 %s182, 1
          %s3734 = scalar_lea.sflag [#allocation5], %s3733
          %s3735 = sand.u32 %s182, 1
          %s3736 = smul.addr %s3735, 4
          %s3737 = scalar_lea.vmem [#allocation4], %s3736
          %3738 = dma.done %s3734, 64
        $region60: #{feature_cnn_forward.1} parent=55 // pred_fallthru
          _
      $region56: #{feature_cnn_forward.1} parent=5 // pred_fallthru
        _
    $region6: #{feature_cnn_forward.1} parent=1 // loop_footer
      %s20 = sadd.s32 1, %s16
    $region7: #{feature_cnn_forward.1} parent=1 // loop_footer_branch
      %15 = sbr.rel target = $region3
    $region8: #{feature_cnn_forward.1} parent=1 // loop_exit
      _
    %3739 = vsyncpa [#allocation5], 1
    %s3740 = scalar_lea.sflag [#allocation5], 1
    %3741 = vsyncpa %s3740, 1

</llo_original>
